<compile_context>
chip_gen: v5e
topology: v5e:2x2
jax: 0.10.0
libtpu: 0.0.40
codegen_flags: <defaults>
</compile_context>

<pallas_src>
import functools

import jax
import jax.numpy as jnp
from jax.experimental import pallas as pl
from jax.experimental.pallas import tpu as pltpu


def _round_up(x, m):
    return ((x + m - 1) // m) * m


# --------------------------- fused 4-layer kernel ----------------------------

def _fused_torchnet2_kernel(*refs, layers, H, W, rows, eps):
    """Entire Conv-BN(-ReLU) stack in one invocation.

    refs = (h_idx, w_idx, x, w0, gb0, w1, gb1, ..., out, patch_scr)
      h_idx, w_idx : (1, R) int32  per-pixel spatial row/col index (-1e6 on lane pad)
      x            : (Cin_pad, R) f32  input, channels on sublanes, pixels on lanes
      w_l          : (Cout_l, KH*KW*Cin_pad_l) f32 folded weights (tap-major, ch-minor)
      gb_l         : (Cout_l, 2) f32  packed [gamma | beta]
      out          : (Cout_last, R) f32
      patch_scr    : (K_max, R) f32 VMEM scratch for the big-K patch slab
    """
    n_layers = len(layers)
    h_idx_ref, w_idx_ref, x_ref = refs[0], refs[1], refs[2]
    layer_refs = refs[3:3 + 2 * n_layers]
    out_ref = refs[3 + 2 * n_layers]
    patch_scr = refs[4 + 2 * n_layers]

    R = out_ref.shape[1]
    h_idx = h_idx_ref[...]                                     # (1, R) int32
    w_idx = w_idx_ref[...]                                     # (1, R) int32
    # 1.0 on real pixels, 0.0 on lane padding (h_idx/w_idx are -1e6 there)
    valid = jnp.where((h_idx >= 0) & (w_idx >= 0), 1.0, 0.0)   # (1, R) f32
    inv_rows = 1.0 / rows

    act = x_ref[...]                                           # (Cin_pad, R) f32

    for li, (kh, kw, cin_pad, cout, relu) in enumerate(layers):
        ph, pw = (kh - 1) // 2, (kw - 1) // 2
        w_ref = layer_refs[2 * li]
        gb_ref = layer_refs[2 * li + 1]
        K = kh * kw * cin_pad

        # Per-offset boundary masks, shared by all taps in the same row/column.
        hval = {dy: jnp.where((h_idx >= -dy) & (h_idx <= H - 1 - dy), 1.0, 0.0)
                for dy in range(-ph, ph + 1)}
        wval = {dx: jnp.where((w_idx >= -dx) & (w_idx <= W - 1 - dx), 1.0, 0.0)
                for dx in range(-pw, pw + 1)}

        # ---- build the (K, R) tap-folded patch slab in VMEM (no HBM traffic) ----
        t = 0
        for dy in range(-ph, ph + 1):
            for dx in range(-pw, pw + 1):
                off = dy * W + dx                   # source pixel = p + off
                if off == 0:
                    shifted = act
                else:
                    # pltpu.roll == jnp.roll: out[p] = act[(p - shift) mod R],
                    # so shift = (-off) % R gives out[p] = act[p + off].
                    shifted = pltpu.roll(act, (-off) % R, 1)
                mask = hval[dy] * wval[dx]          # zero out-of-image / pad pixels
                patch_scr[t * cin_pad:(t + 1) * cin_pad, :] = shifted * mask
                t += 1

        # ---- one big-K MXU matmul: (Cout, K) @ (K, R), f32 accumulate ----
        conv = jnp.dot(w_ref[...], patch_scr[0:K, :],
                       preferred_element_type=jnp.float32)     # (cout, R)

        # ---- BatchNorm (training-mode batch stats) + optional ReLU ----
        # conv is exactly 0 on padded pixels (masks), so sums only see real pixels.
        mean = jnp.sum(conv, axis=1, keepdims=True) * inv_rows  # (cout, 1)
        cen = (conv - mean) * valid
        var = jnp.sum(cen * cen, axis=1, keepdims=True) * inv_rows
        gamma = gb_ref[:, 0:1]
        beta = gb_ref[:, 1:2]
        scale = gamma * jax.lax.rsqrt(var + eps)                # (cout, 1)
        shift = beta - mean * scale
        y = conv * scale + shift                                # lane broadcast FMA
        if relu:
            y = jnp.maximum(y, 0.0)
        act = y                                                 # stays in VMEM/vregs

    out_ref[...] = act.astype(out_ref.dtype)


# ------------------------------ host-side wrapper -----------------------------

def torchnet2_forward(x_nchw, params):
    """Forward pass of TorchNet2.  Input/output are NCHW like PyTorch."""
    N, Cin, H, W = x_nchw.shape
    rows = N * H * W
    rows_pad = _round_up(rows, 128)

    # --- tiny XLA-side prep: layout change + index vectors + weight folding ---
    assert params[0][0].shape[2] == Cin, "first conv Cin mismatch"
    cin0_pad = _round_up(Cin, 8)
    x_cf = jnp.transpose(x_nchw, (1, 0, 2, 3)).reshape(Cin, rows).astype(jnp.float32)
    x_cf = jnp.pad(x_cf, ((0, cin0_pad - Cin), (0, rows_pad - rows)))

    p = jnp.arange(rows_pad, dtype=jnp.int32)
    h_idx = jnp.where(p < rows, (p % (H * W)) // W, -(10 ** 6)).reshape(1, rows_pad)
    w_idx = jnp.where(p < rows, p % W, -(10 ** 6)).reshape(1, rows_pad)

    n_layers = len(params)
    layer_meta = []
    flat_inputs = [h_idx, w_idx, x_cf]
    for idx, (w_hwio, b, gamma, beta) in enumerate(params):
        KH, KW, cin, cout = w_hwio.shape
        cin_pad = _round_up(cin, 8)
        if idx > 0:
            # intermediate activations carry exactly cout_{l-1} sublane rows
            assert cin % 8 == 0, "intermediate channel counts must be multiples of 8"
        if idx != n_layers - 1:
            assert cout % 8 == 0, "intermediate channel counts must be multiples of 8"
        wp = jnp.pad(w_hwio.astype(jnp.float32),
                     ((0, 0), (0, 0), (0, cin_pad - cin), (0, 0)))
        # column (i*KW + j)*cin_pad + c  <->  weight[i, j, c, o]
        wmat = jnp.transpose(wp, (3, 0, 1, 2)).reshape(cout, KH * KW * cin_pad)
        gb = jnp.stack([gamma, beta], axis=1).astype(jnp.float32)   # (cout, 2)
        # NOTE: conv bias `b` is intentionally unused -- a bias before training-mode
        # BatchNorm is exactly cancelled by the mean subtraction (same forward output).
        flat_inputs += [wmat, gb]
        layer_meta.append((KH, KW, cin_pad, cout, idx != n_layers - 1))

    k_max = max(kh * kw * cp for (kh, kw, cp, _, _) in layer_meta)
    cout_last = layer_meta[-1][3]

    kern = functools.partial(_fused_torchnet2_kernel, layers=tuple(layer_meta),
                             H=H, W=W, rows=rows, eps=1e-5)

    flops = sum(2 * co * kh * kw * cp * rows_pad
                for (kh, kw, cp, co, _) in layer_meta)
    bytes_accessed = (sum(int(a.size) * a.dtype.itemsize for a in flat_inputs)
                      + cout_last * rows_pad * 4)
    transcendentals = sum(co for (_, _, _, co, _) in layer_meta)   # one rsqrt/channel

    out = pl.pallas_call(
        kern,
        grid=(1,),
        in_specs=[pl.BlockSpec(a.shape, lambda i: (0, 0)) for a in flat_inputs],
        out_specs=pl.BlockSpec((cout_last, rows_pad), lambda i: (0, 0)),
        out_shape=jax.ShapeDtypeStruct((cout_last, rows_pad), jnp.float32),
        scratch_shapes=[pltpu.VMEM((k_max, rows_pad), jnp.float32)],
        compiler_params=pltpu.CompilerParams(
            dimension_semantics=("arbitrary",)),
        cost_estimate=pl.CostEstimate(flops=flops,
                                      transcendentals=transcendentals,
                                      bytes_accessed=bytes_accessed),
    )(*flat_inputs)

    out = out[:, :rows].reshape(cout_last, N, H, W)
    return jnp.transpose(out, (1, 0, 2, 3))       # (C,N,H,W) -> (N,C,H,W)


# ---------------------------- parameters & demo -------------------------------

def init_params(key, inp_dim, mod_dim1, mod_dim2):
    """Deterministic parameter init mirroring the layer shapes of TorchNet2."""
    layer_defs = [(inp_dim, mod_dim1, 7),
                  (mod_dim1, mod_dim2, 5),
                  (mod_dim2, mod_dim1, 3),
                  (mod_dim1, mod_dim2, 1)]
    params = []
    for cin, cout, k in layer_defs:
        key, kw_, kb_ = jax.random.split(key, 3)
        bound = 1.0 / (cin * k * k) ** 0.5          # PyTorch-style uniform bound
        w = jax.random.uniform(kw_, (k, k, cin, cout), jnp.float32, -bound, bound)
        b = jax.random.uniform(kb_, (cout,), jnp.float32, -bound, bound)
        gamma = jnp.ones((cout,), jnp.float32)       # BatchNorm affine init
        beta = jnp.zeros((cout,), jnp.float32)
        params.append((w, b, gamma, beta))
    return params


if __name__ == "__main__":
    inp_dim, mod_dim1, mod_dim2 = 4, 8, 16
    N, H, W = 2, 16, 16

    key = jax.random.PRNGKey(0)
    key, kx = jax.random.split(key)
    x = jax.random.normal(kx, (N, inp_dim, H, W), jnp.float32)   # NCHW like PyTorch

    params = init_params(key, inp_dim, mod_dim1, mod_dim2)

    fwd = jax.jit(torchnet2_forward)
    out = jax.block_until_ready(fwd(x, params))

    assert out.shape == (N, mod_dim2, H, W), out.shape
    assert bool(jnp.all(jnp.isfinite(out)))
    print("KERNEL_OK")
</pallas_src>

<mosaic_0001>
module attributes {stable_mosaic.version = 11 : i64} {
  func.func @_fused_torchnet2_kernel(%arg0: i32, %arg1: memref<1x512xi32, #tpu.memory_space<vmem>>, %arg2: memref<1x512xi32, #tpu.memory_space<vmem>>, %arg3: memref<8x512xf32, #tpu.memory_space<vmem>>, %arg4: memref<8x392xf32, #tpu.memory_space<vmem>>, %arg5: memref<8x2xf32, #tpu.memory_space<vmem>>, %arg6: memref<16x200xf32, #tpu.memory_space<vmem>>, %arg7: memref<16x2xf32, #tpu.memory_space<vmem>>, %arg8: memref<8x144xf32, #tpu.memory_space<vmem>>, %arg9: memref<8x2xf32, #tpu.memory_space<vmem>>, %arg10: memref<16x8xf32, #tpu.memory_space<vmem>>, %arg11: memref<16x2xf32, #tpu.memory_space<vmem>>, %arg12: memref<16x512xf32, #tpu.memory_space<vmem>>, %arg13: memref<392x512xf32, #tpu.memory_space<vmem>>) attributes {dimension_semantics = [#tpu.dimension_semantics<arbitrary>], iteration_bounds = array<i64: 1>, scalar_prefetch = 0 : i64, scratch_operands = 1 : i64, tpu.core_type = #tpu.core_type<tc>, window_params = [{pipeline_mode = #tpu.pipeline_mode<synchronous>, transform_indices = @transform_0, window_bounds = array<i64: 1, 512>}, {pipeline_mode = #tpu.pipeline_mode<synchronous>, transform_indices = @transform_1, window_bounds = array<i64: 1, 512>}, {pipeline_mode = #tpu.pipeline_mode<synchronous>, transform_indices = @transform_2, window_bounds = array<i64: 8, 512>}, {pipeline_mode = #tpu.pipeline_mode<synchronous>, transform_indices = @transform_3, window_bounds = array<i64: 8, 392>}, {pipeline_mode = #tpu.pipeline_mode<synchronous>, transform_indices = @transform_4, window_bounds = array<i64: 8, 2>}, {pipeline_mode = #tpu.pipeline_mode<synchronous>, transform_indices = @transform_5, window_bounds = array<i64: 16, 200>}, {pipeline_mode = #tpu.pipeline_mode<synchronous>, transform_indices = @transform_6, window_bounds = array<i64: 16, 2>}, {pipeline_mode = #tpu.pipeline_mode<synchronous>, transform_indices = @transform_7, window_bounds = array<i64: 8, 144>}, {pipeline_mode = #tpu.pipeline_mode<synchronous>, transform_indices = @transform_8, window_bounds = array<i64: 8, 2>}, {pipeline_mode = #tpu.pipeline_mode<synchronous>, transform_indices = @transform_9, window_bounds = array<i64: 16, 8>}, {pipeline_mode = #tpu.pipeline_mode<synchronous>, transform_indices = @transform_10, window_bounds = array<i64: 16, 2>}, {pipeline_mode = #tpu.pipeline_mode<synchronous>, transform_indices = @transform_11, window_bounds = array<i64: 16, 512>}]} {
    %c0 = arith.constant 0 : index
    %c0_0 = arith.constant 0 : index
    %0 = vector.load %arg1[%c0, %c0_0] : memref<1x512xi32, #tpu.memory_space<vmem>>, vector<1x512xi32>
    %c0_1 = arith.constant 0 : index
    %c0_2 = arith.constant 0 : index
    %1 = vector.load %arg2[%c0_1, %c0_2] : memref<1x512xi32, #tpu.memory_space<vmem>>, vector<1x512xi32>
    %c0_i32 = arith.constant 0 : i32
    %2 = vector.broadcast %c0_i32 : i32 to vector<1x512xi32>
    %3 = arith.cmpi sge, %0, %2 : vector<1x512xi32>
    %c0_i32_3 = arith.constant 0 : i32
    %4 = vector.broadcast %c0_i32_3 : i32 to vector<1x512xi32>
    %5 = arith.cmpi sge, %1, %4 : vector<1x512xi32>
    %6 = arith.andi %3, %5 : vector<1x512xi1>
    %cst = arith.constant 1.000000e+00 : f32
    %cst_4 = arith.constant 0.000000e+00 : f32
    %7 = vector.broadcast %cst : f32 to vector<1x512xf32>
    %8 = vector.broadcast %cst_4 : f32 to vector<1x512xf32>
    %9 = arith.select %6, %7, %8 : vector<1x512xi1>, vector<1x512xf32>
    %c0_5 = arith.constant 0 : index
    %c0_6 = arith.constant 0 : index
    %10 = vector.load %arg3[%c0_5, %c0_6] : memref<8x512xf32, #tpu.memory_space<vmem>>, vector<8x512xf32>
    %c3_i32 = arith.constant 3 : i32
    %11 = vector.broadcast %c3_i32 : i32 to vector<1x512xi32>
    %12 = arith.cmpi sge, %0, %11 : vector<1x512xi32>
    %c18_i32 = arith.constant 18 : i32
    %13 = vector.broadcast %c18_i32 : i32 to vector<1x512xi32>
    %14 = arith.cmpi sle, %0, %13 : vector<1x512xi32>
    %15 = arith.andi %12, %14 : vector<1x512xi1>
    %cst_7 = arith.constant 1.000000e+00 : f32
    %cst_8 = arith.constant 0.000000e+00 : f32
    %16 = vector.broadcast %cst_7 : f32 to vector<1x512xf32>
    %17 = vector.broadcast %cst_8 : f32 to vector<1x512xf32>
    %18 = arith.select %15, %16, %17 : vector<1x512xi1>, vector<1x512xf32>
    %c2_i32 = arith.constant 2 : i32
    %19 = vector.broadcast %c2_i32 : i32 to vector<1x512xi32>
    %20 = arith.cmpi sge, %0, %19 : vector<1x512xi32>
    %c17_i32 = arith.constant 17 : i32
    %21 = vector.broadcast %c17_i32 : i32 to vector<1x512xi32>
    %22 = arith.cmpi sle, %0, %21 : vector<1x512xi32>
    %23 = arith.andi %20, %22 : vector<1x512xi1>
    %cst_9 = arith.constant 1.000000e+00 : f32
    %cst_10 = arith.constant 0.000000e+00 : f32
    %24 = vector.broadcast %cst_9 : f32 to vector<1x512xf32>
    %25 = vector.broadcast %cst_10 : f32 to vector<1x512xf32>
    %26 = arith.select %23, %24, %25 : vector<1x512xi1>, vector<1x512xf32>
    %c1_i32 = arith.constant 1 : i32
    %27 = vector.broadcast %c1_i32 : i32 to vector<1x512xi32>
    %28 = arith.cmpi sge, %0, %27 : vector<1x512xi32>
    %c16_i32 = arith.constant 16 : i32
    %29 = vector.broadcast %c16_i32 : i32 to vector<1x512xi32>
    %30 = arith.cmpi sle, %0, %29 : vector<1x512xi32>
    %31 = arith.andi %28, %30 : vector<1x512xi1>
    %cst_11 = arith.constant 1.000000e+00 : f32
    %cst_12 = arith.constant 0.000000e+00 : f32
    %32 = vector.broadcast %cst_11 : f32 to vector<1x512xf32>
    %33 = vector.broadcast %cst_12 : f32 to vector<1x512xf32>
    %34 = arith.select %31, %32, %33 : vector<1x512xi1>, vector<1x512xf32>
    %c0_i32_13 = arith.constant 0 : i32
    %35 = vector.broadcast %c0_i32_13 : i32 to vector<1x512xi32>
    %36 = arith.cmpi sge, %0, %35 : vector<1x512xi32>
    %c15_i32 = arith.constant 15 : i32
    %37 = vector.broadcast %c15_i32 : i32 to vector<1x512xi32>
    %38 = arith.cmpi sle, %0, %37 : vector<1x512xi32>
    %39 = arith.andi %36, %38 : vector<1x512xi1>
    %cst_14 = arith.constant 1.000000e+00 : f32
    %cst_15 = arith.constant 0.000000e+00 : f32
    %40 = vector.broadcast %cst_14 : f32 to vector<1x512xf32>
    %41 = vector.broadcast %cst_15 : f32 to vector<1x512xf32>
    %42 = arith.select %39, %40, %41 : vector<1x512xi1>, vector<1x512xf32>
    %c-1_i32 = arith.constant -1 : i32
    %43 = vector.broadcast %c-1_i32 : i32 to vector<1x512xi32>
    %44 = arith.cmpi sge, %0, %43 : vector<1x512xi32>
    %c14_i32 = arith.constant 14 : i32
    %45 = vector.broadcast %c14_i32 : i32 to vector<1x512xi32>
    %46 = arith.cmpi sle, %0, %45 : vector<1x512xi32>
    %47 = arith.andi %44, %46 : vector<1x512xi1>
    %cst_16 = arith.constant 1.000000e+00 : f32
    %cst_17 = arith.constant 0.000000e+00 : f32
    %48 = vector.broadcast %cst_16 : f32 to vector<1x512xf32>
    %49 = vector.broadcast %cst_17 : f32 to vector<1x512xf32>
    %50 = arith.select %47, %48, %49 : vector<1x512xi1>, vector<1x512xf32>
    %c-2_i32 = arith.constant -2 : i32
    %51 = vector.broadcast %c-2_i32 : i32 to vector<1x512xi32>
    %52 = arith.cmpi sge, %0, %51 : vector<1x512xi32>
    %c13_i32 = arith.constant 13 : i32
    %53 = vector.broadcast %c13_i32 : i32 to vector<1x512xi32>
    %54 = arith.cmpi sle, %0, %53 : vector<1x512xi32>
    %55 = arith.andi %52, %54 : vector<1x512xi1>
    %cst_18 = arith.constant 1.000000e+00 : f32
    %cst_19 = arith.constant 0.000000e+00 : f32
    %56 = vector.broadcast %cst_18 : f32 to vector<1x512xf32>
    %57 = vector.broadcast %cst_19 : f32 to vector<1x512xf32>
    %58 = arith.select %55, %56, %57 : vector<1x512xi1>, vector<1x512xf32>
    %c-3_i32 = arith.constant -3 : i32
    %59 = vector.broadcast %c-3_i32 : i32 to vector<1x512xi32>
    %60 = arith.cmpi sge, %0, %59 : vector<1x512xi32>
    %c12_i32 = arith.constant 12 : i32
    %61 = vector.broadcast %c12_i32 : i32 to vector<1x512xi32>
    %62 = arith.cmpi sle, %0, %61 : vector<1x512xi32>
    %63 = arith.andi %60, %62 : vector<1x512xi1>
    %cst_20 = arith.constant 1.000000e+00 : f32
    %cst_21 = arith.constant 0.000000e+00 : f32
    %64 = vector.broadcast %cst_20 : f32 to vector<1x512xf32>
    %65 = vector.broadcast %cst_21 : f32 to vector<1x512xf32>
    %66 = arith.select %63, %64, %65 : vector<1x512xi1>, vector<1x512xf32>
    %c3_i32_22 = arith.constant 3 : i32
    %67 = vector.broadcast %c3_i32_22 : i32 to vector<1x512xi32>
    %68 = arith.cmpi sge, %1, %67 : vector<1x512xi32>
    %c18_i32_23 = arith.constant 18 : i32
    %69 = vector.broadcast %c18_i32_23 : i32 to vector<1x512xi32>
    %70 = arith.cmpi sle, %1, %69 : vector<1x512xi32>
    %71 = arith.andi %68, %70 : vector<1x512xi1>
    %cst_24 = arith.constant 1.000000e+00 : f32
    %cst_25 = arith.constant 0.000000e+00 : f32
    %72 = vector.broadcast %cst_24 : f32 to vector<1x512xf32>
    %73 = vector.broadcast %cst_25 : f32 to vector<1x512xf32>
    %74 = arith.select %71, %72, %73 : vector<1x512xi1>, vector<1x512xf32>
    %c2_i32_26 = arith.constant 2 : i32
    %75 = vector.broadcast %c2_i32_26 : i32 to vector<1x512xi32>
    %76 = arith.cmpi sge, %1, %75 : vector<1x512xi32>
    %c17_i32_27 = arith.constant 17 : i32
    %77 = vector.broadcast %c17_i32_27 : i32 to vector<1x512xi32>
    %78 = arith.cmpi sle, %1, %77 : vector<1x512xi32>
    %79 = arith.andi %76, %78 : vector<1x512xi1>
    %cst_28 = arith.constant 1.000000e+00 : f32
    %cst_29 = arith.constant 0.000000e+00 : f32
    %80 = vector.broadcast %cst_28 : f32 to vector<1x512xf32>
    %81 = vector.broadcast %cst_29 : f32 to vector<1x512xf32>
    %82 = arith.select %79, %80, %81 : vector<1x512xi1>, vector<1x512xf32>
    %c1_i32_30 = arith.constant 1 : i32
    %83 = vector.broadcast %c1_i32_30 : i32 to vector<1x512xi32>
    %84 = arith.cmpi sge, %1, %83 : vector<1x512xi32>
    %c16_i32_31 = arith.constant 16 : i32
    %85 = vector.broadcast %c16_i32_31 : i32 to vector<1x512xi32>
    %86 = arith.cmpi sle, %1, %85 : vector<1x512xi32>
    %87 = arith.andi %84, %86 : vector<1x512xi1>
    %cst_32 = arith.constant 1.000000e+00 : f32
    %cst_33 = arith.constant 0.000000e+00 : f32
    %88 = vector.broadcast %cst_32 : f32 to vector<1x512xf32>
    %89 = vector.broadcast %cst_33 : f32 to vector<1x512xf32>
    %90 = arith.select %87, %88, %89 : vector<1x512xi1>, vector<1x512xf32>
    %c0_i32_34 = arith.constant 0 : i32
    %91 = vector.broadcast %c0_i32_34 : i32 to vector<1x512xi32>
    %92 = arith.cmpi sge, %1, %91 : vector<1x512xi32>
    %c15_i32_35 = arith.constant 15 : i32
    %93 = vector.broadcast %c15_i32_35 : i32 to vector<1x512xi32>
    %94 = arith.cmpi sle, %1, %93 : vector<1x512xi32>
    %95 = arith.andi %92, %94 : vector<1x512xi1>
    %cst_36 = arith.constant 1.000000e+00 : f32
    %cst_37 = arith.constant 0.000000e+00 : f32
    %96 = vector.broadcast %cst_36 : f32 to vector<1x512xf32>
    %97 = vector.broadcast %cst_37 : f32 to vector<1x512xf32>
    %98 = arith.select %95, %96, %97 : vector<1x512xi1>, vector<1x512xf32>
    %c-1_i32_38 = arith.constant -1 : i32
    %99 = vector.broadcast %c-1_i32_38 : i32 to vector<1x512xi32>
    %100 = arith.cmpi sge, %1, %99 : vector<1x512xi32>
    %c14_i32_39 = arith.constant 14 : i32
    %101 = vector.broadcast %c14_i32_39 : i32 to vector<1x512xi32>
    %102 = arith.cmpi sle, %1, %101 : vector<1x512xi32>
    %103 = arith.andi %100, %102 : vector<1x512xi1>
    %cst_40 = arith.constant 1.000000e+00 : f32
    %cst_41 = arith.constant 0.000000e+00 : f32
    %104 = vector.broadcast %cst_40 : f32 to vector<1x512xf32>
    %105 = vector.broadcast %cst_41 : f32 to vector<1x512xf32>
    %106 = arith.select %103, %104, %105 : vector<1x512xi1>, vector<1x512xf32>
    %c-2_i32_42 = arith.constant -2 : i32
    %107 = vector.broadcast %c-2_i32_42 : i32 to vector<1x512xi32>
    %108 = arith.cmpi sge, %1, %107 : vector<1x512xi32>
    %c13_i32_43 = arith.constant 13 : i32
    %109 = vector.broadcast %c13_i32_43 : i32 to vector<1x512xi32>
    %110 = arith.cmpi sle, %1, %109 : vector<1x512xi32>
    %111 = arith.andi %108, %110 : vector<1x512xi1>
    %cst_44 = arith.constant 1.000000e+00 : f32
    %cst_45 = arith.constant 0.000000e+00 : f32
    %112 = vector.broadcast %cst_44 : f32 to vector<1x512xf32>
    %113 = vector.broadcast %cst_45 : f32 to vector<1x512xf32>
    %114 = arith.select %111, %112, %113 : vector<1x512xi1>, vector<1x512xf32>
    %c-3_i32_46 = arith.constant -3 : i32
    %115 = vector.broadcast %c-3_i32_46 : i32 to vector<1x512xi32>
    %116 = arith.cmpi sge, %1, %115 : vector<1x512xi32>
    %c12_i32_47 = arith.constant 12 : i32
    %117 = vector.broadcast %c12_i32_47 : i32 to vector<1x512xi32>
    %118 = arith.cmpi sle, %1, %117 : vector<1x512xi32>
    %119 = arith.andi %116, %118 : vector<1x512xi1>
    %cst_48 = arith.constant 1.000000e+00 : f32
    %cst_49 = arith.constant 0.000000e+00 : f32
    %120 = vector.broadcast %cst_48 : f32 to vector<1x512xf32>
    %121 = vector.broadcast %cst_49 : f32 to vector<1x512xf32>
    %122 = arith.select %119, %120, %121 : vector<1x512xi1>, vector<1x512xf32>
    %c51_i32 = arith.constant 51 : i32
    %123 = tpu.dynamic_rotate %10 by %c51_i32 dim 1 : vector<8x512xf32>, i32 -> vector<8x512xf32>
    %124 = arith.mulf %18, %74 : vector<1x512xf32>
    %125 = vector.broadcast %124 : vector<1x512xf32> to vector<8x512xf32>
    %126 = arith.mulf %123, %125 : vector<8x512xf32>
    %c0_50 = arith.constant 0 : index
    %c0_51 = arith.constant 0 : index
    %127 = vector.load %arg13[%c0_50, %c0_51] : memref<392x512xf32, #tpu.memory_space<vmem>>, vector<8x512xf32>
    tpu.vector_store %arg13[%c0_50, %c0_51], %126 {strides = array<i32>} : memref<392x512xf32, #tpu.memory_space<vmem>>, vector<8x512xf32>,
    %c50_i32 = arith.constant 50 : i32
    %128 = tpu.dynamic_rotate %10 by %c50_i32 dim 1 : vector<8x512xf32>, i32 -> vector<8x512xf32>
    %129 = arith.mulf %18, %82 : vector<1x512xf32>
    %130 = vector.broadcast %129 : vector<1x512xf32> to vector<8x512xf32>
    %131 = arith.mulf %128, %130 : vector<8x512xf32>
    %c8 = arith.constant 8 : index
    %c0_52 = arith.constant 0 : index
    %132 = vector.load %arg13[%c8, %c0_52] : memref<392x512xf32, #tpu.memory_space<vmem>>, vector<8x512xf32>
    tpu.vector_store %arg13[%c8, %c0_52], %131 {strides = array<i32>} : memref<392x512xf32, #tpu.memory_space<vmem>>, vector<8x512xf32>,
    %c49_i32 = arith.constant 49 : i32
    %133 = tpu.dynamic_rotate %10 by %c49_i32 dim 1 : vector<8x512xf32>, i32 -> vector<8x512xf32>
    %134 = arith.mulf %18, %90 : vector<1x512xf32>
    %135 = vector.broadcast %134 : vector<1x512xf32> to vector<8x512xf32>
    %136 = arith.mulf %133, %135 : vector<8x512xf32>
    %c16 = arith.constant 16 : index
    %c0_53 = arith.constant 0 : index
    %137 = vector.load %arg13[%c16, %c0_53] : memref<392x512xf32, #tpu.memory_space<vmem>>, vector<8x512xf32>
    tpu.vector_store %arg13[%c16, %c0_53], %136 {strides = array<i32>} : memref<392x512xf32, #tpu.memory_space<vmem>>, vector<8x512xf32>,
    %c48_i32 = arith.constant 48 : i32
    %138 = tpu.dynamic_rotate %10 by %c48_i32 dim 1 : vector<8x512xf32>, i32 -> vector<8x512xf32>
    %139 = arith.mulf %18, %98 : vector<1x512xf32>
    %140 = vector.broadcast %139 : vector<1x512xf32> to vector<8x512xf32>
    %141 = arith.mulf %138, %140 : vector<8x512xf32>
    %c24 = arith.constant 24 : index
    %c0_54 = arith.constant 0 : index
    %142 = vector.load %arg13[%c24, %c0_54] : memref<392x512xf32, #tpu.memory_space<vmem>>, vector<8x512xf32>
    tpu.vector_store %arg13[%c24, %c0_54], %141 {strides = array<i32>} : memref<392x512xf32, #tpu.memory_space<vmem>>, vector<8x512xf32>,
    %c47_i32 = arith.constant 47 : i32
    %143 = tpu.dynamic_rotate %10 by %c47_i32 dim 1 : vector<8x512xf32>, i32 -> vector<8x512xf32>
    %144 = arith.mulf %18, %106 : vector<1x512xf32>
    %145 = vector.broadcast %144 : vector<1x512xf32> to vector<8x512xf32>
    %146 = arith.mulf %143, %145 : vector<8x512xf32>
    %c32 = arith.constant 32 : index
    %c0_55 = arith.constant 0 : index
    %147 = vector.load %arg13[%c32, %c0_55] : memref<392x512xf32, #tpu.memory_space<vmem>>, vector<8x512xf32>
    tpu.vector_store %arg13[%c32, %c0_55], %146 {strides = array<i32>} : memref<392x512xf32, #tpu.memory_space<vmem>>, vector<8x512xf32>,
    %c46_i32 = arith.constant 46 : i32
    %148 = tpu.dynamic_rotate %10 by %c46_i32 dim 1 : vector<8x512xf32>, i32 -> vector<8x512xf32>
    %149 = arith.mulf %18, %114 : vector<1x512xf32>
    %150 = vector.broadcast %149 : vector<1x512xf32> to vector<8x512xf32>
    %151 = arith.mulf %148, %150 : vector<8x512xf32>
    %c40 = arith.constant 40 : index
    %c0_56 = arith.constant 0 : index
    %152 = vector.load %arg13[%c40, %c0_56] : memref<392x512xf32, #tpu.memory_space<vmem>>, vector<8x512xf32>
    tpu.vector_store %arg13[%c40, %c0_56], %151 {strides = array<i32>} : memref<392x512xf32, #tpu.memory_space<vmem>>, vector<8x512xf32>,
    %c45_i32 = arith.constant 45 : i32
    %153 = tpu.dynamic_rotate %10 by %c45_i32 dim 1 : vector<8x512xf32>, i32 -> vector<8x512xf32>
    %154 = arith.mulf %18, %122 : vector<1x512xf32>
    %155 = vector.broadcast %154 : vector<1x512xf32> to vector<8x512xf32>
    %156 = arith.mulf %153, %155 : vector<8x512xf32>
    %c48 = arith.constant 48 : index
    %c0_57 = arith.constant 0 : index
    %157 = vector.load %arg13[%c48, %c0_57] : memref<392x512xf32, #tpu.memory_space<vmem>>, vector<8x512xf32>
    tpu.vector_store %arg13[%c48, %c0_57], %156 {strides = array<i32>} : memref<392x512xf32, #tpu.memory_space<vmem>>, vector<8x512xf32>,
    %c35_i32 = arith.constant 35 : i32
    %158 = tpu.dynamic_rotate %10 by %c35_i32 dim 1 : vector<8x512xf32>, i32 -> vector<8x512xf32>
    %159 = arith.mulf %26, %74 : vector<1x512xf32>
    %160 = vector.broadcast %159 : vector<1x512xf32> to vector<8x512xf32>
    %161 = arith.mulf %158, %160 : vector<8x512xf32>
    %c56 = arith.constant 56 : index
    %c0_58 = arith.constant 0 : index
    %162 = vector.load %arg13[%c56, %c0_58] : memref<392x512xf32, #tpu.memory_space<vmem>>, vector<8x512xf32>
    tpu.vector_store %arg13[%c56, %c0_58], %161 {strides = array<i32>} : memref<392x512xf32, #tpu.memory_space<vmem>>, vector<8x512xf32>,
    %c34_i32 = arith.constant 34 : i32
    %163 = tpu.dynamic_rotate %10 by %c34_i32 dim 1 : vector<8x512xf32>, i32 -> vector<8x512xf32>
    %164 = arith.mulf %26, %82 : vector<1x512xf32>
    %165 = vector.broadcast %164 : vector<1x512xf32> to vector<8x512xf32>
    %166 = arith.mulf %163, %165 : vector<8x512xf32>
    %c64 = arith.constant 64 : index
    %c0_59 = arith.constant 0 : index
    %167 = vector.load %arg13[%c64, %c0_59] : memref<392x512xf32, #tpu.memory_space<vmem>>, vector<8x512xf32>
    tpu.vector_store %arg13[%c64, %c0_59], %166 {strides = array<i32>} : memref<392x512xf32, #tpu.memory_space<vmem>>, vector<8x512xf32>,
    %c33_i32 = arith.constant 33 : i32
    %168 = tpu.dynamic_rotate %10 by %c33_i32 dim 1 : vector<8x512xf32>, i32 -> vector<8x512xf32>
    %169 = arith.mulf %26, %90 : vector<1x512xf32>
    %170 = vector.broadcast %169 : vector<1x512xf32> to vector<8x512xf32>
    %171 = arith.mulf %168, %170 : vector<8x512xf32>
    %c72 = arith.constant 72 : index
    %c0_60 = arith.constant 0 : index
    %172 = vector.load %arg13[%c72, %c0_60] : memref<392x512xf32, #tpu.memory_space<vmem>>, vector<8x512xf32>
    tpu.vector_store %arg13[%c72, %c0_60], %171 {strides = array<i32>} : memref<392x512xf32, #tpu.memory_space<vmem>>, vector<8x512xf32>,
    %c32_i32 = arith.constant 32 : i32
    %173 = tpu.dynamic_rotate %10 by %c32_i32 dim 1 : vector<8x512xf32>, i32 -> vector<8x512xf32>
    %174 = arith.mulf %26, %98 : vector<1x512xf32>
    %175 = vector.broadcast %174 : vector<1x512xf32> to vector<8x512xf32>
    %176 = arith.mulf %173, %175 : vector<8x512xf32>
    %c80 = arith.constant 80 : index
    %c0_61 = arith.constant 0 : index
    %177 = vector.load %arg13[%c80, %c0_61] : memref<392x512xf32, #tpu.memory_space<vmem>>, vector<8x512xf32>
    tpu.vector_store %arg13[%c80, %c0_61], %176 {strides = array<i32>} : memref<392x512xf32, #tpu.memory_space<vmem>>, vector<8x512xf32>,
    %c31_i32 = arith.constant 31 : i32
    %178 = tpu.dynamic_rotate %10 by %c31_i32 dim 1 : vector<8x512xf32>, i32 -> vector<8x512xf32>
    %179 = arith.mulf %26, %106 : vector<1x512xf32>
    %180 = vector.broadcast %179 : vector<1x512xf32> to vector<8x512xf32>
    %181 = arith.mulf %178, %180 : vector<8x512xf32>
    %c88 = arith.constant 88 : index
    %c0_62 = arith.constant 0 : index
    %182 = vector.load %arg13[%c88, %c0_62] : memref<392x512xf32, #tpu.memory_space<vmem>>, vector<8x512xf32>
    tpu.vector_store %arg13[%c88, %c0_62], %181 {strides = array<i32>} : memref<392x512xf32, #tpu.memory_space<vmem>>, vector<8x512xf32>,
    %c30_i32 = arith.constant 30 : i32
    %183 = tpu.dynamic_rotate %10 by %c30_i32 dim 1 : vector<8x512xf32>, i32 -> vector<8x512xf32>
    %184 = arith.mulf %26, %114 : vector<1x512xf32>
    %185 = vector.broadcast %184 : vector<1x512xf32> to vector<8x512xf32>
    %186 = arith.mulf %183, %185 : vector<8x512xf32>
    %c96 = arith.constant 96 : index
    %c0_63 = arith.constant 0 : index
    %187 = vector.load %arg13[%c96, %c0_63] : memref<392x512xf32, #tpu.memory_space<vmem>>, vector<8x512xf32>
    tpu.vector_store %arg13[%c96, %c0_63], %186 {strides = array<i32>} : memref<392x512xf32, #tpu.memory_space<vmem>>, vector<8x512xf32>,
    %c29_i32 = arith.constant 29 : i32
    %188 = tpu.dynamic_rotate %10 by %c29_i32 dim 1 : vector<8x512xf32>, i32 -> vector<8x512xf32>
    %189 = arith.mulf %26, %122 : vector<1x512xf32>
    %190 = vector.broadcast %189 : vector<1x512xf32> to vector<8x512xf32>
    %191 = arith.mulf %188, %190 : vector<8x512xf32>
    %c104 = arith.constant 104 : index
    %c0_64 = arith.constant 0 : index
    %192 = vector.load %arg13[%c104, %c0_64] : memref<392x512xf32, #tpu.memory_space<vmem>>, vector<8x512xf32>
    tpu.vector_store %arg13[%c104, %c0_64], %191 {strides = array<i32>} : memref<392x512xf32, #tpu.memory_space<vmem>>, vector<8x512xf32>,
    %c19_i32 = arith.constant 19 : i32
    %193 = tpu.dynamic_rotate %10 by %c19_i32 dim 1 : vector<8x512xf32>, i32 -> vector<8x512xf32>
    %194 = arith.mulf %34, %74 : vector<1x512xf32>
    %195 = vector.broadcast %194 : vector<1x512xf32> to vector<8x512xf32>
    %196 = arith.mulf %193, %195 : vector<8x512xf32>
    %c112 = arith.constant 112 : index
    %c0_65 = arith.constant 0 : index
    %197 = vector.load %arg13[%c112, %c0_65] : memref<392x512xf32, #tpu.memory_space<vmem>>, vector<8x512xf32>
    tpu.vector_store %arg13[%c112, %c0_65], %196 {strides = array<i32>} : memref<392x512xf32, #tpu.memory_space<vmem>>, vector<8x512xf32>,
    %c18_i32_66 = arith.constant 18 : i32
    %198 = tpu.dynamic_rotate %10 by %c18_i32_66 dim 1 : vector<8x512xf32>, i32 -> vector<8x512xf32>
    %199 = arith.mulf %34, %82 : vector<1x512xf32>
    %200 = vector.broadcast %199 : vector<1x512xf32> to vector<8x512xf32>
    %201 = arith.mulf %198, %200 : vector<8x512xf32>
    %c120 = arith.constant 120 : index
    %c0_67 = arith.constant 0 : index
    %202 = vector.load %arg13[%c120, %c0_67] : memref<392x512xf32, #tpu.memory_space<vmem>>, vector<8x512xf32>
    tpu.vector_store %arg13[%c120, %c0_67], %201 {strides = array<i32>} : memref<392x512xf32, #tpu.memory_space<vmem>>, vector<8x512xf32>,
    %c17_i32_68 = arith.constant 17 : i32
    %203 = tpu.dynamic_rotate %10 by %c17_i32_68 dim 1 : vector<8x512xf32>, i32 -> vector<8x512xf32>
    %204 = arith.mulf %34, %90 : vector<1x512xf32>
    %205 = vector.broadcast %204 : vector<1x512xf32> to vector<8x512xf32>
    %206 = arith.mulf %203, %205 : vector<8x512xf32>
    %c128 = arith.constant 128 : index
    %c0_69 = arith.constant 0 : index
    %207 = vector.load %arg13[%c128, %c0_69] : memref<392x512xf32, #tpu.memory_space<vmem>>, vector<8x512xf32>
    tpu.vector_store %arg13[%c128, %c0_69], %206 {strides = array<i32>} : memref<392x512xf32, #tpu.memory_space<vmem>>, vector<8x512xf32>,
    %c16_i32_70 = arith.constant 16 : i32
    %208 = tpu.dynamic_rotate %10 by %c16_i32_70 dim 1 : vector<8x512xf32>, i32 -> vector<8x512xf32>
    %209 = arith.mulf %34, %98 : vector<1x512xf32>
    %210 = vector.broadcast %209 : vector<1x512xf32> to vector<8x512xf32>
    %211 = arith.mulf %208, %210 : vector<8x512xf32>
    %c136 = arith.constant 136 : index
    %c0_71 = arith.constant 0 : index
    %212 = vector.load %arg13[%c136, %c0_71] : memref<392x512xf32, #tpu.memory_space<vmem>>, vector<8x512xf32>
    tpu.vector_store %arg13[%c136, %c0_71], %211 {strides = array<i32>} : memref<392x512xf32, #tpu.memory_space<vmem>>, vector<8x512xf32>,
    %c15_i32_72 = arith.constant 15 : i32
    %213 = tpu.dynamic_rotate %10 by %c15_i32_72 dim 1 : vector<8x512xf32>, i32 -> vector<8x512xf32>
    %214 = arith.mulf %34, %106 : vector<1x512xf32>
    %215 = vector.broadcast %214 : vector<1x512xf32> to vector<8x512xf32>
    %216 = arith.mulf %213, %215 : vector<8x512xf32>
    %c144 = arith.constant 144 : index
    %c0_73 = arith.constant 0 : index
    %217 = vector.load %arg13[%c144, %c0_73] : memref<392x512xf32, #tpu.memory_space<vmem>>, vector<8x512xf32>
    tpu.vector_store %arg13[%c144, %c0_73], %216 {strides = array<i32>} : memref<392x512xf32, #tpu.memory_space<vmem>>, vector<8x512xf32>,
    %c14_i32_74 = arith.constant 14 : i32
    %218 = tpu.dynamic_rotate %10 by %c14_i32_74 dim 1 : vector<8x512xf32>, i32 -> vector<8x512xf32>
    %219 = arith.mulf %34, %114 : vector<1x512xf32>
    %220 = vector.broadcast %219 : vector<1x512xf32> to vector<8x512xf32>
    %221 = arith.mulf %218, %220 : vector<8x512xf32>
    %c152 = arith.constant 152 : index
    %c0_75 = arith.constant 0 : index
    %222 = vector.load %arg13[%c152, %c0_75] : memref<392x512xf32, #tpu.memory_space<vmem>>, vector<8x512xf32>
    tpu.vector_store %arg13[%c152, %c0_75], %221 {strides = array<i32>} : memref<392x512xf32, #tpu.memory_space<vmem>>, vector<8x512xf32>,
    %c13_i32_76 = arith.constant 13 : i32
    %223 = tpu.dynamic_rotate %10 by %c13_i32_76 dim 1 : vector<8x512xf32>, i32 -> vector<8x512xf32>
    %224 = arith.mulf %34, %122 : vector<1x512xf32>
    %225 = vector.broadcast %224 : vector<1x512xf32> to vector<8x512xf32>
    %226 = arith.mulf %223, %225 : vector<8x512xf32>
    %c160 = arith.constant 160 : index
    %c0_77 = arith.constant 0 : index
    %227 = vector.load %arg13[%c160, %c0_77] : memref<392x512xf32, #tpu.memory_space<vmem>>, vector<8x512xf32>
    tpu.vector_store %arg13[%c160, %c0_77], %226 {strides = array<i32>} : memref<392x512xf32, #tpu.memory_space<vmem>>, vector<8x512xf32>,
    %c3_i32_78 = arith.constant 3 : i32
    %228 = tpu.dynamic_rotate %10 by %c3_i32_78 dim 1 : vector<8x512xf32>, i32 -> vector<8x512xf32>
    %229 = arith.mulf %42, %74 : vector<1x512xf32>
    %230 = vector.broadcast %229 : vector<1x512xf32> to vector<8x512xf32>
    %231 = arith.mulf %228, %230 : vector<8x512xf32>
    %c168 = arith.constant 168 : index
    %c0_79 = arith.constant 0 : index
    %232 = vector.load %arg13[%c168, %c0_79] : memref<392x512xf32, #tpu.memory_space<vmem>>, vector<8x512xf32>
    tpu.vector_store %arg13[%c168, %c0_79], %231 {strides = array<i32>} : memref<392x512xf32, #tpu.memory_space<vmem>>, vector<8x512xf32>,
    %c2_i32_80 = arith.constant 2 : i32
    %233 = tpu.dynamic_rotate %10 by %c2_i32_80 dim 1 : vector<8x512xf32>, i32 -> vector<8x512xf32>
    %234 = arith.mulf %42, %82 : vector<1x512xf32>
    %235 = vector.broadcast %234 : vector<1x512xf32> to vector<8x512xf32>
    %236 = arith.mulf %233, %235 : vector<8x512xf32>
    %c176 = arith.constant 176 : index
    %c0_81 = arith.constant 0 : index
    %237 = vector.load %arg13[%c176, %c0_81] : memref<392x512xf32, #tpu.memory_space<vmem>>, vector<8x512xf32>
    tpu.vector_store %arg13[%c176, %c0_81], %236 {strides = array<i32>} : memref<392x512xf32, #tpu.memory_space<vmem>>, vector<8x512xf32>,
    %c1_i32_82 = arith.constant 1 : i32
    %238 = tpu.dynamic_rotate %10 by %c1_i32_82 dim 1 : vector<8x512xf32>, i32 -> vector<8x512xf32>
    %239 = arith.mulf %42, %90 : vector<1x512xf32>
    %240 = vector.broadcast %239 : vector<1x512xf32> to vector<8x512xf32>
    %241 = arith.mulf %238, %240 : vector<8x512xf32>
    %c184 = arith.constant 184 : index
    %c0_83 = arith.constant 0 : index
    %242 = vector.load %arg13[%c184, %c0_83] : memref<392x512xf32, #tpu.memory_space<vmem>>, vector<8x512xf32>
    tpu.vector_store %arg13[%c184, %c0_83], %241 {strides = array<i32>} : memref<392x512xf32, #tpu.memory_space<vmem>>, vector<8x512xf32>,
    %243 = arith.mulf %42, %98 : vector<1x512xf32>
    %244 = vector.broadcast %243 : vector<1x512xf32> to vector<8x512xf32>
    %245 = arith.mulf %10, %244 : vector<8x512xf32>
    %c192 = arith.constant 192 : index
    %c0_84 = arith.constant 0 : index
    %246 = vector.load %arg13[%c192, %c0_84] : memref<392x512xf32, #tpu.memory_space<vmem>>, vector<8x512xf32>
    tpu.vector_store %arg13[%c192, %c0_84], %245 {strides = array<i32>} : memref<392x512xf32, #tpu.memory_space<vmem>>, vector<8x512xf32>,
    %c511_i32 = arith.constant 511 : i32
    %247 = tpu.dynamic_rotate %10 by %c511_i32 dim 1 : vector<8x512xf32>, i32 -> vector<8x512xf32>
    %248 = arith.mulf %42, %106 : vector<1x512xf32>
    %249 = vector.broadcast %248 : vector<1x512xf32> to vector<8x512xf32>
    %250 = arith.mulf %247, %249 : vector<8x512xf32>
    %c200 = arith.constant 200 : index
    %c0_85 = arith.constant 0 : index
    %251 = vector.load %arg13[%c200, %c0_85] : memref<392x512xf32, #tpu.memory_space<vmem>>, vector<8x512xf32>
    tpu.vector_store %arg13[%c200, %c0_85], %250 {strides = array<i32>} : memref<392x512xf32, #tpu.memory_space<vmem>>, vector<8x512xf32>,
    %c510_i32 = arith.constant 510 : i32
    %252 = tpu.dynamic_rotate %10 by %c510_i32 dim 1 : vector<8x512xf32>, i32 -> vector<8x512xf32>
    %253 = arith.mulf %42, %114 : vector<1x512xf32>
    %254 = vector.broadcast %253 : vector<1x512xf32> to vector<8x512xf32>
    %255 = arith.mulf %252, %254 : vector<8x512xf32>
    %c208 = arith.constant 208 : index
    %c0_86 = arith.constant 0 : index
    %256 = vector.load %arg13[%c208, %c0_86] : memref<392x512xf32, #tpu.memory_space<vmem>>, vector<8x512xf32>
    tpu.vector_store %arg13[%c208, %c0_86], %255 {strides = array<i32>} : memref<392x512xf32, #tpu.memory_space<vmem>>, vector<8x512xf32>,
    %c509_i32 = arith.constant 509 : i32
    %257 = tpu.dynamic_rotate %10 by %c509_i32 dim 1 : vector<8x512xf32>, i32 -> vector<8x512xf32>
    %258 = arith.mulf %42, %122 : vector<1x512xf32>
    %259 = vector.broadcast %258 : vector<1x512xf32> to vector<8x512xf32>
    %260 = arith.mulf %257, %259 : vector<8x512xf32>
    %c216 = arith.constant 216 : index
    %c0_87 = arith.constant 0 : index
    %261 = vector.load %arg13[%c216, %c0_87] : memref<392x512xf32, #tpu.memory_space<vmem>>, vector<8x512xf32>
    tpu.vector_store %arg13[%c216, %c0_87], %260 {strides = array<i32>} : memref<392x512xf32, #tpu.memory_space<vmem>>, vector<8x512xf32>,
    %c499_i32 = arith.constant 499 : i32
    %262 = tpu.dynamic_rotate %10 by %c499_i32 dim 1 : vector<8x512xf32>, i32 -> vector<8x512xf32>
    %263 = arith.mulf %50, %74 : vector<1x512xf32>
    %264 = vector.broadcast %263 : vector<1x512xf32> to vector<8x512xf32>
    %265 = arith.mulf %262, %264 : vector<8x512xf32>
    %c224 = arith.constant 224 : index
    %c0_88 = arith.constant 0 : index
    %266 = vector.load %arg13[%c224, %c0_88] : memref<392x512xf32, #tpu.memory_space<vmem>>, vector<8x512xf32>
    tpu.vector_store %arg13[%c224, %c0_88], %265 {strides = array<i32>} : memref<392x512xf32, #tpu.memory_space<vmem>>, vector<8x512xf32>,
    %c498_i32 = arith.constant 498 : i32
    %267 = tpu.dynamic_rotate %10 by %c498_i32 dim 1 : vector<8x512xf32>, i32 -> vector<8x512xf32>
    %268 = arith.mulf %50, %82 : vector<1x512xf32>
    %269 = vector.broadcast %268 : vector<1x512xf32> to vector<8x512xf32>
    %270 = arith.mulf %267, %269 : vector<8x512xf32>
    %c232 = arith.constant 232 : index
    %c0_89 = arith.constant 0 : index
    %271 = vector.load %arg13[%c232, %c0_89] : memref<392x512xf32, #tpu.memory_space<vmem>>, vector<8x512xf32>
    tpu.vector_store %arg13[%c232, %c0_89], %270 {strides = array<i32>} : memref<392x512xf32, #tpu.memory_space<vmem>>, vector<8x512xf32>,
    %c497_i32 = arith.constant 497 : i32
    %272 = tpu.dynamic_rotate %10 by %c497_i32 dim 1 : vector<8x512xf32>, i32 -> vector<8x512xf32>
    %273 = arith.mulf %50, %90 : vector<1x512xf32>
    %274 = vector.broadcast %273 : vector<1x512xf32> to vector<8x512xf32>
    %275 = arith.mulf %272, %274 : vector<8x512xf32>
    %c240 = arith.constant 240 : index
    %c0_90 = arith.constant 0 : index
    %276 = vector.load %arg13[%c240, %c0_90] : memref<392x512xf32, #tpu.memory_space<vmem>>, vector<8x512xf32>
    tpu.vector_store %arg13[%c240, %c0_90], %275 {strides = array<i32>} : memref<392x512xf32, #tpu.memory_space<vmem>>, vector<8x512xf32>,
    %c496_i32 = arith.constant 496 : i32
    %277 = tpu.dynamic_rotate %10 by %c496_i32 dim 1 : vector<8x512xf32>, i32 -> vector<8x512xf32>
    %278 = arith.mulf %50, %98 : vector<1x512xf32>
    %279 = vector.broadcast %278 : vector<1x512xf32> to vector<8x512xf32>
    %280 = arith.mulf %277, %279 : vector<8x512xf32>
    %c248 = arith.constant 248 : index
    %c0_91 = arith.constant 0 : index
    %281 = vector.load %arg13[%c248, %c0_91] : memref<392x512xf32, #tpu.memory_space<vmem>>, vector<8x512xf32>
    tpu.vector_store %arg13[%c248, %c0_91], %280 {strides = array<i32>} : memref<392x512xf32, #tpu.memory_space<vmem>>, vector<8x512xf32>,
    %c495_i32 = arith.constant 495 : i32
    %282 = tpu.dynamic_rotate %10 by %c495_i32 dim 1 : vector<8x512xf32>, i32 -> vector<8x512xf32>
    %283 = arith.mulf %50, %106 : vector<1x512xf32>
    %284 = vector.broadcast %283 : vector<1x512xf32> to vector<8x512xf32>
    %285 = arith.mulf %282, %284 : vector<8x512xf32>
    %c256 = arith.constant 256 : index
    %c0_92 = arith.constant 0 : index
    %286 = vector.load %arg13[%c256, %c0_92] : memref<392x512xf32, #tpu.memory_space<vmem>>, vector<8x512xf32>
    tpu.vector_store %arg13[%c256, %c0_92], %285 {strides = array<i32>} : memref<392x512xf32, #tpu.memory_space<vmem>>, vector<8x512xf32>,
    %c494_i32 = arith.constant 494 : i32
    %287 = tpu.dynamic_rotate %10 by %c494_i32 dim 1 : vector<8x512xf32>, i32 -> vector<8x512xf32>
    %288 = arith.mulf %50, %114 : vector<1x512xf32>
    %289 = vector.broadcast %288 : vector<1x512xf32> to vector<8x512xf32>
    %290 = arith.mulf %287, %289 : vector<8x512xf32>
    %c264 = arith.constant 264 : index
    %c0_93 = arith.constant 0 : index
    %291 = vector.load %arg13[%c264, %c0_93] : memref<392x512xf32, #tpu.memory_space<vmem>>, vector<8x512xf32>
    tpu.vector_store %arg13[%c264, %c0_93], %290 {strides = array<i32>} : memref<392x512xf32, #tpu.memory_space<vmem>>, vector<8x512xf32>,
    %c493_i32 = arith.constant 493 : i32
    %292 = tpu.dynamic_rotate %10 by %c493_i32 dim 1 : vector<8x512xf32>, i32 -> vector<8x512xf32>
    %293 = arith.mulf %50, %122 : vector<1x512xf32>
    %294 = vector.broadcast %293 : vector<1x512xf32> to vector<8x512xf32>
    %295 = arith.mulf %292, %294 : vector<8x512xf32>
    %c272 = arith.constant 272 : index
    %c0_94 = arith.constant 0 : index
    %296 = vector.load %arg13[%c272, %c0_94] : memref<392x512xf32, #tpu.memory_space<vmem>>, vector<8x512xf32>
    tpu.vector_store %arg13[%c272, %c0_94], %295 {strides = array<i32>} : memref<392x512xf32, #tpu.memory_space<vmem>>, vector<8x512xf32>,
    %c483_i32 = arith.constant 483 : i32
    %297 = tpu.dynamic_rotate %10 by %c483_i32 dim 1 : vector<8x512xf32>, i32 -> vector<8x512xf32>
    %298 = arith.mulf %58, %74 : vector<1x512xf32>
    %299 = vector.broadcast %298 : vector<1x512xf32> to vector<8x512xf32>
    %300 = arith.mulf %297, %299 : vector<8x512xf32>
    %c280 = arith.constant 280 : index
    %c0_95 = arith.constant 0 : index
    %301 = vector.load %arg13[%c280, %c0_95] : memref<392x512xf32, #tpu.memory_space<vmem>>, vector<8x512xf32>
    tpu.vector_store %arg13[%c280, %c0_95], %300 {strides = array<i32>} : memref<392x512xf32, #tpu.memory_space<vmem>>, vector<8x512xf32>,
    %c482_i32 = arith.constant 482 : i32
    %302 = tpu.dynamic_rotate %10 by %c482_i32 dim 1 : vector<8x512xf32>, i32 -> vector<8x512xf32>
    %303 = arith.mulf %58, %82 : vector<1x512xf32>
    %304 = vector.broadcast %303 : vector<1x512xf32> to vector<8x512xf32>
    %305 = arith.mulf %302, %304 : vector<8x512xf32>
    %c288 = arith.constant 288 : index
    %c0_96 = arith.constant 0 : index
    %306 = vector.load %arg13[%c288, %c0_96] : memref<392x512xf32, #tpu.memory_space<vmem>>, vector<8x512xf32>
    tpu.vector_store %arg13[%c288, %c0_96], %305 {strides = array<i32>} : memref<392x512xf32, #tpu.memory_space<vmem>>, vector<8x512xf32>,
    %c481_i32 = arith.constant 481 : i32
    %307 = tpu.dynamic_rotate %10 by %c481_i32 dim 1 : vector<8x512xf32>, i32 -> vector<8x512xf32>
    %308 = arith.mulf %58, %90 : vector<1x512xf32>
    %309 = vector.broadcast %308 : vector<1x512xf32> to vector<8x512xf32>
    %310 = arith.mulf %307, %309 : vector<8x512xf32>
    %c296 = arith.constant 296 : index
    %c0_97 = arith.constant 0 : index
    %311 = vector.load %arg13[%c296, %c0_97] : memref<392x512xf32, #tpu.memory_space<vmem>>, vector<8x512xf32>
    tpu.vector_store %arg13[%c296, %c0_97], %310 {strides = array<i32>} : memref<392x512xf32, #tpu.memory_space<vmem>>, vector<8x512xf32>,
    %c480_i32 = arith.constant 480 : i32
    %312 = tpu.dynamic_rotate %10 by %c480_i32 dim 1 : vector<8x512xf32>, i32 -> vector<8x512xf32>
    %313 = arith.mulf %58, %98 : vector<1x512xf32>
    %314 = vector.broadcast %313 : vector<1x512xf32> to vector<8x512xf32>
    %315 = arith.mulf %312, %314 : vector<8x512xf32>
    %c304 = arith.constant 304 : index
    %c0_98 = arith.constant 0 : index
    %316 = vector.load %arg13[%c304, %c0_98] : memref<392x512xf32, #tpu.memory_space<vmem>>, vector<8x512xf32>
    tpu.vector_store %arg13[%c304, %c0_98], %315 {strides = array<i32>} : memref<392x512xf32, #tpu.memory_space<vmem>>, vector<8x512xf32>,
    %c479_i32 = arith.constant 479 : i32
    %317 = tpu.dynamic_rotate %10 by %c479_i32 dim 1 : vector<8x512xf32>, i32 -> vector<8x512xf32>
    %318 = arith.mulf %58, %106 : vector<1x512xf32>
    %319 = vector.broadcast %318 : vector<1x512xf32> to vector<8x512xf32>
    %320 = arith.mulf %317, %319 : vector<8x512xf32>
    %c312 = arith.constant 312 : index
    %c0_99 = arith.constant 0 : index
    %321 = vector.load %arg13[%c312, %c0_99] : memref<392x512xf32, #tpu.memory_space<vmem>>, vector<8x512xf32>
    tpu.vector_store %arg13[%c312, %c0_99], %320 {strides = array<i32>} : memref<392x512xf32, #tpu.memory_space<vmem>>, vector<8x512xf32>,
    %c478_i32 = arith.constant 478 : i32
    %322 = tpu.dynamic_rotate %10 by %c478_i32 dim 1 : vector<8x512xf32>, i32 -> vector<8x512xf32>
    %323 = arith.mulf %58, %114 : vector<1x512xf32>
    %324 = vector.broadcast %323 : vector<1x512xf32> to vector<8x512xf32>
    %325 = arith.mulf %322, %324 : vector<8x512xf32>
    %c320 = arith.constant 320 : index
    %c0_100 = arith.constant 0 : index
    %326 = vector.load %arg13[%c320, %c0_100] : memref<392x512xf32, #tpu.memory_space<vmem>>, vector<8x512xf32>
    tpu.vector_store %arg13[%c320, %c0_100], %325 {strides = array<i32>} : memref<392x512xf32, #tpu.memory_space<vmem>>, vector<8x512xf32>,
    %c477_i32 = arith.constant 477 : i32
    %327 = tpu.dynamic_rotate %10 by %c477_i32 dim 1 : vector<8x512xf32>, i32 -> vector<8x512xf32>
    %328 = arith.mulf %58, %122 : vector<1x512xf32>
    %329 = vector.broadcast %328 : vector<1x512xf32> to vector<8x512xf32>
    %330 = arith.mulf %327, %329 : vector<8x512xf32>
    %c328 = arith.constant 328 : index
    %c0_101 = arith.constant 0 : index
    %331 = vector.load %arg13[%c328, %c0_101] : memref<392x512xf32, #tpu.memory_space<vmem>>, vector<8x512xf32>
    tpu.vector_store %arg13[%c328, %c0_101], %330 {strides = array<i32>} : memref<392x512xf32, #tpu.memory_space<vmem>>, vector<8x512xf32>,
    %c467_i32 = arith.constant 467 : i32
    %332 = tpu.dynamic_rotate %10 by %c467_i32 dim 1 : vector<8x512xf32>, i32 -> vector<8x512xf32>
    %333 = arith.mulf %66, %74 : vector<1x512xf32>
    %334 = vector.broadcast %333 : vector<1x512xf32> to vector<8x512xf32>
    %335 = arith.mulf %332, %334 : vector<8x512xf32>
    %c336 = arith.constant 336 : index
    %c0_102 = arith.constant 0 : index
    %336 = vector.load %arg13[%c336, %c0_102] : memref<392x512xf32, #tpu.memory_space<vmem>>, vector<8x512xf32>
    tpu.vector_store %arg13[%c336, %c0_102], %335 {strides = array<i32>} : memref<392x512xf32, #tpu.memory_space<vmem>>, vector<8x512xf32>,
    %c466_i32 = arith.constant 466 : i32
    %337 = tpu.dynamic_rotate %10 by %c466_i32 dim 1 : vector<8x512xf32>, i32 -> vector<8x512xf32>
    %338 = arith.mulf %66, %82 : vector<1x512xf32>
    %339 = vector.broadcast %338 : vector<1x512xf32> to vector<8x512xf32>
    %340 = arith.mulf %337, %339 : vector<8x512xf32>
    %c344 = arith.constant 344 : index
    %c0_103 = arith.constant 0 : index
    %341 = vector.load %arg13[%c344, %c0_103] : memref<392x512xf32, #tpu.memory_space<vmem>>, vector<8x512xf32>
    tpu.vector_store %arg13[%c344, %c0_103], %340 {strides = array<i32>} : memref<392x512xf32, #tpu.memory_space<vmem>>, vector<8x512xf32>,
    %c465_i32 = arith.constant 465 : i32
    %342 = tpu.dynamic_rotate %10 by %c465_i32 dim 1 : vector<8x512xf32>, i32 -> vector<8x512xf32>
    %343 = arith.mulf %66, %90 : vector<1x512xf32>
    %344 = vector.broadcast %343 : vector<1x512xf32> to vector<8x512xf32>
    %345 = arith.mulf %342, %344 : vector<8x512xf32>
    %c352 = arith.constant 352 : index
    %c0_104 = arith.constant 0 : index
    %346 = vector.load %arg13[%c352, %c0_104] : memref<392x512xf32, #tpu.memory_space<vmem>>, vector<8x512xf32>
    tpu.vector_store %arg13[%c352, %c0_104], %345 {strides = array<i32>} : memref<392x512xf32, #tpu.memory_space<vmem>>, vector<8x512xf32>,
    %c464_i32 = arith.constant 464 : i32
    %347 = tpu.dynamic_rotate %10 by %c464_i32 dim 1 : vector<8x512xf32>, i32 -> vector<8x512xf32>
    %348 = arith.mulf %66, %98 : vector<1x512xf32>
    %349 = vector.broadcast %348 : vector<1x512xf32> to vector<8x512xf32>
    %350 = arith.mulf %347, %349 : vector<8x512xf32>
    %c360 = arith.constant 360 : index
    %c0_105 = arith.constant 0 : index
    %351 = vector.load %arg13[%c360, %c0_105] : memref<392x512xf32, #tpu.memory_space<vmem>>, vector<8x512xf32>
    tpu.vector_store %arg13[%c360, %c0_105], %350 {strides = array<i32>} : memref<392x512xf32, #tpu.memory_space<vmem>>, vector<8x512xf32>,
    %c463_i32 = arith.constant 463 : i32
    %352 = tpu.dynamic_rotate %10 by %c463_i32 dim 1 : vector<8x512xf32>, i32 -> vector<8x512xf32>
    %353 = arith.mulf %66, %106 : vector<1x512xf32>
    %354 = vector.broadcast %353 : vector<1x512xf32> to vector<8x512xf32>
    %355 = arith.mulf %352, %354 : vector<8x512xf32>
    %c368 = arith.constant 368 : index
    %c0_106 = arith.constant 0 : index
    %356 = vector.load %arg13[%c368, %c0_106] : memref<392x512xf32, #tpu.memory_space<vmem>>, vector<8x512xf32>
    tpu.vector_store %arg13[%c368, %c0_106], %355 {strides = array<i32>} : memref<392x512xf32, #tpu.memory_space<vmem>>, vector<8x512xf32>,
    %c462_i32 = arith.constant 462 : i32
    %357 = tpu.dynamic_rotate %10 by %c462_i32 dim 1 : vector<8x512xf32>, i32 -> vector<8x512xf32>
    %358 = arith.mulf %66, %114 : vector<1x512xf32>
    %359 = vector.broadcast %358 : vector<1x512xf32> to vector<8x512xf32>
    %360 = arith.mulf %357, %359 : vector<8x512xf32>
    %c376 = arith.constant 376 : index
    %c0_107 = arith.constant 0 : index
    %361 = vector.load %arg13[%c376, %c0_107] : memref<392x512xf32, #tpu.memory_space<vmem>>, vector<8x512xf32>
    tpu.vector_store %arg13[%c376, %c0_107], %360 {strides = array<i32>} : memref<392x512xf32, #tpu.memory_space<vmem>>, vector<8x512xf32>,
    %c461_i32 = arith.constant 461 : i32
    %362 = tpu.dynamic_rotate %10 by %c461_i32 dim 1 : vector<8x512xf32>, i32 -> vector<8x512xf32>
    %363 = arith.mulf %66, %122 : vector<1x512xf32>
    %364 = vector.broadcast %363 : vector<1x512xf32> to vector<8x512xf32>
    %365 = arith.mulf %362, %364 : vector<8x512xf32>
    %c384 = arith.constant 384 : index
    %c0_108 = arith.constant 0 : index
    %366 = vector.load %arg13[%c384, %c0_108] : memref<392x512xf32, #tpu.memory_space<vmem>>, vector<8x512xf32>
    tpu.vector_store %arg13[%c384, %c0_108], %365 {strides = array<i32>} : memref<392x512xf32, #tpu.memory_space<vmem>>, vector<8x512xf32>,
    %c0_109 = arith.constant 0 : index
    %c0_110 = arith.constant 0 : index
    %367 = vector.load %arg4[%c0_109, %c0_110] : memref<8x392xf32, #tpu.memory_space<vmem>>, vector<8x392xf32>
    %c0_111 = arith.constant 0 : index
    %c0_112 = arith.constant 0 : index
    %368 = vector.load %arg13[%c0_111, %c0_112] : memref<392x512xf32, #tpu.memory_space<vmem>>, vector<392x512xf32>
    %cst_113 = arith.constant dense<0.000000e+00> : vector<8x512xf32>
    %369 = tpu.matmul %367, %368, %cst_113 {dimension_numbers = #tpu.dot_dimension_numbers<[1], [0], [0], [1], [0, 0, 1, 1], [], []>} : vector<8x392xf32>, vector<392x512xf32>, vector<8x512xf32> -> vector<8x512xf32>
    %cst_114 = arith.constant dense<0.000000e+00> : vector<8xf32>
    %370 = vector.multi_reduction <add>, %369, %cst_114 [1] : vector<8x512xf32> to vector<8xf32>
    %371 = vector.shape_cast %370 : vector<8xf32> to vector<8x1xf32>
    %cst_115 = arith.constant 0.001953125 : f32
    %372 = vector.broadcast %cst_115 : f32 to vector<8x1xf32>
    %373 = arith.mulf %371, %372 : vector<8x1xf32>
    %374 = vector.broadcast %373 : vector<8x1xf32> to vector<8x512xf32>
    %375 = arith.subf %369, %374 : vector<8x512xf32>
    %376 = vector.broadcast %9 : vector<1x512xf32> to vector<8x512xf32>
    %377 = arith.mulf %375, %376 : vector<8x512xf32>
    %378 = arith.mulf %377, %377 : vector<8x512xf32>
    %cst_116 = arith.constant dense<0.000000e+00> : vector<8xf32>
    %379 = vector.multi_reduction <add>, %378, %cst_116 [1] : vector<8x512xf32> to vector<8xf32>
    %380 = vector.shape_cast %379 : vector<8xf32> to vector<8x1xf32>
    %cst_117 = arith.constant 0.001953125 : f32
    %381 = vector.broadcast %cst_117 : f32 to vector<8x1xf32>
    %382 = arith.mulf %380, %381 : vector<8x1xf32>
    %c0_118 = arith.constant 0 : index
    %c0_119 = arith.constant 0 : index
    %383 = vector.load %arg5[%c0_118, %c0_119] : memref<8x2xf32, #tpu.memory_space<vmem>>, vector<8x1xf32>
    %c0_120 = arith.constant 0 : index
    %c1 = arith.constant 1 : index
    %384 = vector.load %arg5[%c0_120, %c1] : memref<8x2xf32, #tpu.memory_space<vmem>>, vector<8x1xf32>
    %cst_121 = arith.constant 9.99999974E-6 : f32
    %385 = vector.broadcast %cst_121 : f32 to vector<8x1xf32>
    %386 = arith.addf %382, %385 : vector<8x1xf32>
    %387 = math.rsqrt %386 : vector<8x1xf32>
    %388 = arith.mulf %383, %387 : vector<8x1xf32>
    %389 = arith.mulf %373, %388 : vector<8x1xf32>
    %390 = arith.subf %384, %389 : vector<8x1xf32>
    %391 = vector.broadcast %388 : vector<8x1xf32> to vector<8x512xf32>
    %392 = arith.mulf %369, %391 : vector<8x512xf32>
    %393 = vector.broadcast %390 : vector<8x1xf32> to vector<8x512xf32>
    %394 = arith.addf %392, %393 : vector<8x512xf32>
    %cst_122 = arith.constant 0.000000e+00 : f32
    %395 = vector.broadcast %cst_122 : f32 to vector<8x512xf32>
    %396 = arith.maximumf %394, %395 : vector<8x512xf32>
    %c2_i32_123 = arith.constant 2 : i32
    %397 = vector.broadcast %c2_i32_123 : i32 to vector<1x512xi32>
    %398 = arith.cmpi sge, %0, %397 : vector<1x512xi32>
    %c17_i32_124 = arith.constant 17 : i32
    %399 = vector.broadcast %c17_i32_124 : i32 to vector<1x512xi32>
    %400 = arith.cmpi sle, %0, %399 : vector<1x512xi32>
    %401 = arith.andi %398, %400 : vector<1x512xi1>
    %cst_125 = arith.constant 1.000000e+00 : f32
    %cst_126 = arith.constant 0.000000e+00 : f32
    %402 = vector.broadcast %cst_125 : f32 to vector<1x512xf32>
    %403 = vector.broadcast %cst_126 : f32 to vector<1x512xf32>
    %404 = arith.select %401, %402, %403 : vector<1x512xi1>, vector<1x512xf32>
    %c1_i32_127 = arith.constant 1 : i32
    %405 = vector.broadcast %c1_i32_127 : i32 to vector<1x512xi32>
    %406 = arith.cmpi sge, %0, %405 : vector<1x512xi32>
    %c16_i32_128 = arith.constant 16 : i32
    %407 = vector.broadcast %c16_i32_128 : i32 to vector<1x512xi32>
    %408 = arith.cmpi sle, %0, %407 : vector<1x512xi32>
    %409 = arith.andi %406, %408 : vector<1x512xi1>
    %cst_129 = arith.constant 1.000000e+00 : f32
    %cst_130 = arith.constant 0.000000e+00 : f32
    %410 = vector.broadcast %cst_129 : f32 to vector<1x512xf32>
    %411 = vector.broadcast %cst_130 : f32 to vector<1x512xf32>
    %412 = arith.select %409, %410, %411 : vector<1x512xi1>, vector<1x512xf32>
    %c0_i32_131 = arith.constant 0 : i32
    %413 = vector.broadcast %c0_i32_131 : i32 to vector<1x512xi32>
    %414 = arith.cmpi sge, %0, %413 : vector<1x512xi32>
    %c15_i32_132 = arith.constant 15 : i32
    %415 = vector.broadcast %c15_i32_132 : i32 to vector<1x512xi32>
    %416 = arith.cmpi sle, %0, %415 : vector<1x512xi32>
    %417 = arith.andi %414, %416 : vector<1x512xi1>
    %cst_133 = arith.constant 1.000000e+00 : f32
    %cst_134 = arith.constant 0.000000e+00 : f32
    %418 = vector.broadcast %cst_133 : f32 to vector<1x512xf32>
    %419 = vector.broadcast %cst_134 : f32 to vector<1x512xf32>
    %420 = arith.select %417, %418, %419 : vector<1x512xi1>, vector<1x512xf32>
    %c-1_i32_135 = arith.constant -1 : i32
    %421 = vector.broadcast %c-1_i32_135 : i32 to vector<1x512xi32>
    %422 = arith.cmpi sge, %0, %421 : vector<1x512xi32>
    %c14_i32_136 = arith.constant 14 : i32
    %423 = vector.broadcast %c14_i32_136 : i32 to vector<1x512xi32>
    %424 = arith.cmpi sle, %0, %423 : vector<1x512xi32>
    %425 = arith.andi %422, %424 : vector<1x512xi1>
    %cst_137 = arith.constant 1.000000e+00 : f32
    %cst_138 = arith.constant 0.000000e+00 : f32
    %426 = vector.broadcast %cst_137 : f32 to vector<1x512xf32>
    %427 = vector.broadcast %cst_138 : f32 to vector<1x512xf32>
    %428 = arith.select %425, %426, %427 : vector<1x512xi1>, vector<1x512xf32>
    %c-2_i32_139 = arith.constant -2 : i32
    %429 = vector.broadcast %c-2_i32_139 : i32 to vector<1x512xi32>
    %430 = arith.cmpi sge, %0, %429 : vector<1x512xi32>
    %c13_i32_140 = arith.constant 13 : i32
    %431 = vector.broadcast %c13_i32_140 : i32 to vector<1x512xi32>
    %432 = arith.cmpi sle, %0, %431 : vector<1x512xi32>
    %433 = arith.andi %430, %432 : vector<1x512xi1>
    %cst_141 = arith.constant 1.000000e+00 : f32
    %cst_142 = arith.constant 0.000000e+00 : f32
    %434 = vector.broadcast %cst_141 : f32 to vector<1x512xf32>
    %435 = vector.broadcast %cst_142 : f32 to vector<1x512xf32>
    %436 = arith.select %433, %434, %435 : vector<1x512xi1>, vector<1x512xf32>
    %c2_i32_143 = arith.constant 2 : i32
    %437 = vector.broadcast %c2_i32_143 : i32 to vector<1x512xi32>
    %438 = arith.cmpi sge, %1, %437 : vector<1x512xi32>
    %c17_i32_144 = arith.constant 17 : i32
    %439 = vector.broadcast %c17_i32_144 : i32 to vector<1x512xi32>
    %440 = arith.cmpi sle, %1, %439 : vector<1x512xi32>
    %441 = arith.andi %438, %440 : vector<1x512xi1>
    %cst_145 = arith.constant 1.000000e+00 : f32
    %cst_146 = arith.constant 0.000000e+00 : f32
    %442 = vector.broadcast %cst_145 : f32 to vector<1x512xf32>
    %443 = vector.broadcast %cst_146 : f32 to vector<1x512xf32>
    %444 = arith.select %441, %442, %443 : vector<1x512xi1>, vector<1x512xf32>
    %c1_i32_147 = arith.constant 1 : i32
    %445 = vector.broadcast %c1_i32_147 : i32 to vector<1x512xi32>
    %446 = arith.cmpi sge, %1, %445 : vector<1x512xi32>
    %c16_i32_148 = arith.constant 16 : i32
    %447 = vector.broadcast %c16_i32_148 : i32 to vector<1x512xi32>
    %448 = arith.cmpi sle, %1, %447 : vector<1x512xi32>
    %449 = arith.andi %446, %448 : vector<1x512xi1>
    %cst_149 = arith.constant 1.000000e+00 : f32
    %cst_150 = arith.constant 0.000000e+00 : f32
    %450 = vector.broadcast %cst_149 : f32 to vector<1x512xf32>
    %451 = vector.broadcast %cst_150 : f32 to vector<1x512xf32>
    %452 = arith.select %449, %450, %451 : vector<1x512xi1>, vector<1x512xf32>
    %c0_i32_151 = arith.constant 0 : i32
    %453 = vector.broadcast %c0_i32_151 : i32 to vector<1x512xi32>
    %454 = arith.cmpi sge, %1, %453 : vector<1x512xi32>
    %c15_i32_152 = arith.constant 15 : i32
    %455 = vector.broadcast %c15_i32_152 : i32 to vector<1x512xi32>
    %456 = arith.cmpi sle, %1, %455 : vector<1x512xi32>
    %457 = arith.andi %454, %456 : vector<1x512xi1>
    %cst_153 = arith.constant 1.000000e+00 : f32
    %cst_154 = arith.constant 0.000000e+00 : f32
    %458 = vector.broadcast %cst_153 : f32 to vector<1x512xf32>
    %459 = vector.broadcast %cst_154 : f32 to vector<1x512xf32>
    %460 = arith.select %457, %458, %459 : vector<1x512xi1>, vector<1x512xf32>
    %c-1_i32_155 = arith.constant -1 : i32
    %461 = vector.broadcast %c-1_i32_155 : i32 to vector<1x512xi32>
    %462 = arith.cmpi sge, %1, %461 : vector<1x512xi32>
    %c14_i32_156 = arith.constant 14 : i32
    %463 = vector.broadcast %c14_i32_156 : i32 to vector<1x512xi32>
    %464 = arith.cmpi sle, %1, %463 : vector<1x512xi32>
    %465 = arith.andi %462, %464 : vector<1x512xi1>
    %cst_157 = arith.constant 1.000000e+00 : f32
    %cst_158 = arith.constant 0.000000e+00 : f32
    %466 = vector.broadcast %cst_157 : f32 to vector<1x512xf32>
    %467 = vector.broadcast %cst_158 : f32 to vector<1x512xf32>
    %468 = arith.select %465, %466, %467 : vector<1x512xi1>, vector<1x512xf32>
    %c-2_i32_159 = arith.constant -2 : i32
    %469 = vector.broadcast %c-2_i32_159 : i32 to vector<1x512xi32>
    %470 = arith.cmpi sge, %1, %469 : vector<1x512xi32>
    %c13_i32_160 = arith.constant 13 : i32
    %471 = vector.broadcast %c13_i32_160 : i32 to vector<1x512xi32>
    %472 = arith.cmpi sle, %1, %471 : vector<1x512xi32>
    %473 = arith.andi %470, %472 : vector<1x512xi1>
    %cst_161 = arith.constant 1.000000e+00 : f32
    %cst_162 = arith.constant 0.000000e+00 : f32
    %474 = vector.broadcast %cst_161 : f32 to vector<1x512xf32>
    %475 = vector.broadcast %cst_162 : f32 to vector<1x512xf32>
    %476 = arith.select %473, %474, %475 : vector<1x512xi1>, vector<1x512xf32>
    %c34_i32_163 = arith.constant 34 : i32
    %477 = tpu.dynamic_rotate %396 by %c34_i32_163 dim 1 : vector<8x512xf32>, i32 -> vector<8x512xf32>
    %478 = arith.mulf %404, %444 : vector<1x512xf32>
    %479 = vector.broadcast %478 : vector<1x512xf32> to vector<8x512xf32>
    %480 = arith.mulf %477, %479 : vector<8x512xf32>
    %c0_164 = arith.constant 0 : index
    %c0_165 = arith.constant 0 : index
    %481 = vector.load %arg13[%c0_164, %c0_165] : memref<392x512xf32, #tpu.memory_space<vmem>>, vector<8x512xf32>
    tpu.vector_store %arg13[%c0_164, %c0_165], %480 {strides = array<i32>} : memref<392x512xf32, #tpu.memory_space<vmem>>, vector<8x512xf32>,
    %c33_i32_166 = arith.constant 33 : i32
    %482 = tpu.dynamic_rotate %396 by %c33_i32_166 dim 1 : vector<8x512xf32>, i32 -> vector<8x512xf32>
    %483 = arith.mulf %404, %452 : vector<1x512xf32>
    %484 = vector.broadcast %483 : vector<1x512xf32> to vector<8x512xf32>
    %485 = arith.mulf %482, %484 : vector<8x512xf32>
    %c8_167 = arith.constant 8 : index
    %c0_168 = arith.constant 0 : index
    %486 = vector.load %arg13[%c8_167, %c0_168] : memref<392x512xf32, #tpu.memory_space<vmem>>, vector<8x512xf32>
    tpu.vector_store %arg13[%c8_167, %c0_168], %485 {strides = array<i32>} : memref<392x512xf32, #tpu.memory_space<vmem>>, vector<8x512xf32>,
    %c32_i32_169 = arith.constant 32 : i32
    %487 = tpu.dynamic_rotate %396 by %c32_i32_169 dim 1 : vector<8x512xf32>, i32 -> vector<8x512xf32>
    %488 = arith.mulf %404, %460 : vector<1x512xf32>
    %489 = vector.broadcast %488 : vector<1x512xf32> to vector<8x512xf32>
    %490 = arith.mulf %487, %489 : vector<8x512xf32>
    %c16_170 = arith.constant 16 : index
    %c0_171 = arith.constant 0 : index
    %491 = vector.load %arg13[%c16_170, %c0_171] : memref<392x512xf32, #tpu.memory_space<vmem>>, vector<8x512xf32>
    tpu.vector_store %arg13[%c16_170, %c0_171], %490 {strides = array<i32>} : memref<392x512xf32, #tpu.memory_space<vmem>>, vector<8x512xf32>,
    %c31_i32_172 = arith.constant 31 : i32
    %492 = tpu.dynamic_rotate %396 by %c31_i32_172 dim 1 : vector<8x512xf32>, i32 -> vector<8x512xf32>
    %493 = arith.mulf %404, %468 : vector<1x512xf32>
    %494 = vector.broadcast %493 : vector<1x512xf32> to vector<8x512xf32>
    %495 = arith.mulf %492, %494 : vector<8x512xf32>
    %c24_173 = arith.constant 24 : index
    %c0_174 = arith.constant 0 : index
    %496 = vector.load %arg13[%c24_173, %c0_174] : memref<392x512xf32, #tpu.memory_space<vmem>>, vector<8x512xf32>
    tpu.vector_store %arg13[%c24_173, %c0_174], %495 {strides = array<i32>} : memref<392x512xf32, #tpu.memory_space<vmem>>, vector<8x512xf32>,
    %c30_i32_175 = arith.constant 30 : i32
    %497 = tpu.dynamic_rotate %396 by %c30_i32_175 dim 1 : vector<8x512xf32>, i32 -> vector<8x512xf32>
    %498 = arith.mulf %404, %476 : vector<1x512xf32>
    %499 = vector.broadcast %498 : vector<1x512xf32> to vector<8x512xf32>
    %500 = arith.mulf %497, %499 : vector<8x512xf32>
    %c32_176 = arith.constant 32 : index
    %c0_177 = arith.constant 0 : index
    %501 = vector.load %arg13[%c32_176, %c0_177] : memref<392x512xf32, #tpu.memory_space<vmem>>, vector<8x512xf32>
    tpu.vector_store %arg13[%c32_176, %c0_177], %500 {strides = array<i32>} : memref<392x512xf32, #tpu.memory_space<vmem>>, vector<8x512xf32>,
    %c18_i32_178 = arith.constant 18 : i32
    %502 = tpu.dynamic_rotate %396 by %c18_i32_178 dim 1 : vector<8x512xf32>, i32 -> vector<8x512xf32>
    %503 = arith.mulf %412, %444 : vector<1x512xf32>
    %504 = vector.broadcast %503 : vector<1x512xf32> to vector<8x512xf32>
    %505 = arith.mulf %502, %504 : vector<8x512xf32>
    %c40_179 = arith.constant 40 : index
    %c0_180 = arith.constant 0 : index
    %506 = vector.load %arg13[%c40_179, %c0_180] : memref<392x512xf32, #tpu.memory_space<vmem>>, vector<8x512xf32>
    tpu.vector_store %arg13[%c40_179, %c0_180], %505 {strides = array<i32>} : memref<392x512xf32, #tpu.memory_space<vmem>>, vector<8x512xf32>,
    %c17_i32_181 = arith.constant 17 : i32
    %507 = tpu.dynamic_rotate %396 by %c17_i32_181 dim 1 : vector<8x512xf32>, i32 -> vector<8x512xf32>
    %508 = arith.mulf %412, %452 : vector<1x512xf32>
    %509 = vector.broadcast %508 : vector<1x512xf32> to vector<8x512xf32>
    %510 = arith.mulf %507, %509 : vector<8x512xf32>
    %c48_182 = arith.constant 48 : index
    %c0_183 = arith.constant 0 : index
    %511 = vector.load %arg13[%c48_182, %c0_183] : memref<392x512xf32, #tpu.memory_space<vmem>>, vector<8x512xf32>
    tpu.vector_store %arg13[%c48_182, %c0_183], %510 {strides = array<i32>} : memref<392x512xf32, #tpu.memory_space<vmem>>, vector<8x512xf32>,
    %c16_i32_184 = arith.constant 16 : i32
    %512 = tpu.dynamic_rotate %396 by %c16_i32_184 dim 1 : vector<8x512xf32>, i32 -> vector<8x512xf32>
    %513 = arith.mulf %412, %460 : vector<1x512xf32>
    %514 = vector.broadcast %513 : vector<1x512xf32> to vector<8x512xf32>
    %515 = arith.mulf %512, %514 : vector<8x512xf32>
    %c56_185 = arith.constant 56 : index
    %c0_186 = arith.constant 0 : index
    %516 = vector.load %arg13[%c56_185, %c0_186] : memref<392x512xf32, #tpu.memory_space<vmem>>, vector<8x512xf32>
    tpu.vector_store %arg13[%c56_185, %c0_186], %515 {strides = array<i32>} : memref<392x512xf32, #tpu.memory_space<vmem>>, vector<8x512xf32>,
    %c15_i32_187 = arith.constant 15 : i32
    %517 = tpu.dynamic_rotate %396 by %c15_i32_187 dim 1 : vector<8x512xf32>, i32 -> vector<8x512xf32>
    %518 = arith.mulf %412, %468 : vector<1x512xf32>
    %519 = vector.broadcast %518 : vector<1x512xf32> to vector<8x512xf32>
    %520 = arith.mulf %517, %519 : vector<8x512xf32>
    %c64_188 = arith.constant 64 : index
    %c0_189 = arith.constant 0 : index
    %521 = vector.load %arg13[%c64_188, %c0_189] : memref<392x512xf32, #tpu.memory_space<vmem>>, vector<8x512xf32>
    tpu.vector_store %arg13[%c64_188, %c0_189], %520 {strides = array<i32>} : memref<392x512xf32, #tpu.memory_space<vmem>>, vector<8x512xf32>,
    %c14_i32_190 = arith.constant 14 : i32
    %522 = tpu.dynamic_rotate %396 by %c14_i32_190 dim 1 : vector<8x512xf32>, i32 -> vector<8x512xf32>
    %523 = arith.mulf %412, %476 : vector<1x512xf32>
    %524 = vector.broadcast %523 : vector<1x512xf32> to vector<8x512xf32>
    %525 = arith.mulf %522, %524 : vector<8x512xf32>
    %c72_191 = arith.constant 72 : index
    %c0_192 = arith.constant 0 : index
    %526 = vector.load %arg13[%c72_191, %c0_192] : memref<392x512xf32, #tpu.memory_space<vmem>>, vector<8x512xf32>
    tpu.vector_store %arg13[%c72_191, %c0_192], %525 {strides = array<i32>} : memref<392x512xf32, #tpu.memory_space<vmem>>, vector<8x512xf32>,
    %c2_i32_193 = arith.constant 2 : i32
    %527 = tpu.dynamic_rotate %396 by %c2_i32_193 dim 1 : vector<8x512xf32>, i32 -> vector<8x512xf32>
    %528 = arith.mulf %420, %444 : vector<1x512xf32>
    %529 = vector.broadcast %528 : vector<1x512xf32> to vector<8x512xf32>
    %530 = arith.mulf %527, %529 : vector<8x512xf32>
    %c80_194 = arith.constant 80 : index
    %c0_195 = arith.constant 0 : index
    %531 = vector.load %arg13[%c80_194, %c0_195] : memref<392x512xf32, #tpu.memory_space<vmem>>, vector<8x512xf32>
    tpu.vector_store %arg13[%c80_194, %c0_195], %530 {strides = array<i32>} : memref<392x512xf32, #tpu.memory_space<vmem>>, vector<8x512xf32>,
    %c1_i32_196 = arith.constant 1 : i32
    %532 = tpu.dynamic_rotate %396 by %c1_i32_196 dim 1 : vector<8x512xf32>, i32 -> vector<8x512xf32>
    %533 = arith.mulf %420, %452 : vector<1x512xf32>
    %534 = vector.broadcast %533 : vector<1x512xf32> to vector<8x512xf32>
    %535 = arith.mulf %532, %534 : vector<8x512xf32>
    %c88_197 = arith.constant 88 : index
    %c0_198 = arith.constant 0 : index
    %536 = vector.load %arg13[%c88_197, %c0_198] : memref<392x512xf32, #tpu.memory_space<vmem>>, vector<8x512xf32>
    tpu.vector_store %arg13[%c88_197, %c0_198], %535 {strides = array<i32>} : memref<392x512xf32, #tpu.memory_space<vmem>>, vector<8x512xf32>,
    %537 = arith.mulf %420, %460 : vector<1x512xf32>
    %538 = vector.broadcast %537 : vector<1x512xf32> to vector<8x512xf32>
    %539 = arith.mulf %396, %538 : vector<8x512xf32>
    %c96_199 = arith.constant 96 : index
    %c0_200 = arith.constant 0 : index
    %540 = vector.load %arg13[%c96_199, %c0_200] : memref<392x512xf32, #tpu.memory_space<vmem>>, vector<8x512xf32>
    tpu.vector_store %arg13[%c96_199, %c0_200], %539 {strides = array<i32>} : memref<392x512xf32, #tpu.memory_space<vmem>>, vector<8x512xf32>,
    %c511_i32_201 = arith.constant 511 : i32
    %541 = tpu.dynamic_rotate %396 by %c511_i32_201 dim 1 : vector<8x512xf32>, i32 -> vector<8x512xf32>
    %542 = arith.mulf %420, %468 : vector<1x512xf32>
    %543 = vector.broadcast %542 : vector<1x512xf32> to vector<8x512xf32>
    %544 = arith.mulf %541, %543 : vector<8x512xf32>
    %c104_202 = arith.constant 104 : index
    %c0_203 = arith.constant 0 : index
    %545 = vector.load %arg13[%c104_202, %c0_203] : memref<392x512xf32, #tpu.memory_space<vmem>>, vector<8x512xf32>
    tpu.vector_store %arg13[%c104_202, %c0_203], %544 {strides = array<i32>} : memref<392x512xf32, #tpu.memory_space<vmem>>, vector<8x512xf32>,
    %c510_i32_204 = arith.constant 510 : i32
    %546 = tpu.dynamic_rotate %396 by %c510_i32_204 dim 1 : vector<8x512xf32>, i32 -> vector<8x512xf32>
    %547 = arith.mulf %420, %476 : vector<1x512xf32>
    %548 = vector.broadcast %547 : vector<1x512xf32> to vector<8x512xf32>
    %549 = arith.mulf %546, %548 : vector<8x512xf32>
    %c112_205 = arith.constant 112 : index
    %c0_206 = arith.constant 0 : index
    %550 = vector.load %arg13[%c112_205, %c0_206] : memref<392x512xf32, #tpu.memory_space<vmem>>, vector<8x512xf32>
    tpu.vector_store %arg13[%c112_205, %c0_206], %549 {strides = array<i32>} : memref<392x512xf32, #tpu.memory_space<vmem>>, vector<8x512xf32>,
    %c498_i32_207 = arith.constant 498 : i32
    %551 = tpu.dynamic_rotate %396 by %c498_i32_207 dim 1 : vector<8x512xf32>, i32 -> vector<8x512xf32>
    %552 = arith.mulf %428, %444 : vector<1x512xf32>
    %553 = vector.broadcast %552 : vector<1x512xf32> to vector<8x512xf32>
    %554 = arith.mulf %551, %553 : vector<8x512xf32>
    %c120_208 = arith.constant 120 : index
    %c0_209 = arith.constant 0 : index
    %555 = vector.load %arg13[%c120_208, %c0_209] : memref<392x512xf32, #tpu.memory_space<vmem>>, vector<8x512xf32>
    tpu.vector_store %arg13[%c120_208, %c0_209], %554 {strides = array<i32>} : memref<392x512xf32, #tpu.memory_space<vmem>>, vector<8x512xf32>,
    %c497_i32_210 = arith.constant 497 : i32
    %556 = tpu.dynamic_rotate %396 by %c497_i32_210 dim 1 : vector<8x512xf32>, i32 -> vector<8x512xf32>
    %557 = arith.mulf %428, %452 : vector<1x512xf32>
    %558 = vector.broadcast %557 : vector<1x512xf32> to vector<8x512xf32>
    %559 = arith.mulf %556, %558 : vector<8x512xf32>
    %c128_211 = arith.constant 128 : index
    %c0_212 = arith.constant 0 : index
    %560 = vector.load %arg13[%c128_211, %c0_212] : memref<392x512xf32, #tpu.memory_space<vmem>>, vector<8x512xf32>
    tpu.vector_store %arg13[%c128_211, %c0_212], %559 {strides = array<i32>} : memref<392x512xf32, #tpu.memory_space<vmem>>, vector<8x512xf32>,
    %c496_i32_213 = arith.constant 496 : i32
    %561 = tpu.dynamic_rotate %396 by %c496_i32_213 dim 1 : vector<8x512xf32>, i32 -> vector<8x512xf32>
    %562 = arith.mulf %428, %460 : vector<1x512xf32>
    %563 = vector.broadcast %562 : vector<1x512xf32> to vector<8x512xf32>
    %564 = arith.mulf %561, %563 : vector<8x512xf32>
    %c136_214 = arith.constant 136 : index
    %c0_215 = arith.constant 0 : index
    %565 = vector.load %arg13[%c136_214, %c0_215] : memref<392x512xf32, #tpu.memory_space<vmem>>, vector<8x512xf32>
    tpu.vector_store %arg13[%c136_214, %c0_215], %564 {strides = array<i32>} : memref<392x512xf32, #tpu.memory_space<vmem>>, vector<8x512xf32>,
    %c495_i32_216 = arith.constant 495 : i32
    %566 = tpu.dynamic_rotate %396 by %c495_i32_216 dim 1 : vector<8x512xf32>, i32 -> vector<8x512xf32>
    %567 = arith.mulf %428, %468 : vector<1x512xf32>
    %568 = vector.broadcast %567 : vector<1x512xf32> to vector<8x512xf32>
    %569 = arith.mulf %566, %568 : vector<8x512xf32>
    %c144_217 = arith.constant 144 : index
    %c0_218 = arith.constant 0 : index
    %570 = vector.load %arg13[%c144_217, %c0_218] : memref<392x512xf32, #tpu.memory_space<vmem>>, vector<8x512xf32>
    tpu.vector_store %arg13[%c144_217, %c0_218], %569 {strides = array<i32>} : memref<392x512xf32, #tpu.memory_space<vmem>>, vector<8x512xf32>,
    %c494_i32_219 = arith.constant 494 : i32
    %571 = tpu.dynamic_rotate %396 by %c494_i32_219 dim 1 : vector<8x512xf32>, i32 -> vector<8x512xf32>
    %572 = arith.mulf %428, %476 : vector<1x512xf32>
    %573 = vector.broadcast %572 : vector<1x512xf32> to vector<8x512xf32>
    %574 = arith.mulf %571, %573 : vector<8x512xf32>
    %c152_220 = arith.constant 152 : index
    %c0_221 = arith.constant 0 : index
    %575 = vector.load %arg13[%c152_220, %c0_221] : memref<392x512xf32, #tpu.memory_space<vmem>>, vector<8x512xf32>
    tpu.vector_store %arg13[%c152_220, %c0_221], %574 {strides = array<i32>} : memref<392x512xf32, #tpu.memory_space<vmem>>, vector<8x512xf32>,
    %c482_i32_222 = arith.constant 482 : i32
    %576 = tpu.dynamic_rotate %396 by %c482_i32_222 dim 1 : vector<8x512xf32>, i32 -> vector<8x512xf32>
    %577 = arith.mulf %436, %444 : vector<1x512xf32>
    %578 = vector.broadcast %577 : vector<1x512xf32> to vector<8x512xf32>
    %579 = arith.mulf %576, %578 : vector<8x512xf32>
    %c160_223 = arith.constant 160 : index
    %c0_224 = arith.constant 0 : index
    %580 = vector.load %arg13[%c160_223, %c0_224] : memref<392x512xf32, #tpu.memory_space<vmem>>, vector<8x512xf32>
    tpu.vector_store %arg13[%c160_223, %c0_224], %579 {strides = array<i32>} : memref<392x512xf32, #tpu.memory_space<vmem>>, vector<8x512xf32>,
    %c481_i32_225 = arith.constant 481 : i32
    %581 = tpu.dynamic_rotate %396 by %c481_i32_225 dim 1 : vector<8x512xf32>, i32 -> vector<8x512xf32>
    %582 = arith.mulf %436, %452 : vector<1x512xf32>
    %583 = vector.broadcast %582 : vector<1x512xf32> to vector<8x512xf32>
    %584 = arith.mulf %581, %583 : vector<8x512xf32>
    %c168_226 = arith.constant 168 : index
    %c0_227 = arith.constant 0 : index
    %585 = vector.load %arg13[%c168_226, %c0_227] : memref<392x512xf32, #tpu.memory_space<vmem>>, vector<8x512xf32>
    tpu.vector_store %arg13[%c168_226, %c0_227], %584 {strides = array<i32>} : memref<392x512xf32, #tpu.memory_space<vmem>>, vector<8x512xf32>,
    %c480_i32_228 = arith.constant 480 : i32
    %586 = tpu.dynamic_rotate %396 by %c480_i32_228 dim 1 : vector<8x512xf32>, i32 -> vector<8x512xf32>
    %587 = arith.mulf %436, %460 : vector<1x512xf32>
    %588 = vector.broadcast %587 : vector<1x512xf32> to vector<8x512xf32>
    %589 = arith.mulf %586, %588 : vector<8x512xf32>
    %c176_229 = arith.constant 176 : index
    %c0_230 = arith.constant 0 : index
    %590 = vector.load %arg13[%c176_229, %c0_230] : memref<392x512xf32, #tpu.memory_space<vmem>>, vector<8x512xf32>
    tpu.vector_store %arg13[%c176_229, %c0_230], %589 {strides = array<i32>} : memref<392x512xf32, #tpu.memory_space<vmem>>, vector<8x512xf32>,
    %c479_i32_231 = arith.constant 479 : i32
    %591 = tpu.dynamic_rotate %396 by %c479_i32_231 dim 1 : vector<8x512xf32>, i32 -> vector<8x512xf32>
    %592 = arith.mulf %436, %468 : vector<1x512xf32>
    %593 = vector.broadcast %592 : vector<1x512xf32> to vector<8x512xf32>
    %594 = arith.mulf %591, %593 : vector<8x512xf32>
    %c184_232 = arith.constant 184 : index
    %c0_233 = arith.constant 0 : index
    %595 = vector.load %arg13[%c184_232, %c0_233] : memref<392x512xf32, #tpu.memory_space<vmem>>, vector<8x512xf32>
    tpu.vector_store %arg13[%c184_232, %c0_233], %594 {strides = array<i32>} : memref<392x512xf32, #tpu.memory_space<vmem>>, vector<8x512xf32>,
    %c478_i32_234 = arith.constant 478 : i32
    %596 = tpu.dynamic_rotate %396 by %c478_i32_234 dim 1 : vector<8x512xf32>, i32 -> vector<8x512xf32>
    %597 = arith.mulf %436, %476 : vector<1x512xf32>
    %598 = vector.broadcast %597 : vector<1x512xf32> to vector<8x512xf32>
    %599 = arith.mulf %596, %598 : vector<8x512xf32>
    %c192_235 = arith.constant 192 : index
    %c0_236 = arith.constant 0 : index
    %600 = vector.load %arg13[%c192_235, %c0_236] : memref<392x512xf32, #tpu.memory_space<vmem>>, vector<8x512xf32>
    tpu.vector_store %arg13[%c192_235, %c0_236], %599 {strides = array<i32>} : memref<392x512xf32, #tpu.memory_space<vmem>>, vector<8x512xf32>,
    %c0_237 = arith.constant 0 : index
    %c0_238 = arith.constant 0 : index
    %601 = vector.load %arg6[%c0_237, %c0_238] : memref<16x200xf32, #tpu.memory_space<vmem>>, vector<16x200xf32>
    %c0_239 = arith.constant 0 : index
    %c0_240 = arith.constant 0 : index
    %602 = vector.load %arg13[%c0_239, %c0_240] : memref<392x512xf32, #tpu.memory_space<vmem>>, vector<200x512xf32>
    %cst_241 = arith.constant dense<0.000000e+00> : vector<16x512xf32>
    %603 = tpu.matmul %601, %602, %cst_241 {dimension_numbers = #tpu.dot_dimension_numbers<[1], [0], [0], [1], [0, 0, 1, 1], [], []>} : vector<16x200xf32>, vector<200x512xf32>, vector<16x512xf32> -> vector<16x512xf32>
    %cst_242 = arith.constant dense<0.000000e+00> : vector<16xf32>
    %604 = vector.multi_reduction <add>, %603, %cst_242 [1] : vector<16x512xf32> to vector<16xf32>
    %605 = vector.shape_cast %604 : vector<16xf32> to vector<16x1xf32>
    %cst_243 = arith.constant 0.001953125 : f32
    %606 = vector.broadcast %cst_243 : f32 to vector<16x1xf32>
    %607 = arith.mulf %605, %606 : vector<16x1xf32>
    %608 = vector.broadcast %607 : vector<16x1xf32> to vector<16x512xf32>
    %609 = arith.subf %603, %608 : vector<16x512xf32>
    %610 = vector.broadcast %9 : vector<1x512xf32> to vector<16x512xf32>
    %611 = arith.mulf %609, %610 : vector<16x512xf32>
    %612 = arith.mulf %611, %611 : vector<16x512xf32>
    %cst_244 = arith.constant dense<0.000000e+00> : vector<16xf32>
    %613 = vector.multi_reduction <add>, %612, %cst_244 [1] : vector<16x512xf32> to vector<16xf32>
    %614 = vector.shape_cast %613 : vector<16xf32> to vector<16x1xf32>
    %cst_245 = arith.constant 0.001953125 : f32
    %615 = vector.broadcast %cst_245 : f32 to vector<16x1xf32>
    %616 = arith.mulf %614, %615 : vector<16x1xf32>
    %c0_246 = arith.constant 0 : index
    %c0_247 = arith.constant 0 : index
    %617 = vector.load %arg7[%c0_246, %c0_247] : memref<16x2xf32, #tpu.memory_space<vmem>>, vector<16x1xf32>
    %c0_248 = arith.constant 0 : index
    %c1_249 = arith.constant 1 : index
    %618 = vector.load %arg7[%c0_248, %c1_249] : memref<16x2xf32, #tpu.memory_space<vmem>>, vector<16x1xf32>
    %cst_250 = arith.constant 9.99999974E-6 : f32
    %619 = vector.broadcast %cst_250 : f32 to vector<16x1xf32>
    %620 = arith.addf %616, %619 : vector<16x1xf32>
    %621 = math.rsqrt %620 : vector<16x1xf32>
    %622 = arith.mulf %617, %621 : vector<16x1xf32>
    %623 = arith.mulf %607, %622 : vector<16x1xf32>
    %624 = arith.subf %618, %623 : vector<16x1xf32>
    %625 = vector.broadcast %622 : vector<16x1xf32> to vector<16x512xf32>
    %626 = arith.mulf %603, %625 : vector<16x512xf32>
    %627 = vector.broadcast %624 : vector<16x1xf32> to vector<16x512xf32>
    %628 = arith.addf %626, %627 : vector<16x512xf32>
    %cst_251 = arith.constant 0.000000e+00 : f32
    %629 = vector.broadcast %cst_251 : f32 to vector<16x512xf32>
    %630 = arith.maximumf %628, %629 : vector<16x512xf32>
    %c1_i32_252 = arith.constant 1 : i32
    %631 = vector.broadcast %c1_i32_252 : i32 to vector<1x512xi32>
    %632 = arith.cmpi sge, %0, %631 : vector<1x512xi32>
    %c16_i32_253 = arith.constant 16 : i32
    %633 = vector.broadcast %c16_i32_253 : i32 to vector<1x512xi32>
    %634 = arith.cmpi sle, %0, %633 : vector<1x512xi32>
    %635 = arith.andi %632, %634 : vector<1x512xi1>
    %cst_254 = arith.constant 1.000000e+00 : f32
    %cst_255 = arith.constant 0.000000e+00 : f32
    %636 = vector.broadcast %cst_254 : f32 to vector<1x512xf32>
    %637 = vector.broadcast %cst_255 : f32 to vector<1x512xf32>
    %638 = arith.select %635, %636, %637 : vector<1x512xi1>, vector<1x512xf32>
    %c0_i32_256 = arith.constant 0 : i32
    %639 = vector.broadcast %c0_i32_256 : i32 to vector<1x512xi32>
    %640 = arith.cmpi sge, %0, %639 : vector<1x512xi32>
    %c15_i32_257 = arith.constant 15 : i32
    %641 = vector.broadcast %c15_i32_257 : i32 to vector<1x512xi32>
    %642 = arith.cmpi sle, %0, %641 : vector<1x512xi32>
    %643 = arith.andi %640, %642 : vector<1x512xi1>
    %cst_258 = arith.constant 1.000000e+00 : f32
    %cst_259 = arith.constant 0.000000e+00 : f32
    %644 = vector.broadcast %cst_258 : f32 to vector<1x512xf32>
    %645 = vector.broadcast %cst_259 : f32 to vector<1x512xf32>
    %646 = arith.select %643, %644, %645 : vector<1x512xi1>, vector<1x512xf32>
    %c-1_i32_260 = arith.constant -1 : i32
    %647 = vector.broadcast %c-1_i32_260 : i32 to vector<1x512xi32>
    %648 = arith.cmpi sge, %0, %647 : vector<1x512xi32>
    %c14_i32_261 = arith.constant 14 : i32
    %649 = vector.broadcast %c14_i32_261 : i32 to vector<1x512xi32>
    %650 = arith.cmpi sle, %0, %649 : vector<1x512xi32>
    %651 = arith.andi %648, %650 : vector<1x512xi1>
    %cst_262 = arith.constant 1.000000e+00 : f32
    %cst_263 = arith.constant 0.000000e+00 : f32
    %652 = vector.broadcast %cst_262 : f32 to vector<1x512xf32>
    %653 = vector.broadcast %cst_263 : f32 to vector<1x512xf32>
    %654 = arith.select %651, %652, %653 : vector<1x512xi1>, vector<1x512xf32>
    %c1_i32_264 = arith.constant 1 : i32
    %655 = vector.broadcast %c1_i32_264 : i32 to vector<1x512xi32>
    %656 = arith.cmpi sge, %1, %655 : vector<1x512xi32>
    %c16_i32_265 = arith.constant 16 : i32
    %657 = vector.broadcast %c16_i32_265 : i32 to vector<1x512xi32>
    %658 = arith.cmpi sle, %1, %657 : vector<1x512xi32>
    %659 = arith.andi %656, %658 : vector<1x512xi1>
    %cst_266 = arith.constant 1.000000e+00 : f32
    %cst_267 = arith.constant 0.000000e+00 : f32
    %660 = vector.broadcast %cst_266 : f32 to vector<1x512xf32>
    %661 = vector.broadcast %cst_267 : f32 to vector<1x512xf32>
    %662 = arith.select %659, %660, %661 : vector<1x512xi1>, vector<1x512xf32>
    %c0_i32_268 = arith.constant 0 : i32
    %663 = vector.broadcast %c0_i32_268 : i32 to vector<1x512xi32>
    %664 = arith.cmpi sge, %1, %663 : vector<1x512xi32>
    %c15_i32_269 = arith.constant 15 : i32
    %665 = vector.broadcast %c15_i32_269 : i32 to vector<1x512xi32>
    %666 = arith.cmpi sle, %1, %665 : vector<1x512xi32>
    %667 = arith.andi %664, %666 : vector<1x512xi1>
    %cst_270 = arith.constant 1.000000e+00 : f32
    %cst_271 = arith.constant 0.000000e+00 : f32
    %668 = vector.broadcast %cst_270 : f32 to vector<1x512xf32>
    %669 = vector.broadcast %cst_271 : f32 to vector<1x512xf32>
    %670 = arith.select %667, %668, %669 : vector<1x512xi1>, vector<1x512xf32>
    %c-1_i32_272 = arith.constant -1 : i32
    %671 = vector.broadcast %c-1_i32_272 : i32 to vector<1x512xi32>
    %672 = arith.cmpi sge, %1, %671 : vector<1x512xi32>
    %c14_i32_273 = arith.constant 14 : i32
    %673 = vector.broadcast %c14_i32_273 : i32 to vector<1x512xi32>
    %674 = arith.cmpi sle, %1, %673 : vector<1x512xi32>
    %675 = arith.andi %672, %674 : vector<1x512xi1>
    %cst_274 = arith.constant 1.000000e+00 : f32
    %cst_275 = arith.constant 0.000000e+00 : f32
    %676 = vector.broadcast %cst_274 : f32 to vector<1x512xf32>
    %677 = vector.broadcast %cst_275 : f32 to vector<1x512xf32>
    %678 = arith.select %675, %676, %677 : vector<1x512xi1>, vector<1x512xf32>
    %c17_i32_276 = arith.constant 17 : i32
    %679 = tpu.dynamic_rotate %630 by %c17_i32_276 dim 1 : vector<16x512xf32>, i32 -> vector<16x512xf32>
    %680 = arith.mulf %638, %662 : vector<1x512xf32>
    %681 = vector.broadcast %680 : vector<1x512xf32> to vector<16x512xf32>
    %682 = arith.mulf %679, %681 : vector<16x512xf32>
    %c0_277 = arith.constant 0 : index
    %c0_278 = arith.constant 0 : index
    %683 = vector.load %arg13[%c0_277, %c0_278] : memref<392x512xf32, #tpu.memory_space<vmem>>, vector<16x512xf32>
    tpu.vector_store %arg13[%c0_277, %c0_278], %682 {strides = array<i32>} : memref<392x512xf32, #tpu.memory_space<vmem>>, vector<16x512xf32>,
    %c16_i32_279 = arith.constant 16 : i32
    %684 = tpu.dynamic_rotate %630 by %c16_i32_279 dim 1 : vector<16x512xf32>, i32 -> vector<16x512xf32>
    %685 = arith.mulf %638, %670 : vector<1x512xf32>
    %686 = vector.broadcast %685 : vector<1x512xf32> to vector<16x512xf32>
    %687 = arith.mulf %684, %686 : vector<16x512xf32>
    %c16_280 = arith.constant 16 : index
    %c0_281 = arith.constant 0 : index
    %688 = vector.load %arg13[%c16_280, %c0_281] : memref<392x512xf32, #tpu.memory_space<vmem>>, vector<16x512xf32>
    tpu.vector_store %arg13[%c16_280, %c0_281], %687 {strides = array<i32>} : memref<392x512xf32, #tpu.memory_space<vmem>>, vector<16x512xf32>,
    %c15_i32_282 = arith.constant 15 : i32
    %689 = tpu.dynamic_rotate %630 by %c15_i32_282 dim 1 : vector<16x512xf32>, i32 -> vector<16x512xf32>
    %690 = arith.mulf %638, %678 : vector<1x512xf32>
    %691 = vector.broadcast %690 : vector<1x512xf32> to vector<16x512xf32>
    %692 = arith.mulf %689, %691 : vector<16x512xf32>
    %c32_283 = arith.constant 32 : index
    %c0_284 = arith.constant 0 : index
    %693 = vector.load %arg13[%c32_283, %c0_284] : memref<392x512xf32, #tpu.memory_space<vmem>>, vector<16x512xf32>
    tpu.vector_store %arg13[%c32_283, %c0_284], %692 {strides = array<i32>} : memref<392x512xf32, #tpu.memory_space<vmem>>, vector<16x512xf32>,
    %c1_i32_285 = arith.constant 1 : i32
    %694 = tpu.dynamic_rotate %630 by %c1_i32_285 dim 1 : vector<16x512xf32>, i32 -> vector<16x512xf32>
    %695 = arith.mulf %646, %662 : vector<1x512xf32>
    %696 = vector.broadcast %695 : vector<1x512xf32> to vector<16x512xf32>
    %697 = arith.mulf %694, %696 : vector<16x512xf32>
    %c48_286 = arith.constant 48 : index
    %c0_287 = arith.constant 0 : index
    %698 = vector.load %arg13[%c48_286, %c0_287] : memref<392x512xf32, #tpu.memory_space<vmem>>, vector<16x512xf32>
    tpu.vector_store %arg13[%c48_286, %c0_287], %697 {strides = array<i32>} : memref<392x512xf32, #tpu.memory_space<vmem>>, vector<16x512xf32>,
    %699 = arith.mulf %646, %670 : vector<1x512xf32>
    %700 = vector.broadcast %699 : vector<1x512xf32> to vector<16x512xf32>
    %701 = arith.mulf %630, %700 : vector<16x512xf32>
    %c64_288 = arith.constant 64 : index
    %c0_289 = arith.constant 0 : index
    %702 = vector.load %arg13[%c64_288, %c0_289] : memref<392x512xf32, #tpu.memory_space<vmem>>, vector<16x512xf32>
    tpu.vector_store %arg13[%c64_288, %c0_289], %701 {strides = array<i32>} : memref<392x512xf32, #tpu.memory_space<vmem>>, vector<16x512xf32>,
    %c511_i32_290 = arith.constant 511 : i32
    %703 = tpu.dynamic_rotate %630 by %c511_i32_290 dim 1 : vector<16x512xf32>, i32 -> vector<16x512xf32>
    %704 = arith.mulf %646, %678 : vector<1x512xf32>
    %705 = vector.broadcast %704 : vector<1x512xf32> to vector<16x512xf32>
    %706 = arith.mulf %703, %705 : vector<16x512xf32>
    %c80_291 = arith.constant 80 : index
    %c0_292 = arith.constant 0 : index
    %707 = vector.load %arg13[%c80_291, %c0_292] : memref<392x512xf32, #tpu.memory_space<vmem>>, vector<16x512xf32>
    tpu.vector_store %arg13[%c80_291, %c0_292], %706 {strides = array<i32>} : memref<392x512xf32, #tpu.memory_space<vmem>>, vector<16x512xf32>,
    %c497_i32_293 = arith.constant 497 : i32
    %708 = tpu.dynamic_rotate %630 by %c497_i32_293 dim 1 : vector<16x512xf32>, i32 -> vector<16x512xf32>
    %709 = arith.mulf %654, %662 : vector<1x512xf32>
    %710 = vector.broadcast %709 : vector<1x512xf32> to vector<16x512xf32>
    %711 = arith.mulf %708, %710 : vector<16x512xf32>
    %c96_294 = arith.constant 96 : index
    %c0_295 = arith.constant 0 : index
    %712 = vector.load %arg13[%c96_294, %c0_295] : memref<392x512xf32, #tpu.memory_space<vmem>>, vector<16x512xf32>
    tpu.vector_store %arg13[%c96_294, %c0_295], %711 {strides = array<i32>} : memref<392x512xf32, #tpu.memory_space<vmem>>, vector<16x512xf32>,
    %c496_i32_296 = arith.constant 496 : i32
    %713 = tpu.dynamic_rotate %630 by %c496_i32_296 dim 1 : vector<16x512xf32>, i32 -> vector<16x512xf32>
    %714 = arith.mulf %654, %670 : vector<1x512xf32>
    %715 = vector.broadcast %714 : vector<1x512xf32> to vector<16x512xf32>
    %716 = arith.mulf %713, %715 : vector<16x512xf32>
    %c112_297 = arith.constant 112 : index
    %c0_298 = arith.constant 0 : index
    %717 = vector.load %arg13[%c112_297, %c0_298] : memref<392x512xf32, #tpu.memory_space<vmem>>, vector<16x512xf32>
    tpu.vector_store %arg13[%c112_297, %c0_298], %716 {strides = array<i32>} : memref<392x512xf32, #tpu.memory_space<vmem>>, vector<16x512xf32>,
    %c495_i32_299 = arith.constant 495 : i32
    %718 = tpu.dynamic_rotate %630 by %c495_i32_299 dim 1 : vector<16x512xf32>, i32 -> vector<16x512xf32>
    %719 = arith.mulf %654, %678 : vector<1x512xf32>
    %720 = vector.broadcast %719 : vector<1x512xf32> to vector<16x512xf32>
    %721 = arith.mulf %718, %720 : vector<16x512xf32>
    %c128_300 = arith.constant 128 : index
    %c0_301 = arith.constant 0 : index
    %722 = vector.load %arg13[%c128_300, %c0_301] : memref<392x512xf32, #tpu.memory_space<vmem>>, vector<16x512xf32>
    tpu.vector_store %arg13[%c128_300, %c0_301], %721 {strides = array<i32>} : memref<392x512xf32, #tpu.memory_space<vmem>>, vector<16x512xf32>,
    %c0_302 = arith.constant 0 : index
    %c0_303 = arith.constant 0 : index
    %723 = vector.load %arg8[%c0_302, %c0_303] : memref<8x144xf32, #tpu.memory_space<vmem>>, vector<8x144xf32>
    %c0_304 = arith.constant 0 : index
    %c0_305 = arith.constant 0 : index
    %724 = vector.load %arg13[%c0_304, %c0_305] : memref<392x512xf32, #tpu.memory_space<vmem>>, vector<144x512xf32>
    %cst_306 = arith.constant dense<0.000000e+00> : vector<8x512xf32>
    %725 = tpu.matmul %723, %724, %cst_306 {dimension_numbers = #tpu.dot_dimension_numbers<[1], [0], [0], [1], [0, 0, 1, 1], [], []>} : vector<8x144xf32>, vector<144x512xf32>, vector<8x512xf32> -> vector<8x512xf32>
    %cst_307 = arith.constant dense<0.000000e+00> : vector<8xf32>
    %726 = vector.multi_reduction <add>, %725, %cst_307 [1] : vector<8x512xf32> to vector<8xf32>
    %727 = vector.shape_cast %726 : vector<8xf32> to vector<8x1xf32>
    %cst_308 = arith.constant 0.001953125 : f32
    %728 = vector.broadcast %cst_308 : f32 to vector<8x1xf32>
    %729 = arith.mulf %727, %728 : vector<8x1xf32>
    %730 = vector.broadcast %729 : vector<8x1xf32> to vector<8x512xf32>
    %731 = arith.subf %725, %730 : vector<8x512xf32>
    %732 = vector.broadcast %9 : vector<1x512xf32> to vector<8x512xf32>
    %733 = arith.mulf %731, %732 : vector<8x512xf32>
    %734 = arith.mulf %733, %733 : vector<8x512xf32>
    %cst_309 = arith.constant dense<0.000000e+00> : vector<8xf32>
    %735 = vector.multi_reduction <add>, %734, %cst_309 [1] : vector<8x512xf32> to vector<8xf32>
    %736 = vector.shape_cast %735 : vector<8xf32> to vector<8x1xf32>
    %cst_310 = arith.constant 0.001953125 : f32
    %737 = vector.broadcast %cst_310 : f32 to vector<8x1xf32>
    %738 = arith.mulf %736, %737 : vector<8x1xf32>
    %c0_311 = arith.constant 0 : index
    %c0_312 = arith.constant 0 : index
    %739 = vector.load %arg9[%c0_311, %c0_312] : memref<8x2xf32, #tpu.memory_space<vmem>>, vector<8x1xf32>
    %c0_313 = arith.constant 0 : index
    %c1_314 = arith.constant 1 : index
    %740 = vector.load %arg9[%c0_313, %c1_314] : memref<8x2xf32, #tpu.memory_space<vmem>>, vector<8x1xf32>
    %cst_315 = arith.constant 9.99999974E-6 : f32
    %741 = vector.broadcast %cst_315 : f32 to vector<8x1xf32>
    %742 = arith.addf %738, %741 : vector<8x1xf32>
    %743 = math.rsqrt %742 : vector<8x1xf32>
    %744 = arith.mulf %739, %743 : vector<8x1xf32>
    %745 = arith.mulf %729, %744 : vector<8x1xf32>
    %746 = arith.subf %740, %745 : vector<8x1xf32>
    %747 = vector.broadcast %744 : vector<8x1xf32> to vector<8x512xf32>
    %748 = arith.mulf %725, %747 : vector<8x512xf32>
    %749 = vector.broadcast %746 : vector<8x1xf32> to vector<8x512xf32>
    %750 = arith.addf %748, %749 : vector<8x512xf32>
    %cst_316 = arith.constant 0.000000e+00 : f32
    %751 = vector.broadcast %cst_316 : f32 to vector<8x512xf32>
    %752 = arith.maximumf %750, %751 : vector<8x512xf32>
    %c0_i32_317 = arith.constant 0 : i32
    %753 = vector.broadcast %c0_i32_317 : i32 to vector<1x512xi32>
    %754 = arith.cmpi sge, %0, %753 : vector<1x512xi32>
    %c15_i32_318 = arith.constant 15 : i32
    %755 = vector.broadcast %c15_i32_318 : i32 to vector<1x512xi32>
    %756 = arith.cmpi sle, %0, %755 : vector<1x512xi32>
    %757 = arith.andi %754, %756 : vector<1x512xi1>
    %cst_319 = arith.constant 1.000000e+00 : f32
    %cst_320 = arith.constant 0.000000e+00 : f32
    %758 = vector.broadcast %cst_319 : f32 to vector<1x512xf32>
    %759 = vector.broadcast %cst_320 : f32 to vector<1x512xf32>
    %760 = arith.select %757, %758, %759 : vector<1x512xi1>, vector<1x512xf32>
    %c0_i32_321 = arith.constant 0 : i32
    %761 = vector.broadcast %c0_i32_321 : i32 to vector<1x512xi32>
    %762 = arith.cmpi sge, %1, %761 : vector<1x512xi32>
    %c15_i32_322 = arith.constant 15 : i32
    %763 = vector.broadcast %c15_i32_322 : i32 to vector<1x512xi32>
    %764 = arith.cmpi sle, %1, %763 : vector<1x512xi32>
    %765 = arith.andi %762, %764 : vector<1x512xi1>
    %cst_323 = arith.constant 1.000000e+00 : f32
    %cst_324 = arith.constant 0.000000e+00 : f32
    %766 = vector.broadcast %cst_323 : f32 to vector<1x512xf32>
    %767 = vector.broadcast %cst_324 : f32 to vector<1x512xf32>
    %768 = arith.select %765, %766, %767 : vector<1x512xi1>, vector<1x512xf32>
    %769 = arith.mulf %760, %768 : vector<1x512xf32>
    %770 = vector.broadcast %769 : vector<1x512xf32> to vector<8x512xf32>
    %771 = arith.mulf %752, %770 : vector<8x512xf32>
    %c0_325 = arith.constant 0 : index
    %c0_326 = arith.constant 0 : index
    %772 = vector.load %arg13[%c0_325, %c0_326] : memref<392x512xf32, #tpu.memory_space<vmem>>, vector<8x512xf32>
    tpu.vector_store %arg13[%c0_325, %c0_326], %771 {strides = array<i32>} : memref<392x512xf32, #tpu.memory_space<vmem>>, vector<8x512xf32>,
    %c0_327 = arith.constant 0 : index
    %c0_328 = arith.constant 0 : index
    %773 = vector.load %arg10[%c0_327, %c0_328] : memref<16x8xf32, #tpu.memory_space<vmem>>, vector<16x8xf32>
    %c0_329 = arith.constant 0 : index
    %c0_330 = arith.constant 0 : index
    %774 = vector.load %arg13[%c0_329, %c0_330] : memref<392x512xf32, #tpu.memory_space<vmem>>, vector<8x512xf32>
    %cst_331 = arith.constant dense<0.000000e+00> : vector<16x512xf32>
    %775 = tpu.matmul %773, %774, %cst_331 {dimension_numbers = #tpu.dot_dimension_numbers<[1], [0], [0], [1], [0, 0, 1, 1], [], []>} : vector<16x8xf32>, vector<8x512xf32>, vector<16x512xf32> -> vector<16x512xf32>
    %cst_332 = arith.constant dense<0.000000e+00> : vector<16xf32>
    %776 = vector.multi_reduction <add>, %775, %cst_332 [1] : vector<16x512xf32> to vector<16xf32>
    %777 = vector.shape_cast %776 : vector<16xf32> to vector<16x1xf32>
    %cst_333 = arith.constant 0.001953125 : f32
    %778 = vector.broadcast %cst_333 : f32 to vector<16x1xf32>
    %779 = arith.mulf %777, %778 : vector<16x1xf32>
    %780 = vector.broadcast %779 : vector<16x1xf32> to vector<16x512xf32>
    %781 = arith.subf %775, %780 : vector<16x512xf32>
    %782 = vector.broadcast %9 : vector<1x512xf32> to vector<16x512xf32>
    %783 = arith.mulf %781, %782 : vector<16x512xf32>
    %784 = arith.mulf %783, %783 : vector<16x512xf32>
    %cst_334 = arith.constant dense<0.000000e+00> : vector<16xf32>
    %785 = vector.multi_reduction <add>, %784, %cst_334 [1] : vector<16x512xf32> to vector<16xf32>
    %786 = vector.shape_cast %785 : vector<16xf32> to vector<16x1xf32>
    %cst_335 = arith.constant 0.001953125 : f32
    %787 = vector.broadcast %cst_335 : f32 to vector<16x1xf32>
    %788 = arith.mulf %786, %787 : vector<16x1xf32>
    %c0_336 = arith.constant 0 : index
    %c0_337 = arith.constant 0 : index
    %789 = vector.load %arg11[%c0_336, %c0_337] : memref<16x2xf32, #tpu.memory_space<vmem>>, vector<16x1xf32>
    %c0_338 = arith.constant 0 : index
    %c1_339 = arith.constant 1 : index
    %790 = vector.load %arg11[%c0_338, %c1_339] : memref<16x2xf32, #tpu.memory_space<vmem>>, vector<16x1xf32>
    %cst_340 = arith.constant 9.99999974E-6 : f32
    %791 = vector.broadcast %cst_340 : f32 to vector<16x1xf32>
    %792 = arith.addf %788, %791 : vector<16x1xf32>
    %793 = math.rsqrt %792 : vector<16x1xf32>
    %794 = arith.mulf %789, %793 : vector<16x1xf32>
    %795 = arith.mulf %779, %794 : vector<16x1xf32>
    %796 = arith.subf %790, %795 : vector<16x1xf32>
    %797 = vector.broadcast %794 : vector<16x1xf32> to vector<16x512xf32>
    %798 = arith.mulf %775, %797 : vector<16x512xf32>
    %799 = vector.broadcast %796 : vector<16x1xf32> to vector<16x512xf32>
    %800 = arith.addf %798, %799 : vector<16x512xf32>
    %c0_341 = arith.constant 0 : index
    %c0_342 = arith.constant 0 : index
    %801 = vector.load %arg12[%c0_341, %c0_342] : memref<16x512xf32, #tpu.memory_space<vmem>>, vector<16x512xf32>
    tpu.vector_store %arg12[%c0_341, %c0_342], %800 {strides = array<i32>} : memref<16x512xf32, #tpu.memory_space<vmem>>, vector<16x512xf32>,
    return
  }
  func.func @transform_0(%arg0: i32) -> (i32, i32) {
    %c0_i32 = arith.constant 0 : i32
    %c0_i32_0 = arith.constant 0 : i32
    %c0_i32_1 = arith.constant 0 : i32
    return %c0_i32, %c0_i32_0 : i32, i32
  }
  func.func @transform_1(%arg0: i32) -> (i32, i32) {
    %c0_i32 = arith.constant 0 : i32
    %c0_i32_0 = arith.constant 0 : i32
    %c0_i32_1 = arith.constant 0 : i32
    return %c0_i32, %c0_i32_0 : i32, i32
  }
  func.func @transform_2(%arg0: i32) -> (i32, i32) {
    %c0_i32 = arith.constant 0 : i32
    %c0_i32_0 = arith.constant 0 : i32
    %c0_i32_1 = arith.constant 0 : i32
    return %c0_i32, %c0_i32_0 : i32, i32
  }
  func.func @transform_3(%arg0: i32) -> (i32, i32) {
    %c0_i32 = arith.constant 0 : i32
    %c0_i32_0 = arith.constant 0 : i32
    %c0_i32_1 = arith.constant 0 : i32
    return %c0_i32, %c0_i32_0 : i32, i32
  }
  func.func @transform_4(%arg0: i32) -> (i32, i32) {
    %c0_i32 = arith.constant 0 : i32
    %c0_i32_0 = arith.constant 0 : i32
    %c0_i32_1 = arith.constant 0 : i32
    return %c0_i32, %c0_i32_0 : i32, i32
  }
  func.func @transform_5(%arg0: i32) -> (i32, i32) {
    %c0_i32 = arith.constant 0 : i32
    %c0_i32_0 = arith.constant 0 : i32
    %c0_i32_1 = arith.constant 0 : i32
    return %c0_i32, %c0_i32_0 : i32, i32
  }
  func.func @transform_6(%arg0: i32) -> (i32, i32) {
    %c0_i32 = arith.constant 0 : i32
    %c0_i32_0 = arith.constant 0 : i32
    %c0_i32_1 = arith.constant 0 : i32
    return %c0_i32, %c0_i32_0 : i32, i32
  }
  func.func @transform_7(%arg0: i32) -> (i32, i32) {
    %c0_i32 = arith.constant 0 : i32
    %c0_i32_0 = arith.constant 0 : i32
    %c0_i32_1 = arith.constant 0 : i32
    return %c0_i32, %c0_i32_0 : i32, i32
  }
  func.func @transform_8(%arg0: i32) -> (i32, i32) {
    %c0_i32 = arith.constant 0 : i32
    %c0_i32_0 = arith.constant 0 : i32
    %c0_i32_1 = arith.constant 0 : i32
    return %c0_i32, %c0_i32_0 : i32, i32
  }
  func.func @transform_9(%arg0: i32) -> (i32, i32) {
    %c0_i32 = arith.constant 0 : i32
    %c0_i32_0 = arith.constant 0 : i32
    %c0_i32_1 = arith.constant 0 : i32
    return %c0_i32, %c0_i32_0 : i32, i32
  }
  func.func @transform_10(%arg0: i32) -> (i32, i32) {
    %c0_i32 = arith.constant 0 : i32
    %c0_i32_0 = arith.constant 0 : i32
    %c0_i32_1 = arith.constant 0 : i32
    return %c0_i32, %c0_i32_0 : i32, i32
  }
  func.func @transform_11(%arg0: i32) -> (i32, i32) {
    %c0_i32 = arith.constant 0 : i32
    %c0_i32_0 = arith.constant 0 : i32
    %c0_i32_1 = arith.constant 0 : i32
    return %c0_i32, %c0_i32_0 : i32, i32
  }
}

</mosaic_0001>

<llo_original>
// kernel: torchnet2_forward.1
$region0: #{torchnet2_forward.1}
  #allocation0 [shape = 'u32[]', space=smem, size = 0x4, offset = 0x4, fixed_abs, tag = 'smem constant byte address 0x4 - core index']
  #allocation1 [shape = 'u32[72,128]{1,0:T(1,128)}', space=vmem, size = 0x9000, scoped, tag = 'internal scratch']
  #allocation2 [shape = 'f32[392,512]{1,0:T(8,128)}', space=vmem, size = 0xc4000, scoped, tag = 'scratch operand']
  %s0 = inlined_call_operand.vmem [shape: s32[1,512], index: 0, kind: input, shape index: {}]
  %s1 = inlined_call_operand.vmem [shape: s32[1,512], index: 1, kind: input, shape index: {}]
  %s2 = inlined_call_operand.vmem [shape: f32[8,512], index: 2, kind: input, shape index: {}]
  %s3 = inlined_call_operand.vmem [shape: f32[8,392], index: 3, kind: input, shape index: {}]
  %s4 = inlined_call_operand.vmem [shape: f32[8,2], index: 4, kind: input, shape index: {}]
  %s5 = inlined_call_operand.vmem [shape: f32[16,200], index: 5, kind: input, shape index: {}]
  %s6 = inlined_call_operand.vmem [shape: f32[16,2], index: 6, kind: input, shape index: {}]
  %s7 = inlined_call_operand.vmem [shape: f32[8,144], index: 7, kind: input, shape index: {}]
  %s8 = inlined_call_operand.vmem [shape: f32[8,2], index: 8, kind: input, shape index: {}]
  %s9 = inlined_call_operand.vmem [shape: f32[16,8], index: 9, kind: input, shape index: {}]
  %s10 = inlined_call_operand.vmem [shape: f32[16,2], index: 10, kind: input, shape index: {}]
  %s11 = inlined_call_operand.vmem [shape: f32[16,512], index: 11, kind: output, shape index: {}]
  %s12 = sld [smem:[#allocation0]]
  $region54: #{torchnet2_forward.1} parent=0
    _
  %s14 = ssub.s32 1, %s12
  %s15 = scalar_select 0, %s14, %s12
  // Predicated region
  $region2: #{torchnet2_forward.1} parent=0 // pred_check
    _
  $region3: #{torchnet2_forward.1} parent=0 // pred_check_branch
    %17 = sbr.rel (0) target = $region5
  $region4: #{torchnet2_forward.1} parent=0 // pred_region
    _
  $region5: #{torchnet2_forward.1} parent=0 // pred_fallthru
    _
  // Predicated region
  $region6: #{torchnet2_forward.1} parent=0 // pred_check
    _
  $region7: #{torchnet2_forward.1} parent=0 // pred_check_branch
    %19 = sbr.rel (0) target = $region9
  $region8: #{torchnet2_forward.1} parent=0 // pred_region
    _
  $region9: #{torchnet2_forward.1} parent=0 // pred_fallthru
    _
  // Predicated region
  $region10: #{torchnet2_forward.1} parent=0 // pred_check
    _
  $region11: #{torchnet2_forward.1} parent=0 // pred_check_branch
    %21 = sbr.rel (0) target = $region13
  $region12: #{torchnet2_forward.1} parent=0 // pred_region
    _
  $region13: #{torchnet2_forward.1} parent=0 // pred_fallthru
    _
  // Predicated region
  $region14: #{torchnet2_forward.1} parent=0 // pred_check
    _
  $region15: #{torchnet2_forward.1} parent=0 // pred_check_branch
    %23 = sbr.rel (0) target = $region17
  $region16: #{torchnet2_forward.1} parent=0 // pred_region
    _
  $region17: #{torchnet2_forward.1} parent=0 // pred_fallthru
    _
  // Predicated region
  $region18: #{torchnet2_forward.1} parent=0 // pred_check
    _
  $region19: #{torchnet2_forward.1} parent=0 // pred_check_branch
    %25 = sbr.rel (0) target = $region21
  $region20: #{torchnet2_forward.1} parent=0 // pred_region
    _
  $region21: #{torchnet2_forward.1} parent=0 // pred_fallthru
    _
  // Predicated region
  $region22: #{torchnet2_forward.1} parent=0 // pred_check
    _
  $region23: #{torchnet2_forward.1} parent=0 // pred_check_branch
    %27 = sbr.rel (0) target = $region25
  $region24: #{torchnet2_forward.1} parent=0 // pred_region
    _
  $region25: #{torchnet2_forward.1} parent=0 // pred_fallthru
    _
  // Predicated region
  $region26: #{torchnet2_forward.1} parent=0 // pred_check
    _
  $region27: #{torchnet2_forward.1} parent=0 // pred_check_branch
    %29 = sbr.rel (0) target = $region29
  $region28: #{torchnet2_forward.1} parent=0 // pred_region
    _
  $region29: #{torchnet2_forward.1} parent=0 // pred_fallthru
    _
  // Predicated region
  $region30: #{torchnet2_forward.1} parent=0 // pred_check
    _
  $region31: #{torchnet2_forward.1} parent=0 // pred_check_branch
    %31 = sbr.rel (0) target = $region33
  $region32: #{torchnet2_forward.1} parent=0 // pred_region
    _
  $region33: #{torchnet2_forward.1} parent=0 // pred_fallthru
    _
  // Predicated region
  $region34: #{torchnet2_forward.1} parent=0 // pred_check
    _
  $region35: #{torchnet2_forward.1} parent=0 // pred_check_branch
    %33 = sbr.rel (0) target = $region37
  $region36: #{torchnet2_forward.1} parent=0 // pred_region
    _
  $region37: #{torchnet2_forward.1} parent=0 // pred_fallthru
    _
  // Predicated region
  $region38: #{torchnet2_forward.1} parent=0 // pred_check
    _
  $region39: #{torchnet2_forward.1} parent=0 // pred_check_branch
    %35 = sbr.rel (0) target = $region41
  $region40: #{torchnet2_forward.1} parent=0 // pred_region
    _
  $region41: #{torchnet2_forward.1} parent=0 // pred_fallthru
    _
  // Predicated region
  $region42: #{torchnet2_forward.1} parent=0 // pred_check
    _
  $region43: #{torchnet2_forward.1} parent=0 // pred_check_branch
    %37 = sbr.rel (0) target = $region45
  $region44: #{torchnet2_forward.1} parent=0 // pred_region
    _
  $region45: #{torchnet2_forward.1} parent=0 // pred_fallthru
    _
  %v38 = vld [vmem:[%s0] sm:$0xf]
  %v39 = vld [vmem:[%s1] sm:$0xf]
  %vm40 = vcmp.ge.s32.totalorder %v38, 0
  %vm41 = vcmp.ge.s32.totalorder %v39, 0
  %vm42 = vmand %vm40, %vm41
  %v43 = vsel %vm42, 1.0, 0.0
  %v44 = vld [vmem:[%s2] sm:$0xff]
  %v45 = vld [vmem:[%s2 + $0x8] sm:$0xff]
  %v46 = vld [vmem:[%s2 + $0x10] sm:$0xff]
  %v47 = vld [vmem:[%s2 + $0x18] sm:$0xff]
  %vm48 = vcmp.ge.s32.totalorder %v38, 3
  %vm49 = vcmp.le.s32.totalorder %v38, 18
  %vm50 = vmand %vm48, %vm49
  %v51 = vsel %vm50, 1.0, 0.0
  %vm52 = vcmp.ge.s32.totalorder %v38, 2
  %vm53 = vcmp.le.s32.totalorder %v38, 17
  %vm54 = vmand %vm52, %vm53
  %v55 = vsel %vm54, 1.0, 0.0
  %vm56 = vcmp.ge.s32.totalorder %v38, 1
  %vm57 = vcmp.le.s32.totalorder %v38, 16
  %vm58 = vmand %vm56, %vm57
  %v59 = vsel %vm58, 1.0, 0.0
  %vm60 = vcmp.le.s32.totalorder %v38, 15
  %vm61 = vmand %vm40, %vm60
  %v62 = vsel %vm61, 1.0, 0.0
  %vm63 = vcmp.ge.s32.totalorder %v38, 4294967295
  %vm64 = vcmp.le.s32.totalorder %v38, 14
  %vm65 = vmand %vm63, %vm64
  %v66 = vsel %vm65, 1.0, 0.0
  %vm67 = vcmp.ge.s32.totalorder %v38, 4294967294
  %vm68 = vcmp.le.s32.totalorder %v38, 13
  %vm69 = vmand %vm67, %vm68
  %v70 = vsel %vm69, 1.0, 0.0
  %vm71 = vcmp.ge.s32.totalorder %v38, 4294967293
  %vm72 = vcmp.le.s32.totalorder %v38, 12
  %vm73 = vmand %vm71, %vm72
  %v74 = vsel %vm73, 1.0, 0.0
  %vm75 = vcmp.ge.s32.totalorder %v39, 3
  %vm76 = vcmp.le.s32.totalorder %v39, 18
  %vm77 = vmand %vm75, %vm76
  %v78 = vsel %vm77, 1.0, 0.0
  %vm79 = vcmp.ge.s32.totalorder %v39, 2
  %vm80 = vcmp.le.s32.totalorder %v39, 17
  %vm81 = vmand %vm79, %vm80
  %v82 = vsel %vm81, 1.0, 0.0
  %vm83 = vcmp.ge.s32.totalorder %v39, 1
  %vm84 = vcmp.le.s32.totalorder %v39, 16
  %vm85 = vmand %vm83, %vm84
  %v86 = vsel %vm85, 1.0, 0.0
  %vm87 = vcmp.le.s32.totalorder %v39, 15
  %vm88 = vmand %vm41, %vm87
  %v89 = vsel %vm88, 1.0, 0.0
  %vm90 = vcmp.ge.s32.totalorder %v39, 4294967295
  %vm91 = vcmp.le.s32.totalorder %v39, 14
  %vm92 = vmand %vm90, %vm91
  %v93 = vsel %vm92, 1.0, 0.0
  %vm94 = vcmp.ge.s32.totalorder %v39, 4294967294
  %vm95 = vcmp.le.s32.totalorder %v39, 13
  %vm96 = vmand %vm94, %vm95
  %v97 = vsel %vm96, 1.0, 0.0
  %vm98 = vcmp.ge.s32.totalorder %v39, 4294967293
  %vm99 = vcmp.le.s32.totalorder %v39, 12
  %vm100 = vmand %vm98, %vm99
  %v101 = vsel %vm100, 1.0, 0.0
  %102 = vrot.lane.b32.xlu0 %v44, 51
  %v103 = vpop.permute.xlu0 %102
  %104 = vrot.lane.b32.xlu0 %v45, 51
  %v105 = vpop.permute.xlu0 %104
  %106 = vrot.lane.b32.xlu0 %v46, 51
  %v107 = vpop.permute.xlu0 %106
  %108 = vrot.lane.b32.xlu0 %v47, 51
  %v109 = vpop.permute.xlu0 %108
  %v110 = vlaneseq
  %v111 = vand.u32 %v110, 127
  %vm112 = vcmp.lt.s32.totalorder %v111, 51
  %v113 = vsel %vm112, %v107, %v109
  %v114 = vsel %vm112, %v105, %v107
  %v115 = vsel %vm112, %v103, %v105
  %v116 = vsel %vm112, %v109, %v103
  %v117 = vmul.f32 %v51, %v78
  %v119 = vperm.slane %v117, 0
  %v120 = vperm.slane %v117, 1
  %v121 = vperm.slane %v117, 2
  %v122 = vperm.slane %v117, 3
  %v127 = vmul.f32 %v116, %v119
  %v128 = vmul.f32 %v115, %v120
  %v129 = vmul.f32 %v114, %v121
  %v130 = vmul.f32 %v113, %v122
  %131 = vst [vmem:[#allocation2] sm:$0xff] %v127
  %132 = vst [vmem:[#allocation2 + $0x8] sm:$0xff] %v128
  %133 = vst [vmem:[#allocation2 + $0x10] sm:$0xff] %v129
  %134 = vst [vmem:[#allocation2 + $0x18] sm:$0xff] %v130
  %135 = vrot.lane.b32.xlu0 %v44, 50
  %v136 = vpop.permute.xlu0 %135
  %137 = vrot.lane.b32.xlu0 %v45, 50
  %v138 = vpop.permute.xlu0 %137
  %139 = vrot.lane.b32.xlu0 %v46, 50
  %v140 = vpop.permute.xlu0 %139
  %141 = vrot.lane.b32.xlu0 %v47, 50
  %v142 = vpop.permute.xlu0 %141
  %vm143 = vcmp.lt.s32.totalorder %v111, 50
  %v144 = vsel %vm143, %v140, %v142
  %v145 = vsel %vm143, %v138, %v140
  %v146 = vsel %vm143, %v136, %v138
  %v147 = vsel %vm143, %v142, %v136
  %v148 = vmul.f32 %v51, %v82
  %v150 = vperm.slane %v148, 0
  %v151 = vperm.slane %v148, 1
  %v152 = vperm.slane %v148, 2
  %v153 = vperm.slane %v148, 3
  %v158 = vmul.f32 %v147, %v150
  %v159 = vmul.f32 %v146, %v151
  %v160 = vmul.f32 %v145, %v152
  %v161 = vmul.f32 %v144, %v153
  %162 = vst [vmem:[#allocation2 + $0x20] sm:$0xff] %v158
  %163 = vst [vmem:[#allocation2 + $0x28] sm:$0xff] %v159
  %164 = vst [vmem:[#allocation2 + $0x30] sm:$0xff] %v160
  %165 = vst [vmem:[#allocation2 + $0x38] sm:$0xff] %v161
  %166 = vrot.lane.b32.xlu0 %v44, 49
  %v167 = vpop.permute.xlu0 %166
  %168 = vrot.lane.b32.xlu0 %v45, 49
  %v169 = vpop.permute.xlu0 %168
  %170 = vrot.lane.b32.xlu0 %v46, 49
  %v171 = vpop.permute.xlu0 %170
  %172 = vrot.lane.b32.xlu0 %v47, 49
  %v173 = vpop.permute.xlu0 %172
  %vm174 = vcmp.lt.s32.totalorder %v111, 49
  %v175 = vsel %vm174, %v171, %v173
  %v176 = vsel %vm174, %v169, %v171
  %v177 = vsel %vm174, %v167, %v169
  %v178 = vsel %vm174, %v173, %v167
  %v179 = vmul.f32 %v51, %v86
  %v181 = vperm.slane %v179, 0
  %v182 = vperm.slane %v179, 1
  %v183 = vperm.slane %v179, 2
  %v184 = vperm.slane %v179, 3
  %v189 = vmul.f32 %v178, %v181
  %v190 = vmul.f32 %v177, %v182
  %v191 = vmul.f32 %v176, %v183
  %v192 = vmul.f32 %v175, %v184
  %193 = vst [vmem:[#allocation2 + $0x40] sm:$0xff] %v189
  %194 = vst [vmem:[#allocation2 + $0x48] sm:$0xff] %v190
  %195 = vst [vmem:[#allocation2 + $0x50] sm:$0xff] %v191
  %196 = vst [vmem:[#allocation2 + $0x58] sm:$0xff] %v192
  %197 = vrot.lane.b32.xlu0 %v44, 48
  %v198 = vpop.permute.xlu0 %197
  %199 = vrot.lane.b32.xlu0 %v45, 48
  %v200 = vpop.permute.xlu0 %199
  %201 = vrot.lane.b32.xlu0 %v46, 48
  %v202 = vpop.permute.xlu0 %201
  %203 = vrot.lane.b32.xlu0 %v47, 48
  %v204 = vpop.permute.xlu0 %203
  %vm205 = vcmp.lt.s32.totalorder %v111, 48
  %v206 = vsel %vm205, %v202, %v204
  %v207 = vsel %vm205, %v200, %v202
  %v208 = vsel %vm205, %v198, %v200
  %v209 = vsel %vm205, %v204, %v198
  %v210 = vmul.f32 %v51, %v89
  %v212 = vperm.slane %v210, 0
  %v213 = vperm.slane %v210, 1
  %v214 = vperm.slane %v210, 2
  %v215 = vperm.slane %v210, 3
  %v220 = vmul.f32 %v209, %v212
  %v221 = vmul.f32 %v208, %v213
  %v222 = vmul.f32 %v207, %v214
  %v223 = vmul.f32 %v206, %v215
  %224 = vst [vmem:[#allocation2 + $0x60] sm:$0xff] %v220
  %225 = vst [vmem:[#allocation2 + $0x68] sm:$0xff] %v221
  %226 = vst [vmem:[#allocation2 + $0x70] sm:$0xff] %v222
  %227 = vst [vmem:[#allocation2 + $0x78] sm:$0xff] %v223
  %228 = vrot.lane.b32.xlu0 %v44, 47
  %v229 = vpop.permute.xlu0 %228
  %230 = vrot.lane.b32.xlu0 %v45, 47
  %v231 = vpop.permute.xlu0 %230
  %232 = vrot.lane.b32.xlu0 %v46, 47
  %v233 = vpop.permute.xlu0 %232
  %234 = vrot.lane.b32.xlu0 %v47, 47
  %v235 = vpop.permute.xlu0 %234
  %vm236 = vcmp.lt.s32.totalorder %v111, 47
  %v237 = vsel %vm236, %v233, %v235
  %v238 = vsel %vm236, %v231, %v233
  %v239 = vsel %vm236, %v229, %v231
  %v240 = vsel %vm236, %v235, %v229
  %v241 = vmul.f32 %v51, %v93
  %v243 = vperm.slane %v241, 0
  %v244 = vperm.slane %v241, 1
  %v245 = vperm.slane %v241, 2
  %v246 = vperm.slane %v241, 3
  %v251 = vmul.f32 %v240, %v243
  %v252 = vmul.f32 %v239, %v244
  %v253 = vmul.f32 %v238, %v245
  %v254 = vmul.f32 %v237, %v246
  %255 = vst [vmem:[#allocation2 + $0x80] sm:$0xff] %v251
  %256 = vst [vmem:[#allocation2 + $0x88] sm:$0xff] %v252
  %257 = vst [vmem:[#allocation2 + $0x90] sm:$0xff] %v253
  %258 = vst [vmem:[#allocation2 + $0x98] sm:$0xff] %v254
  %259 = vrot.lane.b32.xlu0 %v44, 46
  %v260 = vpop.permute.xlu0 %259
  %261 = vrot.lane.b32.xlu0 %v45, 46
  %v262 = vpop.permute.xlu0 %261
  %263 = vrot.lane.b32.xlu0 %v46, 46
  %v264 = vpop.permute.xlu0 %263
  %265 = vrot.lane.b32.xlu0 %v47, 46
  %v266 = vpop.permute.xlu0 %265
  %vm267 = vcmp.lt.s32.totalorder %v111, 46
  %v268 = vsel %vm267, %v264, %v266
  %v269 = vsel %vm267, %v262, %v264
  %v270 = vsel %vm267, %v260, %v262
  %v271 = vsel %vm267, %v266, %v260
  %v272 = vmul.f32 %v51, %v97
  %v274 = vperm.slane %v272, 0
  %v275 = vperm.slane %v272, 1
  %v276 = vperm.slane %v272, 2
  %v277 = vperm.slane %v272, 3
  %v282 = vmul.f32 %v271, %v274
  %v283 = vmul.f32 %v270, %v275
  %v284 = vmul.f32 %v269, %v276
  %v285 = vmul.f32 %v268, %v277
  %286 = vst [vmem:[#allocation2 + $0xa0] sm:$0xff] %v282
  %287 = vst [vmem:[#allocation2 + $0xa8] sm:$0xff] %v283
  %288 = vst [vmem:[#allocation2 + $0xb0] sm:$0xff] %v284
  %289 = vst [vmem:[#allocation2 + $0xb8] sm:$0xff] %v285
  %290 = vrot.lane.b32.xlu0 %v44, 45
  %v291 = vpop.permute.xlu0 %290
  %292 = vrot.lane.b32.xlu0 %v45, 45
  %v293 = vpop.permute.xlu0 %292
  %294 = vrot.lane.b32.xlu0 %v46, 45
  %v295 = vpop.permute.xlu0 %294
  %296 = vrot.lane.b32.xlu0 %v47, 45
  %v297 = vpop.permute.xlu0 %296
  %vm298 = vcmp.lt.s32.totalorder %v111, 45
  %v299 = vsel %vm298, %v295, %v297
  %v300 = vsel %vm298, %v293, %v295
  %v301 = vsel %vm298, %v291, %v293
  %v302 = vsel %vm298, %v297, %v291
  %v303 = vmul.f32 %v51, %v101
  %v305 = vperm.slane %v303, 0
  %v306 = vperm.slane %v303, 1
  %v307 = vperm.slane %v303, 2
  %v308 = vperm.slane %v303, 3
  %v313 = vmul.f32 %v302, %v305
  %v314 = vmul.f32 %v301, %v306
  %v315 = vmul.f32 %v300, %v307
  %v316 = vmul.f32 %v299, %v308
  %317 = vst [vmem:[#allocation2 + $0xc0] sm:$0xff] %v313
  %318 = vst [vmem:[#allocation2 + $0xc8] sm:$0xff] %v314
  %319 = vst [vmem:[#allocation2 + $0xd0] sm:$0xff] %v315
  %320 = vst [vmem:[#allocation2 + $0xd8] sm:$0xff] %v316
  %321 = vrot.lane.b32.xlu0 %v44, 35
  %v322 = vpop.permute.xlu0 %321
  %323 = vrot.lane.b32.xlu0 %v45, 35
  %v324 = vpop.permute.xlu0 %323
  %325 = vrot.lane.b32.xlu0 %v46, 35
  %v326 = vpop.permute.xlu0 %325
  %327 = vrot.lane.b32.xlu0 %v47, 35
  %v328 = vpop.permute.xlu0 %327
  %vm329 = vcmp.lt.s32.totalorder %v111, 35
  %v330 = vsel %vm329, %v326, %v328
  %v331 = vsel %vm329, %v324, %v326
  %v332 = vsel %vm329, %v322, %v324
  %v333 = vsel %vm329, %v328, %v322
  %v334 = vmul.f32 %v55, %v78
  %v336 = vperm.slane %v334, 0
  %v337 = vperm.slane %v334, 1
  %v338 = vperm.slane %v334, 2
  %v339 = vperm.slane %v334, 3
  %v344 = vmul.f32 %v333, %v336
  %v345 = vmul.f32 %v332, %v337
  %v346 = vmul.f32 %v331, %v338
  %v347 = vmul.f32 %v330, %v339
  %348 = vst [vmem:[#allocation2 + $0xe0] sm:$0xff] %v344
  %349 = vst [vmem:[#allocation2 + $0xe8] sm:$0xff] %v345
  %350 = vst [vmem:[#allocation2 + $0xf0] sm:$0xff] %v346
  %351 = vst [vmem:[#allocation2 + $0xf8] sm:$0xff] %v347
  %352 = vrot.lane.b32.xlu0 %v44, 34
  %v353 = vpop.permute.xlu0 %352
  %354 = vrot.lane.b32.xlu0 %v45, 34
  %v355 = vpop.permute.xlu0 %354
  %356 = vrot.lane.b32.xlu0 %v46, 34
  %v357 = vpop.permute.xlu0 %356
  %358 = vrot.lane.b32.xlu0 %v47, 34
  %v359 = vpop.permute.xlu0 %358
  %vm360 = vcmp.lt.s32.totalorder %v111, 34
  %v361 = vsel %vm360, %v357, %v359
  %v362 = vsel %vm360, %v355, %v357
  %v363 = vsel %vm360, %v353, %v355
  %v364 = vsel %vm360, %v359, %v353
  %v365 = vmul.f32 %v55, %v82
  %v367 = vperm.slane %v365, 0
  %v368 = vperm.slane %v365, 1
  %v369 = vperm.slane %v365, 2
  %v370 = vperm.slane %v365, 3
  %v375 = vmul.f32 %v364, %v367
  %v376 = vmul.f32 %v363, %v368
  %v377 = vmul.f32 %v362, %v369
  %v378 = vmul.f32 %v361, %v370
  %379 = vst [vmem:[#allocation2 + $0x100] sm:$0xff] %v375
  %380 = vst [vmem:[#allocation2 + $0x108] sm:$0xff] %v376
  %381 = vst [vmem:[#allocation2 + $0x110] sm:$0xff] %v377
  %382 = vst [vmem:[#allocation2 + $0x118] sm:$0xff] %v378
  %383 = vrot.lane.b32.xlu0 %v44, 33
  %v384 = vpop.permute.xlu0 %383
  %385 = vrot.lane.b32.xlu0 %v45, 33
  %v386 = vpop.permute.xlu0 %385
  %387 = vrot.lane.b32.xlu0 %v46, 33
  %v388 = vpop.permute.xlu0 %387
  %389 = vrot.lane.b32.xlu0 %v47, 33
  %v390 = vpop.permute.xlu0 %389
  %vm391 = vcmp.lt.s32.totalorder %v111, 33
  %v392 = vsel %vm391, %v388, %v390
  %v393 = vsel %vm391, %v386, %v388
  %v394 = vsel %vm391, %v384, %v386
  %v395 = vsel %vm391, %v390, %v384
  %v396 = vmul.f32 %v55, %v86
  %v398 = vperm.slane %v396, 0
  %v399 = vperm.slane %v396, 1
  %v400 = vperm.slane %v396, 2
  %v401 = vperm.slane %v396, 3
  %v406 = vmul.f32 %v395, %v398
  %v407 = vmul.f32 %v394, %v399
  %v408 = vmul.f32 %v393, %v400
  %v409 = vmul.f32 %v392, %v401
  %410 = vst [vmem:[#allocation2 + $0x120] sm:$0xff] %v406
  %411 = vst [vmem:[#allocation2 + $0x128] sm:$0xff] %v407
  %412 = vst [vmem:[#allocation2 + $0x130] sm:$0xff] %v408
  %413 = vst [vmem:[#allocation2 + $0x138] sm:$0xff] %v409
  %414 = vrot.lane.b32.xlu0 %v44, 32
  %v415 = vpop.permute.xlu0 %414
  %416 = vrot.lane.b32.xlu0 %v45, 32
  %v417 = vpop.permute.xlu0 %416
  %418 = vrot.lane.b32.xlu0 %v46, 32
  %v419 = vpop.permute.xlu0 %418
  %420 = vrot.lane.b32.xlu0 %v47, 32
  %v421 = vpop.permute.xlu0 %420
  %vm422 = vcmp.lt.s32.totalorder %v111, 32
  %v423 = vsel %vm422, %v419, %v421
  %v424 = vsel %vm422, %v417, %v419
  %v425 = vsel %vm422, %v415, %v417
  %v426 = vsel %vm422, %v421, %v415
  %v427 = vmul.f32 %v55, %v89
  %v429 = vperm.slane %v427, 0
  %v430 = vperm.slane %v427, 1
  %v431 = vperm.slane %v427, 2
  %v432 = vperm.slane %v427, 3
  %v437 = vmul.f32 %v426, %v429
  %v438 = vmul.f32 %v425, %v430
  %v439 = vmul.f32 %v424, %v431
  %v440 = vmul.f32 %v423, %v432
  %441 = vst [vmem:[#allocation2 + $0x140] sm:$0xff] %v437
  %442 = vst [vmem:[#allocation2 + $0x148] sm:$0xff] %v438
  %443 = vst [vmem:[#allocation2 + $0x150] sm:$0xff] %v439
  %444 = vst [vmem:[#allocation2 + $0x158] sm:$0xff] %v440
  %445 = vrot.lane.b32.xlu0 %v44, 31
  %v446 = vpop.permute.xlu0 %445
  %447 = vrot.lane.b32.xlu0 %v45, 31
  %v448 = vpop.permute.xlu0 %447
  %449 = vrot.lane.b32.xlu0 %v46, 31
  %v450 = vpop.permute.xlu0 %449
  %451 = vrot.lane.b32.xlu0 %v47, 31
  %v452 = vpop.permute.xlu0 %451
  %vm453 = vcmp.lt.s32.totalorder %v111, 31
  %v454 = vsel %vm453, %v450, %v452
  %v455 = vsel %vm453, %v448, %v450
  %v456 = vsel %vm453, %v446, %v448
  %v457 = vsel %vm453, %v452, %v446
  %v458 = vmul.f32 %v55, %v93
  %v460 = vperm.slane %v458, 0
  %v461 = vperm.slane %v458, 1
  %v462 = vperm.slane %v458, 2
  %v463 = vperm.slane %v458, 3
  %v468 = vmul.f32 %v457, %v460
  %v469 = vmul.f32 %v456, %v461
  %v470 = vmul.f32 %v455, %v462
  %v471 = vmul.f32 %v454, %v463
  %472 = vst [vmem:[#allocation2 + $0x160] sm:$0xff] %v468
  %473 = vst [vmem:[#allocation2 + $0x168] sm:$0xff] %v469
  %474 = vst [vmem:[#allocation2 + $0x170] sm:$0xff] %v470
  %475 = vst [vmem:[#allocation2 + $0x178] sm:$0xff] %v471
  %476 = vrot.lane.b32.xlu0 %v44, 30
  %v477 = vpop.permute.xlu0 %476
  %478 = vrot.lane.b32.xlu0 %v45, 30
  %v479 = vpop.permute.xlu0 %478
  %480 = vrot.lane.b32.xlu0 %v46, 30
  %v481 = vpop.permute.xlu0 %480
  %482 = vrot.lane.b32.xlu0 %v47, 30
  %v483 = vpop.permute.xlu0 %482
  %vm484 = vcmp.lt.s32.totalorder %v111, 30
  %v485 = vsel %vm484, %v481, %v483
  %v486 = vsel %vm484, %v479, %v481
  %v487 = vsel %vm484, %v477, %v479
  %v488 = vsel %vm484, %v483, %v477
  %v489 = vmul.f32 %v55, %v97
  %v491 = vperm.slane %v489, 0
  %v492 = vperm.slane %v489, 1
  %v493 = vperm.slane %v489, 2
  %v494 = vperm.slane %v489, 3
  %v499 = vmul.f32 %v488, %v491
  %v500 = vmul.f32 %v487, %v492
  %v501 = vmul.f32 %v486, %v493
  %v502 = vmul.f32 %v485, %v494
  %503 = vst [vmem:[#allocation2 + $0x180] sm:$0xff] %v499
  %504 = vst [vmem:[#allocation2 + $0x188] sm:$0xff] %v500
  %505 = vst [vmem:[#allocation2 + $0x190] sm:$0xff] %v501
  %506 = vst [vmem:[#allocation2 + $0x198] sm:$0xff] %v502
  %507 = vrot.lane.b32.xlu0 %v44, 29
  %v508 = vpop.permute.xlu0 %507
  %509 = vrot.lane.b32.xlu0 %v45, 29
  %v510 = vpop.permute.xlu0 %509
  %511 = vrot.lane.b32.xlu0 %v46, 29
  %v512 = vpop.permute.xlu0 %511
  %513 = vrot.lane.b32.xlu0 %v47, 29
  %v514 = vpop.permute.xlu0 %513
  %vm515 = vcmp.lt.s32.totalorder %v111, 29
  %v516 = vsel %vm515, %v512, %v514
  %v517 = vsel %vm515, %v510, %v512
  %v518 = vsel %vm515, %v508, %v510
  %v519 = vsel %vm515, %v514, %v508
  %v520 = vmul.f32 %v55, %v101
  %v522 = vperm.slane %v520, 0
  %v523 = vperm.slane %v520, 1
  %v524 = vperm.slane %v520, 2
  %v525 = vperm.slane %v520, 3
  %v530 = vmul.f32 %v519, %v522
  %v531 = vmul.f32 %v518, %v523
  %v532 = vmul.f32 %v517, %v524
  %v533 = vmul.f32 %v516, %v525
  %534 = vst [vmem:[#allocation2 + $0x1a0] sm:$0xff] %v530
  %535 = vst [vmem:[#allocation2 + $0x1a8] sm:$0xff] %v531
  %536 = vst [vmem:[#allocation2 + $0x1b0] sm:$0xff] %v532
  %537 = vst [vmem:[#allocation2 + $0x1b8] sm:$0xff] %v533
  %538 = vrot.lane.b32.xlu0 %v44, 19
  %v539 = vpop.permute.xlu0 %538
  %540 = vrot.lane.b32.xlu0 %v45, 19
  %v541 = vpop.permute.xlu0 %540
  %542 = vrot.lane.b32.xlu0 %v46, 19
  %v543 = vpop.permute.xlu0 %542
  %544 = vrot.lane.b32.xlu0 %v47, 19
  %v545 = vpop.permute.xlu0 %544
  %vm546 = vcmp.lt.s32.totalorder %v111, 19
  %v547 = vsel %vm546, %v543, %v545
  %v548 = vsel %vm546, %v541, %v543
  %v549 = vsel %vm546, %v539, %v541
  %v550 = vsel %vm546, %v545, %v539
  %v551 = vmul.f32 %v59, %v78
  %v553 = vperm.slane %v551, 0
  %v554 = vperm.slane %v551, 1
  %v555 = vperm.slane %v551, 2
  %v556 = vperm.slane %v551, 3
  %v561 = vmul.f32 %v550, %v553
  %v562 = vmul.f32 %v549, %v554
  %v563 = vmul.f32 %v548, %v555
  %v564 = vmul.f32 %v547, %v556
  %565 = vst [vmem:[#allocation2 + $0x1c0] sm:$0xff] %v561
  %566 = vst [vmem:[#allocation2 + $0x1c8] sm:$0xff] %v562
  %567 = vst [vmem:[#allocation2 + $0x1d0] sm:$0xff] %v563
  %568 = vst [vmem:[#allocation2 + $0x1d8] sm:$0xff] %v564
  %569 = vrot.lane.b32.xlu0 %v44, 18
  %v570 = vpop.permute.xlu0 %569
  %571 = vrot.lane.b32.xlu0 %v45, 18
  %v572 = vpop.permute.xlu0 %571
  %573 = vrot.lane.b32.xlu0 %v46, 18
  %v574 = vpop.permute.xlu0 %573
  %575 = vrot.lane.b32.xlu0 %v47, 18
  %v576 = vpop.permute.xlu0 %575
  %vm577 = vcmp.lt.s32.totalorder %v111, 18
  %v578 = vsel %vm577, %v574, %v576
  %v579 = vsel %vm577, %v572, %v574
  %v580 = vsel %vm577, %v570, %v572
  %v581 = vsel %vm577, %v576, %v570
  %v582 = vmul.f32 %v59, %v82
  %v584 = vperm.slane %v582, 0
  %v585 = vperm.slane %v582, 1
  %v586 = vperm.slane %v582, 2
  %v587 = vperm.slane %v582, 3
  %v592 = vmul.f32 %v581, %v584
  %v593 = vmul.f32 %v580, %v585
  %v594 = vmul.f32 %v579, %v586
  %v595 = vmul.f32 %v578, %v587
  %596 = vst [vmem:[#allocation2 + $0x1e0] sm:$0xff] %v592
  %597 = vst [vmem:[#allocation2 + $0x1e8] sm:$0xff] %v593
  %598 = vst [vmem:[#allocation2 + $0x1f0] sm:$0xff] %v594
  %599 = vst [vmem:[#allocation2 + $0x1f8] sm:$0xff] %v595
  %600 = vrot.lane.b32.xlu0 %v44, 17
  %v601 = vpop.permute.xlu0 %600
  %602 = vrot.lane.b32.xlu0 %v45, 17
  %v603 = vpop.permute.xlu0 %602
  %604 = vrot.lane.b32.xlu0 %v46, 17
  %v605 = vpop.permute.xlu0 %604
  %606 = vrot.lane.b32.xlu0 %v47, 17
  %v607 = vpop.permute.xlu0 %606
  %vm608 = vcmp.lt.s32.totalorder %v111, 17
  %v609 = vsel %vm608, %v605, %v607
  %v610 = vsel %vm608, %v603, %v605
  %v611 = vsel %vm608, %v601, %v603
  %v612 = vsel %vm608, %v607, %v601
  %v613 = vmul.f32 %v59, %v86
  %v615 = vperm.slane %v613, 0
  %v616 = vperm.slane %v613, 1
  %v617 = vperm.slane %v613, 2
  %v618 = vperm.slane %v613, 3
  %v623 = vmul.f32 %v612, %v615
  %v624 = vmul.f32 %v611, %v616
  %v625 = vmul.f32 %v610, %v617
  %v626 = vmul.f32 %v609, %v618
  %627 = vst [vmem:[#allocation2 + $0x200] sm:$0xff] %v623
  %628 = vst [vmem:[#allocation2 + $0x208] sm:$0xff] %v624
  %629 = vst [vmem:[#allocation2 + $0x210] sm:$0xff] %v625
  %630 = vst [vmem:[#allocation2 + $0x218] sm:$0xff] %v626
  %631 = vrot.lane.b32.xlu0 %v44, 16
  %v632 = vpop.permute.xlu0 %631
  %633 = vrot.lane.b32.xlu0 %v45, 16
  %v634 = vpop.permute.xlu0 %633
  %635 = vrot.lane.b32.xlu0 %v46, 16
  %v636 = vpop.permute.xlu0 %635
  %637 = vrot.lane.b32.xlu0 %v47, 16
  %v638 = vpop.permute.xlu0 %637
  %vm639 = vcmp.lt.s32.totalorder %v111, 16
  %v640 = vsel %vm639, %v636, %v638
  %v641 = vsel %vm639, %v634, %v636
  %v642 = vsel %vm639, %v632, %v634
  %v643 = vsel %vm639, %v638, %v632
  %v644 = vmul.f32 %v59, %v89
  %v646 = vperm.slane %v644, 0
  %v647 = vperm.slane %v644, 1
  %v648 = vperm.slane %v644, 2
  %v649 = vperm.slane %v644, 3
  %v654 = vmul.f32 %v643, %v646
  %v655 = vmul.f32 %v642, %v647
  %v656 = vmul.f32 %v641, %v648
  %v657 = vmul.f32 %v640, %v649
  %658 = vst [vmem:[#allocation2 + $0x220] sm:$0xff] %v654
  %659 = vst [vmem:[#allocation2 + $0x228] sm:$0xff] %v655
  %660 = vst [vmem:[#allocation2 + $0x230] sm:$0xff] %v656
  %661 = vst [vmem:[#allocation2 + $0x238] sm:$0xff] %v657
  %662 = vrot.lane.b32.xlu0 %v44, 15
  %v663 = vpop.permute.xlu0 %662
  %664 = vrot.lane.b32.xlu0 %v45, 15
  %v665 = vpop.permute.xlu0 %664
  %666 = vrot.lane.b32.xlu0 %v46, 15
  %v667 = vpop.permute.xlu0 %666
  %668 = vrot.lane.b32.xlu0 %v47, 15
  %v669 = vpop.permute.xlu0 %668
  %vm670 = vcmp.lt.s32.totalorder %v111, 15
  %v671 = vsel %vm670, %v667, %v669
  %v672 = vsel %vm670, %v665, %v667
  %v673 = vsel %vm670, %v663, %v665
  %v674 = vsel %vm670, %v669, %v663
  %v675 = vmul.f32 %v59, %v93
  %v677 = vperm.slane %v675, 0
  %v678 = vperm.slane %v675, 1
  %v679 = vperm.slane %v675, 2
  %v680 = vperm.slane %v675, 3
  %v685 = vmul.f32 %v674, %v677
  %v686 = vmul.f32 %v673, %v678
  %v687 = vmul.f32 %v672, %v679
  %v688 = vmul.f32 %v671, %v680
  %689 = vst [vmem:[#allocation2 + $0x240] sm:$0xff] %v685
  %690 = vst [vmem:[#allocation2 + $0x248] sm:$0xff] %v686
  %691 = vst [vmem:[#allocation2 + $0x250] sm:$0xff] %v687
  %692 = vst [vmem:[#allocation2 + $0x258] sm:$0xff] %v688
  %693 = vrot.lane.b32.xlu0 %v44, 14
  %v694 = vpop.permute.xlu0 %693
  %695 = vrot.lane.b32.xlu0 %v45, 14
  %v696 = vpop.permute.xlu0 %695
  %697 = vrot.lane.b32.xlu0 %v46, 14
  %v698 = vpop.permute.xlu0 %697
  %699 = vrot.lane.b32.xlu0 %v47, 14
  %v700 = vpop.permute.xlu0 %699
  %vm701 = vcmp.lt.s32.totalorder %v111, 14
  %v702 = vsel %vm701, %v698, %v700
  %v703 = vsel %vm701, %v696, %v698
  %v704 = vsel %vm701, %v694, %v696
  %v705 = vsel %vm701, %v700, %v694
  %v706 = vmul.f32 %v59, %v97
  %v708 = vperm.slane %v706, 0
  %v709 = vperm.slane %v706, 1
  %v710 = vperm.slane %v706, 2
  %v711 = vperm.slane %v706, 3
  %v716 = vmul.f32 %v705, %v708
  %v717 = vmul.f32 %v704, %v709
  %v718 = vmul.f32 %v703, %v710
  %v719 = vmul.f32 %v702, %v711
  %720 = vst [vmem:[#allocation2 + $0x260] sm:$0xff] %v716
  %721 = vst [vmem:[#allocation2 + $0x268] sm:$0xff] %v717
  %722 = vst [vmem:[#allocation2 + $0x270] sm:$0xff] %v718
  %723 = vst [vmem:[#allocation2 + $0x278] sm:$0xff] %v719
  %724 = vrot.lane.b32.xlu0 %v44, 13
  %v725 = vpop.permute.xlu0 %724
  %726 = vrot.lane.b32.xlu0 %v45, 13
  %v727 = vpop.permute.xlu0 %726
  %728 = vrot.lane.b32.xlu0 %v46, 13
  %v729 = vpop.permute.xlu0 %728
  %730 = vrot.lane.b32.xlu0 %v47, 13
  %v731 = vpop.permute.xlu0 %730
  %vm732 = vcmp.lt.s32.totalorder %v111, 13
  %v733 = vsel %vm732, %v729, %v731
  %v734 = vsel %vm732, %v727, %v729
  %v735 = vsel %vm732, %v725, %v727
  %v736 = vsel %vm732, %v731, %v725
  %v737 = vmul.f32 %v59, %v101
  %v739 = vperm.slane %v737, 0
  %v740 = vperm.slane %v737, 1
  %v741 = vperm.slane %v737, 2
  %v742 = vperm.slane %v737, 3
  %v747 = vmul.f32 %v736, %v739
  %v748 = vmul.f32 %v735, %v740
  %v749 = vmul.f32 %v734, %v741
  %v750 = vmul.f32 %v733, %v742
  %751 = vst [vmem:[#allocation2 + $0x280] sm:$0xff] %v747
  %752 = vst [vmem:[#allocation2 + $0x288] sm:$0xff] %v748
  %753 = vst [vmem:[#allocation2 + $0x290] sm:$0xff] %v749
  %754 = vst [vmem:[#allocation2 + $0x298] sm:$0xff] %v750
  %755 = vrot.lane.b32.xlu0 %v44, 3
  %v756 = vpop.permute.xlu0 %755
  %757 = vrot.lane.b32.xlu0 %v45, 3
  %v758 = vpop.permute.xlu0 %757
  %759 = vrot.lane.b32.xlu0 %v46, 3
  %v760 = vpop.permute.xlu0 %759
  %761 = vrot.lane.b32.xlu0 %v47, 3
  %v762 = vpop.permute.xlu0 %761
  %vm763 = vcmp.lt.s32.totalorder %v111, 3
  %v764 = vsel %vm763, %v760, %v762
  %v765 = vsel %vm763, %v758, %v760
  %v766 = vsel %vm763, %v756, %v758
  %v767 = vsel %vm763, %v762, %v756
  %v768 = vmul.f32 %v62, %v78
  %v770 = vperm.slane %v768, 0
  %v771 = vperm.slane %v768, 1
  %v772 = vperm.slane %v768, 2
  %v773 = vperm.slane %v768, 3
  %v778 = vmul.f32 %v767, %v770
  %v779 = vmul.f32 %v766, %v771
  %v780 = vmul.f32 %v765, %v772
  %v781 = vmul.f32 %v764, %v773
  %782 = vst [vmem:[#allocation2 + $0x2a0] sm:$0xff] %v778
  %783 = vst [vmem:[#allocation2 + $0x2a8] sm:$0xff] %v779
  %784 = vst [vmem:[#allocation2 + $0x2b0] sm:$0xff] %v780
  %785 = vst [vmem:[#allocation2 + $0x2b8] sm:$0xff] %v781
  %786 = vrot.lane.b32.xlu0 %v44, 2
  %v787 = vpop.permute.xlu0 %786
  %788 = vrot.lane.b32.xlu0 %v45, 2
  %v789 = vpop.permute.xlu0 %788
  %790 = vrot.lane.b32.xlu0 %v46, 2
  %v791 = vpop.permute.xlu0 %790
  %792 = vrot.lane.b32.xlu0 %v47, 2
  %v793 = vpop.permute.xlu0 %792
  %vm794 = vcmp.lt.s32.totalorder %v111, 2
  %v795 = vsel %vm794, %v791, %v793
  %v796 = vsel %vm794, %v789, %v791
  %v797 = vsel %vm794, %v787, %v789
  %v798 = vsel %vm794, %v793, %v787
  %v799 = vmul.f32 %v62, %v82
  %v801 = vperm.slane %v799, 0
  %v802 = vperm.slane %v799, 1
  %v803 = vperm.slane %v799, 2
  %v804 = vperm.slane %v799, 3
  %v809 = vmul.f32 %v798, %v801
  %v810 = vmul.f32 %v797, %v802
  %v811 = vmul.f32 %v796, %v803
  %v812 = vmul.f32 %v795, %v804
  %813 = vst [vmem:[#allocation2 + $0x2c0] sm:$0xff] %v809
  %814 = vst [vmem:[#allocation2 + $0x2c8] sm:$0xff] %v810
  %815 = vst [vmem:[#allocation2 + $0x2d0] sm:$0xff] %v811
  %816 = vst [vmem:[#allocation2 + $0x2d8] sm:$0xff] %v812
  %817 = vrot.lane.b32.xlu0 %v44, 1
  %v818 = vpop.permute.xlu0 %817
  %819 = vrot.lane.b32.xlu0 %v45, 1
  %v820 = vpop.permute.xlu0 %819
  %821 = vrot.lane.b32.xlu0 %v46, 1
  %v822 = vpop.permute.xlu0 %821
  %823 = vrot.lane.b32.xlu0 %v47, 1
  %v824 = vpop.permute.xlu0 %823
  %vm825 = vcmp.lt.s32.totalorder %v111, 1
  %v826 = vsel %vm825, %v822, %v824
  %v827 = vsel %vm825, %v820, %v822
  %v828 = vsel %vm825, %v818, %v820
  %v829 = vsel %vm825, %v824, %v818
  %v830 = vmul.f32 %v62, %v86
  %v832 = vperm.slane %v830, 0
  %v833 = vperm.slane %v830, 1
  %v834 = vperm.slane %v830, 2
  %v835 = vperm.slane %v830, 3
  %v840 = vmul.f32 %v829, %v832
  %v841 = vmul.f32 %v828, %v833
  %v842 = vmul.f32 %v827, %v834
  %v843 = vmul.f32 %v826, %v835
  %844 = vst [vmem:[#allocation2 + $0x2e0] sm:$0xff] %v840
  %845 = vst [vmem:[#allocation2 + $0x2e8] sm:$0xff] %v841
  %846 = vst [vmem:[#allocation2 + $0x2f0] sm:$0xff] %v842
  %847 = vst [vmem:[#allocation2 + $0x2f8] sm:$0xff] %v843
  %v848 = vmul.f32 %v62, %v89
  %v850 = vperm.slane %v848, 0
  %v851 = vperm.slane %v848, 1
  %v852 = vperm.slane %v848, 2
  %v853 = vperm.slane %v848, 3
  %v858 = vmul.f32 %v44, %v850
  %v859 = vmul.f32 %v45, %v851
  %v860 = vmul.f32 %v46, %v852
  %v861 = vmul.f32 %v47, %v853
  %862 = vst [vmem:[#allocation2 + $0x300] sm:$0xff] %v858
  %863 = vst [vmem:[#allocation2 + $0x308] sm:$0xff] %v859
  %864 = vst [vmem:[#allocation2 + $0x310] sm:$0xff] %v860
  %865 = vst [vmem:[#allocation2 + $0x318] sm:$0xff] %v861
  %866 = vrot.lane.b32.xlu0 %v44, 127
  %v867 = vpop.permute.xlu0 %866
  %868 = vrot.lane.b32.xlu0 %v45, 127
  %v869 = vpop.permute.xlu0 %868
  %870 = vrot.lane.b32.xlu0 %v46, 127
  %v871 = vpop.permute.xlu0 %870
  %872 = vrot.lane.b32.xlu0 %v47, 127
  %v873 = vpop.permute.xlu0 %872
  %vm874 = vcmp.lt.s32.totalorder %v111, 127
  %v875 = vsel %vm874, %v871, %v873
  %v876 = vsel %vm874, %v869, %v871
  %v877 = vsel %vm874, %v867, %v869
  %v878 = vsel %vm874, %v873, %v867
  %v879 = vmul.f32 %v62, %v93
  %v881 = vperm.slane %v879, 0
  %v882 = vperm.slane %v879, 1
  %v883 = vperm.slane %v879, 2
  %v884 = vperm.slane %v879, 3
  %v889 = vmul.f32 %v877, %v881
  %v890 = vmul.f32 %v876, %v882
  %v891 = vmul.f32 %v875, %v883
  %v892 = vmul.f32 %v878, %v884
  %893 = vst [vmem:[#allocation2 + $0x320] sm:$0xff] %v889
  %894 = vst [vmem:[#allocation2 + $0x328] sm:$0xff] %v890
  %895 = vst [vmem:[#allocation2 + $0x330] sm:$0xff] %v891
  %896 = vst [vmem:[#allocation2 + $0x338] sm:$0xff] %v892
  %897 = vrot.lane.b32.xlu0 %v44, 126
  %v898 = vpop.permute.xlu0 %897
  %899 = vrot.lane.b32.xlu0 %v45, 126
  %v900 = vpop.permute.xlu0 %899
  %901 = vrot.lane.b32.xlu0 %v46, 126
  %v902 = vpop.permute.xlu0 %901
  %903 = vrot.lane.b32.xlu0 %v47, 126
  %v904 = vpop.permute.xlu0 %903
  %vm905 = vcmp.lt.s32.totalorder %v111, 126
  %v906 = vsel %vm905, %v902, %v904
  %v907 = vsel %vm905, %v900, %v902
  %v908 = vsel %vm905, %v898, %v900
  %v909 = vsel %vm905, %v904, %v898
  %v910 = vmul.f32 %v62, %v97
  %v912 = vperm.slane %v910, 0
  %v913 = vperm.slane %v910, 1
  %v914 = vperm.slane %v910, 2
  %v915 = vperm.slane %v910, 3
  %v920 = vmul.f32 %v908, %v912
  %v921 = vmul.f32 %v907, %v913
  %v922 = vmul.f32 %v906, %v914
  %v923 = vmul.f32 %v909, %v915
  %924 = vst [vmem:[#allocation2 + $0x340] sm:$0xff] %v920
  %925 = vst [vmem:[#allocation2 + $0x348] sm:$0xff] %v921
  %926 = vst [vmem:[#allocation2 + $0x350] sm:$0xff] %v922
  %927 = vst [vmem:[#allocation2 + $0x358] sm:$0xff] %v923
  %928 = vrot.lane.b32.xlu0 %v44, 125
  %v929 = vpop.permute.xlu0 %928
  %930 = vrot.lane.b32.xlu0 %v45, 125
  %v931 = vpop.permute.xlu0 %930
  %932 = vrot.lane.b32.xlu0 %v46, 125
  %v933 = vpop.permute.xlu0 %932
  %934 = vrot.lane.b32.xlu0 %v47, 125
  %v935 = vpop.permute.xlu0 %934
  %vm936 = vcmp.lt.s32.totalorder %v111, 125
  %v937 = vsel %vm936, %v933, %v935
  %v938 = vsel %vm936, %v931, %v933
  %v939 = vsel %vm936, %v929, %v931
  %v940 = vsel %vm936, %v935, %v929
  %v941 = vmul.f32 %v62, %v101
  %v943 = vperm.slane %v941, 0
  %v944 = vperm.slane %v941, 1
  %v945 = vperm.slane %v941, 2
  %v946 = vperm.slane %v941, 3
  %v951 = vmul.f32 %v939, %v943
  %v952 = vmul.f32 %v938, %v944
  %v953 = vmul.f32 %v937, %v945
  %v954 = vmul.f32 %v940, %v946
  %955 = vst [vmem:[#allocation2 + $0x360] sm:$0xff] %v951
  %956 = vst [vmem:[#allocation2 + $0x368] sm:$0xff] %v952
  %957 = vst [vmem:[#allocation2 + $0x370] sm:$0xff] %v953
  %958 = vst [vmem:[#allocation2 + $0x378] sm:$0xff] %v954
  %959 = vrot.lane.b32.xlu0 %v44, 115
  %v960 = vpop.permute.xlu0 %959
  %961 = vrot.lane.b32.xlu0 %v45, 115
  %v962 = vpop.permute.xlu0 %961
  %963 = vrot.lane.b32.xlu0 %v46, 115
  %v964 = vpop.permute.xlu0 %963
  %965 = vrot.lane.b32.xlu0 %v47, 115
  %v966 = vpop.permute.xlu0 %965
  %vm967 = vcmp.lt.s32.totalorder %v111, 115
  %v968 = vsel %vm967, %v964, %v966
  %v969 = vsel %vm967, %v962, %v964
  %v970 = vsel %vm967, %v960, %v962
  %v971 = vsel %vm967, %v966, %v960
  %v972 = vmul.f32 %v66, %v78
  %v974 = vperm.slane %v972, 0
  %v975 = vperm.slane %v972, 1
  %v976 = vperm.slane %v972, 2
  %v977 = vperm.slane %v972, 3
  %v982 = vmul.f32 %v970, %v974
  %v983 = vmul.f32 %v969, %v975
  %v984 = vmul.f32 %v968, %v976
  %v985 = vmul.f32 %v971, %v977
  %986 = vst [vmem:[#allocation2 + $0x380] sm:$0xff] %v982
  %987 = vst [vmem:[#allocation2 + $0x388] sm:$0xff] %v983
  %988 = vst [vmem:[#allocation2 + $0x390] sm:$0xff] %v984
  %989 = vst [vmem:[#allocation2 + $0x398] sm:$0xff] %v985
  %990 = vrot.lane.b32.xlu0 %v44, 114
  %v991 = vpop.permute.xlu0 %990
  %992 = vrot.lane.b32.xlu0 %v45, 114
  %v993 = vpop.permute.xlu0 %992
  %994 = vrot.lane.b32.xlu0 %v46, 114
  %v995 = vpop.permute.xlu0 %994
  %996 = vrot.lane.b32.xlu0 %v47, 114
  %v997 = vpop.permute.xlu0 %996
  %vm998 = vcmp.lt.s32.totalorder %v111, 114
  %v999 = vsel %vm998, %v995, %v997
  %v1000 = vsel %vm998, %v993, %v995
  %v1001 = vsel %vm998, %v991, %v993
  %v1002 = vsel %vm998, %v997, %v991
  %v1003 = vmul.f32 %v66, %v82
  %v1005 = vperm.slane %v1003, 0
  %v1006 = vperm.slane %v1003, 1
  %v1007 = vperm.slane %v1003, 2
  %v1008 = vperm.slane %v1003, 3
  %v1013 = vmul.f32 %v1001, %v1005
  %v1014 = vmul.f32 %v1000, %v1006
  %v1015 = vmul.f32 %v999, %v1007
  %v1016 = vmul.f32 %v1002, %v1008
  %1017 = vst [vmem:[#allocation2 + $0x3a0] sm:$0xff] %v1013
  %1018 = vst [vmem:[#allocation2 + $0x3a8] sm:$0xff] %v1014
  %1019 = vst [vmem:[#allocation2 + $0x3b0] sm:$0xff] %v1015
  %1020 = vst [vmem:[#allocation2 + $0x3b8] sm:$0xff] %v1016
  %1021 = vrot.lane.b32.xlu0 %v44, 113
  %v1022 = vpop.permute.xlu0 %1021
  %1023 = vrot.lane.b32.xlu0 %v45, 113
  %v1024 = vpop.permute.xlu0 %1023
  %1025 = vrot.lane.b32.xlu0 %v46, 113
  %v1026 = vpop.permute.xlu0 %1025
  %1027 = vrot.lane.b32.xlu0 %v47, 113
  %v1028 = vpop.permute.xlu0 %1027
  %vm1029 = vcmp.lt.s32.totalorder %v111, 113
  %v1030 = vsel %vm1029, %v1026, %v1028
  %v1031 = vsel %vm1029, %v1024, %v1026
  %v1032 = vsel %vm1029, %v1022, %v1024
  %v1033 = vsel %vm1029, %v1028, %v1022
  %v1034 = vmul.f32 %v66, %v86
  %v1036 = vperm.slane %v1034, 0
  %v1037 = vperm.slane %v1034, 1
  %v1038 = vperm.slane %v1034, 2
  %v1039 = vperm.slane %v1034, 3
  %v1044 = vmul.f32 %v1032, %v1036
  %v1045 = vmul.f32 %v1031, %v1037
  %v1046 = vmul.f32 %v1030, %v1038
  %v1047 = vmul.f32 %v1033, %v1039
  %1048 = vst [vmem:[#allocation2 + $0x3c0] sm:$0xff] %v1044
  %1049 = vst [vmem:[#allocation2 + $0x3c8] sm:$0xff] %v1045
  %1050 = vst [vmem:[#allocation2 + $0x3d0] sm:$0xff] %v1046
  %1051 = vst [vmem:[#allocation2 + $0x3d8] sm:$0xff] %v1047
  %1052 = vrot.lane.b32.xlu0 %v44, 112
  %v1053 = vpop.permute.xlu0 %1052
  %1054 = vrot.lane.b32.xlu0 %v45, 112
  %v1055 = vpop.permute.xlu0 %1054
  %1056 = vrot.lane.b32.xlu0 %v46, 112
  %v1057 = vpop.permute.xlu0 %1056
  %1058 = vrot.lane.b32.xlu0 %v47, 112
  %v1059 = vpop.permute.xlu0 %1058
  %vm1060 = vcmp.lt.s32.totalorder %v111, 112
  %v1061 = vsel %vm1060, %v1057, %v1059
  %v1062 = vsel %vm1060, %v1055, %v1057
  %v1063 = vsel %vm1060, %v1053, %v1055
  %v1064 = vsel %vm1060, %v1059, %v1053
  %v1065 = vmul.f32 %v66, %v89
  %v1067 = vperm.slane %v1065, 0
  %v1068 = vperm.slane %v1065, 1
  %v1069 = vperm.slane %v1065, 2
  %v1070 = vperm.slane %v1065, 3
  %v1075 = vmul.f32 %v1063, %v1067
  %v1076 = vmul.f32 %v1062, %v1068
  %v1077 = vmul.f32 %v1061, %v1069
  %v1078 = vmul.f32 %v1064, %v1070
  %1079 = vst [vmem:[#allocation2 + $0x3e0] sm:$0xff] %v1075
  %1080 = vst [vmem:[#allocation2 + $0x3e8] sm:$0xff] %v1076
  %1081 = vst [vmem:[#allocation2 + $0x3f0] sm:$0xff] %v1077
  %1082 = vst [vmem:[#allocation2 + $0x3f8] sm:$0xff] %v1078
  %1083 = vrot.lane.b32.xlu0 %v44, 111
  %v1084 = vpop.permute.xlu0 %1083
  %1085 = vrot.lane.b32.xlu0 %v45, 111
  %v1086 = vpop.permute.xlu0 %1085
  %1087 = vrot.lane.b32.xlu0 %v46, 111
  %v1088 = vpop.permute.xlu0 %1087
  %1089 = vrot.lane.b32.xlu0 %v47, 111
  %v1090 = vpop.permute.xlu0 %1089
  %vm1091 = vcmp.lt.s32.totalorder %v111, 111
  %v1092 = vsel %vm1091, %v1088, %v1090
  %v1093 = vsel %vm1091, %v1086, %v1088
  %v1094 = vsel %vm1091, %v1084, %v1086
  %v1095 = vsel %vm1091, %v1090, %v1084
  %v1096 = vmul.f32 %v66, %v93
  %v1098 = vperm.slane %v1096, 0
  %v1099 = vperm.slane %v1096, 1
  %v1100 = vperm.slane %v1096, 2
  %v1101 = vperm.slane %v1096, 3
  %v1106 = vmul.f32 %v1094, %v1098
  %v1107 = vmul.f32 %v1093, %v1099
  %v1108 = vmul.f32 %v1092, %v1100
  %v1109 = vmul.f32 %v1095, %v1101
  %1110 = vst [vmem:[#allocation2 + $0x400] sm:$0xff] %v1106
  %1111 = vst [vmem:[#allocation2 + $0x408] sm:$0xff] %v1107
  %1112 = vst [vmem:[#allocation2 + $0x410] sm:$0xff] %v1108
  %1113 = vst [vmem:[#allocation2 + $0x418] sm:$0xff] %v1109
  %1114 = vrot.lane.b32.xlu0 %v44, 110
  %v1115 = vpop.permute.xlu0 %1114
  %1116 = vrot.lane.b32.xlu0 %v45, 110
  %v1117 = vpop.permute.xlu0 %1116
  %1118 = vrot.lane.b32.xlu0 %v46, 110
  %v1119 = vpop.permute.xlu0 %1118
  %1120 = vrot.lane.b32.xlu0 %v47, 110
  %v1121 = vpop.permute.xlu0 %1120
  %vm1122 = vcmp.lt.s32.totalorder %v111, 110
  %v1123 = vsel %vm1122, %v1119, %v1121
  %v1124 = vsel %vm1122, %v1117, %v1119
  %v1125 = vsel %vm1122, %v1115, %v1117
  %v1126 = vsel %vm1122, %v1121, %v1115
  %v1127 = vmul.f32 %v66, %v97
  %v1129 = vperm.slane %v1127, 0
  %v1130 = vperm.slane %v1127, 1
  %v1131 = vperm.slane %v1127, 2
  %v1132 = vperm.slane %v1127, 3
  %v1137 = vmul.f32 %v1125, %v1129
  %v1138 = vmul.f32 %v1124, %v1130
  %v1139 = vmul.f32 %v1123, %v1131
  %v1140 = vmul.f32 %v1126, %v1132
  %1141 = vst [vmem:[#allocation2 + $0x420] sm:$0xff] %v1137
  %1142 = vst [vmem:[#allocation2 + $0x428] sm:$0xff] %v1138
  %1143 = vst [vmem:[#allocation2 + $0x430] sm:$0xff] %v1139
  %1144 = vst [vmem:[#allocation2 + $0x438] sm:$0xff] %v1140
  %1145 = vrot.lane.b32.xlu0 %v44, 109
  %v1146 = vpop.permute.xlu0 %1145
  %1147 = vrot.lane.b32.xlu0 %v45, 109
  %v1148 = vpop.permute.xlu0 %1147
  %1149 = vrot.lane.b32.xlu0 %v46, 109
  %v1150 = vpop.permute.xlu0 %1149
  %1151 = vrot.lane.b32.xlu0 %v47, 109
  %v1152 = vpop.permute.xlu0 %1151
  %vm1153 = vcmp.lt.s32.totalorder %v111, 109
  %v1154 = vsel %vm1153, %v1150, %v1152
  %v1155 = vsel %vm1153, %v1148, %v1150
  %v1156 = vsel %vm1153, %v1146, %v1148
  %v1157 = vsel %vm1153, %v1152, %v1146
  %v1158 = vmul.f32 %v66, %v101
  %v1160 = vperm.slane %v1158, 0
  %v1161 = vperm.slane %v1158, 1
  %v1162 = vperm.slane %v1158, 2
  %v1163 = vperm.slane %v1158, 3
  %v1168 = vmul.f32 %v1156, %v1160
  %v1169 = vmul.f32 %v1155, %v1161
  %v1170 = vmul.f32 %v1154, %v1162
  %v1171 = vmul.f32 %v1157, %v1163
  %1172 = vst [vmem:[#allocation2 + $0x440] sm:$0xff] %v1168
  %1173 = vst [vmem:[#allocation2 + $0x448] sm:$0xff] %v1169
  %1174 = vst [vmem:[#allocation2 + $0x450] sm:$0xff] %v1170
  %1175 = vst [vmem:[#allocation2 + $0x458] sm:$0xff] %v1171
  %1176 = vrot.lane.b32.xlu0 %v44, 99
  %v1177 = vpop.permute.xlu0 %1176
  %1178 = vrot.lane.b32.xlu0 %v45, 99
  %v1179 = vpop.permute.xlu0 %1178
  %1180 = vrot.lane.b32.xlu0 %v46, 99
  %v1181 = vpop.permute.xlu0 %1180
  %1182 = vrot.lane.b32.xlu0 %v47, 99
  %v1183 = vpop.permute.xlu0 %1182
  %vm1184 = vcmp.lt.s32.totalorder %v111, 99
  %v1185 = vsel %vm1184, %v1181, %v1183
  %v1186 = vsel %vm1184, %v1179, %v1181
  %v1187 = vsel %vm1184, %v1177, %v1179
  %v1188 = vsel %vm1184, %v1183, %v1177
  %v1189 = vmul.f32 %v70, %v78
  %v1191 = vperm.slane %v1189, 0
  %v1192 = vperm.slane %v1189, 1
  %v1193 = vperm.slane %v1189, 2
  %v1194 = vperm.slane %v1189, 3
  %v1199 = vmul.f32 %v1187, %v1191
  %v1200 = vmul.f32 %v1186, %v1192
  %v1201 = vmul.f32 %v1185, %v1193
  %v1202 = vmul.f32 %v1188, %v1194
  %1203 = vst [vmem:[#allocation2 + $0x460] sm:$0xff] %v1199
  %1204 = vst [vmem:[#allocation2 + $0x468] sm:$0xff] %v1200
  %1205 = vst [vmem:[#allocation2 + $0x470] sm:$0xff] %v1201
  %1206 = vst [vmem:[#allocation2 + $0x478] sm:$0xff] %v1202
  %1207 = vrot.lane.b32.xlu0 %v44, 98
  %v1208 = vpop.permute.xlu0 %1207
  %1209 = vrot.lane.b32.xlu0 %v45, 98
  %v1210 = vpop.permute.xlu0 %1209
  %1211 = vrot.lane.b32.xlu0 %v46, 98
  %v1212 = vpop.permute.xlu0 %1211
  %1213 = vrot.lane.b32.xlu0 %v47, 98
  %v1214 = vpop.permute.xlu0 %1213
  %vm1215 = vcmp.lt.s32.totalorder %v111, 98
  %v1216 = vsel %vm1215, %v1212, %v1214
  %v1217 = vsel %vm1215, %v1210, %v1212
  %v1218 = vsel %vm1215, %v1208, %v1210
  %v1219 = vsel %vm1215, %v1214, %v1208
  %v1220 = vmul.f32 %v70, %v82
  %v1222 = vperm.slane %v1220, 0
  %v1223 = vperm.slane %v1220, 1
  %v1224 = vperm.slane %v1220, 2
  %v1225 = vperm.slane %v1220, 3
  %v1230 = vmul.f32 %v1218, %v1222
  %v1231 = vmul.f32 %v1217, %v1223
  %v1232 = vmul.f32 %v1216, %v1224
  %v1233 = vmul.f32 %v1219, %v1225
  %1234 = vst [vmem:[#allocation2 + $0x480] sm:$0xff] %v1230
  %1235 = vst [vmem:[#allocation2 + $0x488] sm:$0xff] %v1231
  %1236 = vst [vmem:[#allocation2 + $0x490] sm:$0xff] %v1232
  %1237 = vst [vmem:[#allocation2 + $0x498] sm:$0xff] %v1233
  %1238 = vrot.lane.b32.xlu0 %v44, 97
  %v1239 = vpop.permute.xlu0 %1238
  %1240 = vrot.lane.b32.xlu0 %v45, 97
  %v1241 = vpop.permute.xlu0 %1240
  %1242 = vrot.lane.b32.xlu0 %v46, 97
  %v1243 = vpop.permute.xlu0 %1242
  %1244 = vrot.lane.b32.xlu0 %v47, 97
  %v1245 = vpop.permute.xlu0 %1244
  %vm1246 = vcmp.lt.s32.totalorder %v111, 97
  %v1247 = vsel %vm1246, %v1243, %v1245
  %v1248 = vsel %vm1246, %v1241, %v1243
  %v1249 = vsel %vm1246, %v1239, %v1241
  %v1250 = vsel %vm1246, %v1245, %v1239
  %v1251 = vmul.f32 %v70, %v86
  %v1253 = vperm.slane %v1251, 0
  %v1254 = vperm.slane %v1251, 1
  %v1255 = vperm.slane %v1251, 2
  %v1256 = vperm.slane %v1251, 3
  %v1261 = vmul.f32 %v1249, %v1253
  %v1262 = vmul.f32 %v1248, %v1254
  %v1263 = vmul.f32 %v1247, %v1255
  %v1264 = vmul.f32 %v1250, %v1256
  %1265 = vst [vmem:[#allocation2 + $0x4a0] sm:$0xff] %v1261
  %1266 = vst [vmem:[#allocation2 + $0x4a8] sm:$0xff] %v1262
  %1267 = vst [vmem:[#allocation2 + $0x4b0] sm:$0xff] %v1263
  %1268 = vst [vmem:[#allocation2 + $0x4b8] sm:$0xff] %v1264
  %1269 = vrot.lane.b32.xlu0 %v44, 96
  %v1270 = vpop.permute.xlu0 %1269
  %1271 = vrot.lane.b32.xlu0 %v45, 96
  %v1272 = vpop.permute.xlu0 %1271
  %1273 = vrot.lane.b32.xlu0 %v46, 96
  %v1274 = vpop.permute.xlu0 %1273
  %1275 = vrot.lane.b32.xlu0 %v47, 96
  %v1276 = vpop.permute.xlu0 %1275
  %vm1277 = vcmp.lt.s32.totalorder %v111, 96
  %v1278 = vsel %vm1277, %v1274, %v1276
  %v1279 = vsel %vm1277, %v1272, %v1274
  %v1280 = vsel %vm1277, %v1270, %v1272
  %v1281 = vsel %vm1277, %v1276, %v1270
  %v1282 = vmul.f32 %v70, %v89
  %v1284 = vperm.slane %v1282, 0
  %v1285 = vperm.slane %v1282, 1
  %v1286 = vperm.slane %v1282, 2
  %v1287 = vperm.slane %v1282, 3
  %v1292 = vmul.f32 %v1280, %v1284
  %v1293 = vmul.f32 %v1279, %v1285
  %v1294 = vmul.f32 %v1278, %v1286
  %v1295 = vmul.f32 %v1281, %v1287
  %1296 = vst [vmem:[#allocation2 + $0x4c0] sm:$0xff] %v1292
  %1297 = vst [vmem:[#allocation2 + $0x4c8] sm:$0xff] %v1293
  %1298 = vst [vmem:[#allocation2 + $0x4d0] sm:$0xff] %v1294
  %1299 = vst [vmem:[#allocation2 + $0x4d8] sm:$0xff] %v1295
  %1300 = vrot.lane.b32.xlu0 %v44, 95
  %v1301 = vpop.permute.xlu0 %1300
  %1302 = vrot.lane.b32.xlu0 %v45, 95
  %v1303 = vpop.permute.xlu0 %1302
  %1304 = vrot.lane.b32.xlu0 %v46, 95
  %v1305 = vpop.permute.xlu0 %1304
  %1306 = vrot.lane.b32.xlu0 %v47, 95
  %v1307 = vpop.permute.xlu0 %1306
  %vm1308 = vcmp.lt.s32.totalorder %v111, 95
  %v1309 = vsel %vm1308, %v1305, %v1307
  %v1310 = vsel %vm1308, %v1303, %v1305
  %v1311 = vsel %vm1308, %v1301, %v1303
  %v1312 = vsel %vm1308, %v1307, %v1301
  %v1313 = vmul.f32 %v70, %v93
  %v1315 = vperm.slane %v1313, 0
  %v1316 = vperm.slane %v1313, 1
  %v1317 = vperm.slane %v1313, 2
  %v1318 = vperm.slane %v1313, 3
  %v1323 = vmul.f32 %v1311, %v1315
  %v1324 = vmul.f32 %v1310, %v1316
  %v1325 = vmul.f32 %v1309, %v1317
  %v1326 = vmul.f32 %v1312, %v1318
  %1327 = vst [vmem:[#allocation2 + $0x4e0] sm:$0xff] %v1323
  %1328 = vst [vmem:[#allocation2 + $0x4e8] sm:$0xff] %v1324
  %1329 = vst [vmem:[#allocation2 + $0x4f0] sm:$0xff] %v1325
  %1330 = vst [vmem:[#allocation2 + $0x4f8] sm:$0xff] %v1326
  %1331 = vrot.lane.b32.xlu0 %v44, 94
  %v1332 = vpop.permute.xlu0 %1331
  %1333 = vrot.lane.b32.xlu0 %v45, 94
  %v1334 = vpop.permute.xlu0 %1333
  %1335 = vrot.lane.b32.xlu0 %v46, 94
  %v1336 = vpop.permute.xlu0 %1335
  %1337 = vrot.lane.b32.xlu0 %v47, 94
  %v1338 = vpop.permute.xlu0 %1337
  %vm1339 = vcmp.lt.s32.totalorder %v111, 94
  %v1340 = vsel %vm1339, %v1336, %v1338
  %v1341 = vsel %vm1339, %v1334, %v1336
  %v1342 = vsel %vm1339, %v1332, %v1334
  %v1343 = vsel %vm1339, %v1338, %v1332
  %v1344 = vmul.f32 %v70, %v97
  %v1346 = vperm.slane %v1344, 0
  %v1347 = vperm.slane %v1344, 1
  %v1348 = vperm.slane %v1344, 2
  %v1349 = vperm.slane %v1344, 3
  %v1354 = vmul.f32 %v1342, %v1346
  %v1355 = vmul.f32 %v1341, %v1347
  %v1356 = vmul.f32 %v1340, %v1348
  %v1357 = vmul.f32 %v1343, %v1349
  %1358 = vst [vmem:[#allocation2 + $0x500] sm:$0xff] %v1354
  %1359 = vst [vmem:[#allocation2 + $0x508] sm:$0xff] %v1355
  %1360 = vst [vmem:[#allocation2 + $0x510] sm:$0xff] %v1356
  %1361 = vst [vmem:[#allocation2 + $0x518] sm:$0xff] %v1357
  %1362 = vrot.lane.b32.xlu0 %v44, 93
  %v1363 = vpop.permute.xlu0 %1362
  %1364 = vrot.lane.b32.xlu0 %v45, 93
  %v1365 = vpop.permute.xlu0 %1364
  %1366 = vrot.lane.b32.xlu0 %v46, 93
  %v1367 = vpop.permute.xlu0 %1366
  %1368 = vrot.lane.b32.xlu0 %v47, 93
  %v1369 = vpop.permute.xlu0 %1368
  %vm1370 = vcmp.lt.s32.totalorder %v111, 93
  %v1371 = vsel %vm1370, %v1367, %v1369
  %v1372 = vsel %vm1370, %v1365, %v1367
  %v1373 = vsel %vm1370, %v1363, %v1365
  %v1374 = vsel %vm1370, %v1369, %v1363
  %v1375 = vmul.f32 %v70, %v101
  %v1377 = vperm.slane %v1375, 0
  %v1378 = vperm.slane %v1375, 1
  %v1379 = vperm.slane %v1375, 2
  %v1380 = vperm.slane %v1375, 3
  %v1385 = vmul.f32 %v1373, %v1377
  %v1386 = vmul.f32 %v1372, %v1378
  %v1387 = vmul.f32 %v1371, %v1379
  %v1388 = vmul.f32 %v1374, %v1380
  %1389 = vst [vmem:[#allocation2 + $0x520] sm:$0xff] %v1385
  %1390 = vst [vmem:[#allocation2 + $0x528] sm:$0xff] %v1386
  %1391 = vst [vmem:[#allocation2 + $0x530] sm:$0xff] %v1387
  %1392 = vst [vmem:[#allocation2 + $0x538] sm:$0xff] %v1388
  %1393 = vrot.lane.b32.xlu0 %v44, 83
  %v1394 = vpop.permute.xlu0 %1393
  %1395 = vrot.lane.b32.xlu0 %v45, 83
  %v1396 = vpop.permute.xlu0 %1395
  %1397 = vrot.lane.b32.xlu0 %v46, 83
  %v1398 = vpop.permute.xlu0 %1397
  %1399 = vrot.lane.b32.xlu0 %v47, 83
  %v1400 = vpop.permute.xlu0 %1399
  %vm1401 = vcmp.lt.s32.totalorder %v111, 83
  %v1402 = vsel %vm1401, %v1398, %v1400
  %v1403 = vsel %vm1401, %v1396, %v1398
  %v1404 = vsel %vm1401, %v1394, %v1396
  %v1405 = vsel %vm1401, %v1400, %v1394
  %v1406 = vmul.f32 %v74, %v78
  %v1408 = vperm.slane %v1406, 0
  %v1409 = vperm.slane %v1406, 1
  %v1410 = vperm.slane %v1406, 2
  %v1411 = vperm.slane %v1406, 3
  %v1416 = vmul.f32 %v1404, %v1408
  %v1417 = vmul.f32 %v1403, %v1409
  %v1418 = vmul.f32 %v1402, %v1410
  %v1419 = vmul.f32 %v1405, %v1411
  %1420 = vst [vmem:[#allocation2 + $0x540] sm:$0xff] %v1416
  %1421 = vst [vmem:[#allocation2 + $0x548] sm:$0xff] %v1417
  %1422 = vst [vmem:[#allocation2 + $0x550] sm:$0xff] %v1418
  %1423 = vst [vmem:[#allocation2 + $0x558] sm:$0xff] %v1419
  %1424 = vrot.lane.b32.xlu0 %v44, 82
  %v1425 = vpop.permute.xlu0 %1424
  %1426 = vrot.lane.b32.xlu0 %v45, 82
  %v1427 = vpop.permute.xlu0 %1426
  %1428 = vrot.lane.b32.xlu0 %v46, 82
  %v1429 = vpop.permute.xlu0 %1428
  %1430 = vrot.lane.b32.xlu0 %v47, 82
  %v1431 = vpop.permute.xlu0 %1430
  %vm1432 = vcmp.lt.s32.totalorder %v111, 82
  %v1433 = vsel %vm1432, %v1429, %v1431
  %v1434 = vsel %vm1432, %v1427, %v1429
  %v1435 = vsel %vm1432, %v1425, %v1427
  %v1436 = vsel %vm1432, %v1431, %v1425
  %v1437 = vmul.f32 %v74, %v82
  %v1439 = vperm.slane %v1437, 0
  %v1440 = vperm.slane %v1437, 1
  %v1441 = vperm.slane %v1437, 2
  %v1442 = vperm.slane %v1437, 3
  %v1447 = vmul.f32 %v1435, %v1439
  %v1448 = vmul.f32 %v1434, %v1440
  %v1449 = vmul.f32 %v1433, %v1441
  %v1450 = vmul.f32 %v1436, %v1442
  %1451 = vst [vmem:[#allocation2 + $0x560] sm:$0xff] %v1447
  %1452 = vst [vmem:[#allocation2 + $0x568] sm:$0xff] %v1448
  %1453 = vst [vmem:[#allocation2 + $0x570] sm:$0xff] %v1449
  %1454 = vst [vmem:[#allocation2 + $0x578] sm:$0xff] %v1450
  %1455 = vrot.lane.b32.xlu0 %v44, 81
  %v1456 = vpop.permute.xlu0 %1455
  %1457 = vrot.lane.b32.xlu0 %v45, 81
  %v1458 = vpop.permute.xlu0 %1457
  %1459 = vrot.lane.b32.xlu0 %v46, 81
  %v1460 = vpop.permute.xlu0 %1459
  %1461 = vrot.lane.b32.xlu0 %v47, 81
  %v1462 = vpop.permute.xlu0 %1461
  %vm1463 = vcmp.lt.s32.totalorder %v111, 81
  %v1464 = vsel %vm1463, %v1460, %v1462
  %v1465 = vsel %vm1463, %v1458, %v1460
  %v1466 = vsel %vm1463, %v1456, %v1458
  %v1467 = vsel %vm1463, %v1462, %v1456
  %v1468 = vmul.f32 %v74, %v86
  %v1470 = vperm.slane %v1468, 0
  %v1471 = vperm.slane %v1468, 1
  %v1472 = vperm.slane %v1468, 2
  %v1473 = vperm.slane %v1468, 3
  %v1478 = vmul.f32 %v1466, %v1470
  %v1479 = vmul.f32 %v1465, %v1471
  %v1480 = vmul.f32 %v1464, %v1472
  %v1481 = vmul.f32 %v1467, %v1473
  %1482 = vst [vmem:[#allocation2 + $0x580] sm:$0xff] %v1478
  %1483 = vst [vmem:[#allocation2 + $0x588] sm:$0xff] %v1479
  %1484 = vst [vmem:[#allocation2 + $0x590] sm:$0xff] %v1480
  %1485 = vst [vmem:[#allocation2 + $0x598] sm:$0xff] %v1481
  %1486 = vrot.lane.b32.xlu0 %v44, 80
  %v1487 = vpop.permute.xlu0 %1486
  %1488 = vrot.lane.b32.xlu0 %v45, 80
  %v1489 = vpop.permute.xlu0 %1488
  %1490 = vrot.lane.b32.xlu0 %v46, 80
  %v1491 = vpop.permute.xlu0 %1490
  %1492 = vrot.lane.b32.xlu0 %v47, 80
  %v1493 = vpop.permute.xlu0 %1492
  %vm1494 = vcmp.lt.s32.totalorder %v111, 80
  %v1495 = vsel %vm1494, %v1491, %v1493
  %v1496 = vsel %vm1494, %v1489, %v1491
  %v1497 = vsel %vm1494, %v1487, %v1489
  %v1498 = vsel %vm1494, %v1493, %v1487
  %v1499 = vmul.f32 %v74, %v89
  %v1501 = vperm.slane %v1499, 0
  %v1502 = vperm.slane %v1499, 1
  %v1503 = vperm.slane %v1499, 2
  %v1504 = vperm.slane %v1499, 3
  %v1509 = vmul.f32 %v1497, %v1501
  %v1510 = vmul.f32 %v1496, %v1502
  %v1511 = vmul.f32 %v1495, %v1503
  %v1512 = vmul.f32 %v1498, %v1504
  %1513 = vst [vmem:[#allocation2 + $0x5a0] sm:$0xff] %v1509
  %1514 = vst [vmem:[#allocation2 + $0x5a8] sm:$0xff] %v1510
  %1515 = vst [vmem:[#allocation2 + $0x5b0] sm:$0xff] %v1511
  %1516 = vst [vmem:[#allocation2 + $0x5b8] sm:$0xff] %v1512
  %1517 = vrot.lane.b32.xlu0 %v44, 79
  %v1518 = vpop.permute.xlu0 %1517
  %1519 = vrot.lane.b32.xlu0 %v45, 79
  %v1520 = vpop.permute.xlu0 %1519
  %1521 = vrot.lane.b32.xlu0 %v46, 79
  %v1522 = vpop.permute.xlu0 %1521
  %1523 = vrot.lane.b32.xlu0 %v47, 79
  %v1524 = vpop.permute.xlu0 %1523
  %vm1525 = vcmp.lt.s32.totalorder %v111, 79
  %v1526 = vsel %vm1525, %v1522, %v1524
  %v1527 = vsel %vm1525, %v1520, %v1522
  %v1528 = vsel %vm1525, %v1518, %v1520
  %v1529 = vsel %vm1525, %v1524, %v1518
  %v1530 = vmul.f32 %v74, %v93
  %v1532 = vperm.slane %v1530, 0
  %v1533 = vperm.slane %v1530, 1
  %v1534 = vperm.slane %v1530, 2
  %v1535 = vperm.slane %v1530, 3
  %v1540 = vmul.f32 %v1528, %v1532
  %v1541 = vmul.f32 %v1527, %v1533
  %v1542 = vmul.f32 %v1526, %v1534
  %v1543 = vmul.f32 %v1529, %v1535
  %1544 = vst [vmem:[#allocation2 + $0x5c0] sm:$0xff] %v1540
  %1545 = vst [vmem:[#allocation2 + $0x5c8] sm:$0xff] %v1541
  %1546 = vst [vmem:[#allocation2 + $0x5d0] sm:$0xff] %v1542
  %1547 = vst [vmem:[#allocation2 + $0x5d8] sm:$0xff] %v1543
  %1548 = vrot.lane.b32.xlu0 %v44, 78
  %v1549 = vpop.permute.xlu0 %1548
  %1550 = vrot.lane.b32.xlu0 %v45, 78
  %v1551 = vpop.permute.xlu0 %1550
  %1552 = vrot.lane.b32.xlu0 %v46, 78
  %v1553 = vpop.permute.xlu0 %1552
  %1554 = vrot.lane.b32.xlu0 %v47, 78
  %v1555 = vpop.permute.xlu0 %1554
  %vm1556 = vcmp.lt.s32.totalorder %v111, 78
  %v1557 = vsel %vm1556, %v1553, %v1555
  %v1558 = vsel %vm1556, %v1551, %v1553
  %v1559 = vsel %vm1556, %v1549, %v1551
  %v1560 = vsel %vm1556, %v1555, %v1549
  %v1561 = vmul.f32 %v74, %v97
  %v1563 = vperm.slane %v1561, 0
  %v1564 = vperm.slane %v1561, 1
  %v1565 = vperm.slane %v1561, 2
  %v1566 = vperm.slane %v1561, 3
  %v1571 = vmul.f32 %v1559, %v1563
  %v1572 = vmul.f32 %v1558, %v1564
  %v1573 = vmul.f32 %v1557, %v1565
  %v1574 = vmul.f32 %v1560, %v1566
  %1575 = vst [vmem:[#allocation2 + $0x5e0] sm:$0xff] %v1571
  %1576 = vst [vmem:[#allocation2 + $0x5e8] sm:$0xff] %v1572
  %1577 = vst [vmem:[#allocation2 + $0x5f0] sm:$0xff] %v1573
  %1578 = vst [vmem:[#allocation2 + $0x5f8] sm:$0xff] %v1574
  %1579 = vrot.lane.b32.xlu0 %v44, 77
  %v1580 = vpop.permute.xlu0 %1579
  %1581 = vrot.lane.b32.xlu0 %v45, 77
  %v1582 = vpop.permute.xlu0 %1581
  %1583 = vrot.lane.b32.xlu0 %v46, 77
  %v1584 = vpop.permute.xlu0 %1583
  %1585 = vrot.lane.b32.xlu0 %v47, 77
  %v1586 = vpop.permute.xlu0 %1585
  %vm1587 = vcmp.lt.s32.totalorder %v111, 77
  %v1588 = vsel %vm1587, %v1584, %v1586
  %v1589 = vsel %vm1587, %v1582, %v1584
  %v1590 = vsel %vm1587, %v1580, %v1582
  %v1591 = vsel %vm1587, %v1586, %v1580
  %v1592 = vmul.f32 %v74, %v101
  %v1594 = vperm.slane %v1592, 0
  %v1595 = vperm.slane %v1592, 1
  %v1596 = vperm.slane %v1592, 2
  %v1597 = vperm.slane %v1592, 3
  %v1602 = vmul.f32 %v1590, %v1594
  %v1603 = vmul.f32 %v1589, %v1595
  %v1604 = vmul.f32 %v1588, %v1596
  %v1605 = vmul.f32 %v1591, %v1597
  %1606 = vst [vmem:[#allocation2 + $0x600] sm:$0xff] %v1602
  %1607 = vst [vmem:[#allocation2 + $0x608] sm:$0xff] %v1603
  %1608 = vst [vmem:[#allocation2 + $0x610] sm:$0xff] %v1604
  %1609 = vst [vmem:[#allocation2 + $0x618] sm:$0xff] %v1605
  %v1610 = vld [vmem:[%s3] sm:$0xff]
  %v1611 = vld [vmem:[%s3 + $0x8] sm:$0xff]
  %v1612 = vld [vmem:[%s3 + $0x10] sm:$0xff]
  %v1613 = vld [vmem:[%s3 + $0x18] sm:$0xff]
  %v1614 = vld [vmem:[#allocation2] sm:$0xff]
  %v1615 = vld [vmem:[#allocation2 + $0x8] sm:$0xff]
  %v1616 = vld [vmem:[#allocation2 + $0x10] sm:$0xff]
  %v1617 = vld [vmem:[#allocation2 + $0x18] sm:$0xff]
  %v1618 = vld [vmem:[#allocation2 + $0x20] sm:$0xff]
  %v1619 = vld [vmem:[#allocation2 + $0x28] sm:$0xff]
  %v1620 = vld [vmem:[#allocation2 + $0x30] sm:$0xff]
  %v1621 = vld [vmem:[#allocation2 + $0x38] sm:$0xff]
  %v1622 = vld [vmem:[#allocation2 + $0x40] sm:$0xff]
  %v1623 = vld [vmem:[#allocation2 + $0x48] sm:$0xff]
  %v1624 = vld [vmem:[#allocation2 + $0x50] sm:$0xff]
  %v1625 = vld [vmem:[#allocation2 + $0x58] sm:$0xff]
  %v1626 = vld [vmem:[#allocation2 + $0x60] sm:$0xff]
  %v1627 = vld [vmem:[#allocation2 + $0x68] sm:$0xff]
  %v1628 = vld [vmem:[#allocation2 + $0x70] sm:$0xff]
  %v1629 = vld [vmem:[#allocation2 + $0x78] sm:$0xff]
  %v1630 = vld [vmem:[#allocation2 + $0x80] sm:$0xff]
  %v1631 = vld [vmem:[#allocation2 + $0x88] sm:$0xff]
  %v1632 = vld [vmem:[#allocation2 + $0x90] sm:$0xff]
  %v1633 = vld [vmem:[#allocation2 + $0x98] sm:$0xff]
  %v1634 = vld [vmem:[#allocation2 + $0xa0] sm:$0xff]
  %v1635 = vld [vmem:[#allocation2 + $0xa8] sm:$0xff]
  %v1636 = vld [vmem:[#allocation2 + $0xb0] sm:$0xff]
  %v1637 = vld [vmem:[#allocation2 + $0xb8] sm:$0xff]
  %v1638 = vld [vmem:[#allocation2 + $0xc0] sm:$0xff]
  %v1639 = vld [vmem:[#allocation2 + $0xc8] sm:$0xff]
  %v1640 = vld [vmem:[#allocation2 + $0xd0] sm:$0xff]
  %v1641 = vld [vmem:[#allocation2 + $0xd8] sm:$0xff]
  %v1642 = vld [vmem:[#allocation2 + $0xe0] sm:$0xff]
  %v1643 = vld [vmem:[#allocation2 + $0xe8] sm:$0xff]
  %v1644 = vld [vmem:[#allocation2 + $0xf0] sm:$0xff]
  %v1645 = vld [vmem:[#allocation2 + $0xf8] sm:$0xff]
  %v1646 = vld [vmem:[#allocation2 + $0x100] sm:$0xff]
  %v1647 = vld [vmem:[#allocation2 + $0x108] sm:$0xff]
  %v1648 = vld [vmem:[#allocation2 + $0x110] sm:$0xff]
  %v1649 = vld [vmem:[#allocation2 + $0x118] sm:$0xff]
  %v1650 = vld [vmem:[#allocation2 + $0x120] sm:$0xff]
  %v1651 = vld [vmem:[#allocation2 + $0x128] sm:$0xff]
  %v1652 = vld [vmem:[#allocation2 + $0x130] sm:$0xff]
  %v1653 = vld [vmem:[#allocation2 + $0x138] sm:$0xff]
  %v1654 = vld [vmem:[#allocation2 + $0x140] sm:$0xff]
  %v1655 = vld [vmem:[#allocation2 + $0x148] sm:$0xff]
  %v1656 = vld [vmem:[#allocation2 + $0x150] sm:$0xff]
  %v1657 = vld [vmem:[#allocation2 + $0x158] sm:$0xff]
  %v1658 = vld [vmem:[#allocation2 + $0x160] sm:$0xff]
  %v1659 = vld [vmem:[#allocation2 + $0x168] sm:$0xff]
  %v1660 = vld [vmem:[#allocation2 + $0x170] sm:$0xff]
  %v1661 = vld [vmem:[#allocation2 + $0x178] sm:$0xff]
  %v1662 = vld [vmem:[#allocation2 + $0x180] sm:$0xff]
  %v1663 = vld [vmem:[#allocation2 + $0x188] sm:$0xff]
  %v1664 = vld [vmem:[#allocation2 + $0x190] sm:$0xff]
  %v1665 = vld [vmem:[#allocation2 + $0x198] sm:$0xff]
  %v1666 = vld [vmem:[#allocation2 + $0x1a0] sm:$0xff]
  %v1667 = vld [vmem:[#allocation2 + $0x1a8] sm:$0xff]
  %v1668 = vld [vmem:[#allocation2 + $0x1b0] sm:$0xff]
  %v1669 = vld [vmem:[#allocation2 + $0x1b8] sm:$0xff]
  %v1670 = vld [vmem:[#allocation2 + $0x1c0] sm:$0xff]
  %v1671 = vld [vmem:[#allocation2 + $0x1c8] sm:$0xff]
  %v1672 = vld [vmem:[#allocation2 + $0x1d0] sm:$0xff]
  %v1673 = vld [vmem:[#allocation2 + $0x1d8] sm:$0xff]
  %v1674 = vld [vmem:[#allocation2 + $0x1e0] sm:$0xff]
  %v1675 = vld [vmem:[#allocation2 + $0x1e8] sm:$0xff]
  %v1676 = vld [vmem:[#allocation2 + $0x1f0] sm:$0xff]
  %v1677 = vld [vmem:[#allocation2 + $0x1f8] sm:$0xff]
  %v1678 = vld [vmem:[#allocation2 + $0x200] sm:$0xff]
  %v1679 = vld [vmem:[#allocation2 + $0x208] sm:$0xff]
  %v1680 = vld [vmem:[#allocation2 + $0x210] sm:$0xff]
  %v1681 = vld [vmem:[#allocation2 + $0x218] sm:$0xff]
  %v1682 = vld [vmem:[#allocation2 + $0x220] sm:$0xff]
  %v1683 = vld [vmem:[#allocation2 + $0x228] sm:$0xff]
  %v1684 = vld [vmem:[#allocation2 + $0x230] sm:$0xff]
  %v1685 = vld [vmem:[#allocation2 + $0x238] sm:$0xff]
  %v1686 = vld [vmem:[#allocation2 + $0x240] sm:$0xff]
  %v1687 = vld [vmem:[#allocation2 + $0x248] sm:$0xff]
  %v1688 = vld [vmem:[#allocation2 + $0x250] sm:$0xff]
  %v1689 = vld [vmem:[#allocation2 + $0x258] sm:$0xff]
  %v1690 = vld [vmem:[#allocation2 + $0x260] sm:$0xff]
  %v1691 = vld [vmem:[#allocation2 + $0x268] sm:$0xff]
  %v1692 = vld [vmem:[#allocation2 + $0x270] sm:$0xff]
  %v1693 = vld [vmem:[#allocation2 + $0x278] sm:$0xff]
  %v1694 = vld [vmem:[#allocation2 + $0x280] sm:$0xff]
  %v1695 = vld [vmem:[#allocation2 + $0x288] sm:$0xff]
  %v1696 = vld [vmem:[#allocation2 + $0x290] sm:$0xff]
  %v1697 = vld [vmem:[#allocation2 + $0x298] sm:$0xff]
  %v1698 = vld [vmem:[#allocation2 + $0x2a0] sm:$0xff]
  %v1699 = vld [vmem:[#allocation2 + $0x2a8] sm:$0xff]
  %v1700 = vld [vmem:[#allocation2 + $0x2b0] sm:$0xff]
  %v1701 = vld [vmem:[#allocation2 + $0x2b8] sm:$0xff]
  %v1702 = vld [vmem:[#allocation2 + $0x2c0] sm:$0xff]
  %v1703 = vld [vmem:[#allocation2 + $0x2c8] sm:$0xff]
  %v1704 = vld [vmem:[#allocation2 + $0x2d0] sm:$0xff]
  %v1705 = vld [vmem:[#allocation2 + $0x2d8] sm:$0xff]
  %v1706 = vld [vmem:[#allocation2 + $0x2e0] sm:$0xff]
  %v1707 = vld [vmem:[#allocation2 + $0x2e8] sm:$0xff]
  %v1708 = vld [vmem:[#allocation2 + $0x2f0] sm:$0xff]
  %v1709 = vld [vmem:[#allocation2 + $0x2f8] sm:$0xff]
  %v1710 = vld [vmem:[#allocation2 + $0x300] sm:$0xff]
  %v1711 = vld [vmem:[#allocation2 + $0x308] sm:$0xff]
  %v1712 = vld [vmem:[#allocation2 + $0x310] sm:$0xff]
  %v1713 = vld [vmem:[#allocation2 + $0x318] sm:$0xff]
  %v1714 = vld [vmem:[#allocation2 + $0x320] sm:$0xff]
  %v1715 = vld [vmem:[#allocation2 + $0x328] sm:$0xff]
  %v1716 = vld [vmem:[#allocation2 + $0x330] sm:$0xff]
  %v1717 = vld [vmem:[#allocation2 + $0x338] sm:$0xff]
  %v1718 = vld [vmem:[#allocation2 + $0x340] sm:$0xff]
  %v1719 = vld [vmem:[#allocation2 + $0x348] sm:$0xff]
  %v1720 = vld [vmem:[#allocation2 + $0x350] sm:$0xff]
  %v1721 = vld [vmem:[#allocation2 + $0x358] sm:$0xff]
  %v1722 = vld [vmem:[#allocation2 + $0x360] sm:$0xff]
  %v1723 = vld [vmem:[#allocation2 + $0x368] sm:$0xff]
  %v1724 = vld [vmem:[#allocation2 + $0x370] sm:$0xff]
  %v1725 = vld [vmem:[#allocation2 + $0x378] sm:$0xff]
  %v1726 = vld [vmem:[#allocation2 + $0x380] sm:$0xff]
  %v1727 = vld [vmem:[#allocation2 + $0x388] sm:$0xff]
  %v1728 = vld [vmem:[#allocation2 + $0x390] sm:$0xff]
  %v1729 = vld [vmem:[#allocation2 + $0x398] sm:$0xff]
  %v1730 = vld [vmem:[#allocation2 + $0x3a0] sm:$0xff]
  %v1731 = vld [vmem:[#allocation2 + $0x3a8] sm:$0xff]
  %v1732 = vld [vmem:[#allocation2 + $0x3b0] sm:$0xff]
  %v1733 = vld [vmem:[#allocation2 + $0x3b8] sm:$0xff]
  %v1734 = vld [vmem:[#allocation2 + $0x3c0] sm:$0xff]
  %v1735 = vld [vmem:[#allocation2 + $0x3c8] sm:$0xff]
  %v1736 = vld [vmem:[#allocation2 + $0x3d0] sm:$0xff]
  %v1737 = vld [vmem:[#allocation2 + $0x3d8] sm:$0xff]
  %v1738 = vld [vmem:[#allocation2 + $0x3e0] sm:$0xff]
  %v1739 = vld [vmem:[#allocation2 + $0x3e8] sm:$0xff]
  %v1740 = vld [vmem:[#allocation2 + $0x3f0] sm:$0xff]
  %v1741 = vld [vmem:[#allocation2 + $0x3f8] sm:$0xff]
  %v1742 = vld [vmem:[#allocation2 + $0x400] sm:$0xff]
  %v1743 = vld [vmem:[#allocation2 + $0x408] sm:$0xff]
  %v1744 = vld [vmem:[#allocation2 + $0x410] sm:$0xff]
  %v1745 = vld [vmem:[#allocation2 + $0x418] sm:$0xff]
  %v1746 = vld [vmem:[#allocation2 + $0x420] sm:$0xff]
  %v1747 = vld [vmem:[#allocation2 + $0x428] sm:$0xff]
  %v1748 = vld [vmem:[#allocation2 + $0x430] sm:$0xff]
  %v1749 = vld [vmem:[#allocation2 + $0x438] sm:$0xff]
  %v1750 = vld [vmem:[#allocation2 + $0x440] sm:$0xff]
  %v1751 = vld [vmem:[#allocation2 + $0x448] sm:$0xff]
  %v1752 = vld [vmem:[#allocation2 + $0x450] sm:$0xff]
  %v1753 = vld [vmem:[#allocation2 + $0x458] sm:$0xff]
  %v1754 = vld [vmem:[#allocation2 + $0x460] sm:$0xff]
  %v1755 = vld [vmem:[#allocation2 + $0x468] sm:$0xff]
  %v1756 = vld [vmem:[#allocation2 + $0x470] sm:$0xff]
  %v1757 = vld [vmem:[#allocation2 + $0x478] sm:$0xff]
  %v1758 = vld [vmem:[#allocation2 + $0x480] sm:$0xff]
  %v1759 = vld [vmem:[#allocation2 + $0x488] sm:$0xff]
  %v1760 = vld [vmem:[#allocation2 + $0x490] sm:$0xff]
  %v1761 = vld [vmem:[#allocation2 + $0x498] sm:$0xff]
  %v1762 = vld [vmem:[#allocation2 + $0x4a0] sm:$0xff]
  %v1763 = vld [vmem:[#allocation2 + $0x4a8] sm:$0xff]
  %v1764 = vld [vmem:[#allocation2 + $0x4b0] sm:$0xff]
  %v1765 = vld [vmem:[#allocation2 + $0x4b8] sm:$0xff]
  %v1766 = vld [vmem:[#allocation2 + $0x4c0] sm:$0xff]
  %v1767 = vld [vmem:[#allocation2 + $0x4c8] sm:$0xff]
  %v1768 = vld [vmem:[#allocation2 + $0x4d0] sm:$0xff]
  %v1769 = vld [vmem:[#allocation2 + $0x4d8] sm:$0xff]
  %v1770 = vld [vmem:[#allocation2 + $0x4e0] sm:$0xff]
  %v1771 = vld [vmem:[#allocation2 + $0x4e8] sm:$0xff]
  %v1772 = vld [vmem:[#allocation2 + $0x4f0] sm:$0xff]
  %v1773 = vld [vmem:[#allocation2 + $0x4f8] sm:$0xff]
  %v1774 = vld [vmem:[#allocation2 + $0x500] sm:$0xff]
  %v1775 = vld [vmem:[#allocation2 + $0x508] sm:$0xff]
  %v1776 = vld [vmem:[#allocation2 + $0x510] sm:$0xff]
  %v1777 = vld [vmem:[#allocation2 + $0x518] sm:$0xff]
  %v1778 = vld [vmem:[#allocation2 + $0x520] sm:$0xff]
  %v1779 = vld [vmem:[#allocation2 + $0x528] sm:$0xff]
  %v1780 = vld [vmem:[#allocation2 + $0x530] sm:$0xff]
  %v1781 = vld [vmem:[#allocation2 + $0x538] sm:$0xff]
  %v1782 = vld [vmem:[#allocation2 + $0x540] sm:$0xff]
  %v1783 = vld [vmem:[#allocation2 + $0x548] sm:$0xff]
  %v1784 = vld [vmem:[#allocation2 + $0x550] sm:$0xff]
  %v1785 = vld [vmem:[#allocation2 + $0x558] sm:$0xff]
  %v1786 = vld [vmem:[#allocation2 + $0x560] sm:$0xff]
  %v1787 = vld [vmem:[#allocation2 + $0x568] sm:$0xff]
  %v1788 = vld [vmem:[#allocation2 + $0x570] sm:$0xff]
  %v1789 = vld [vmem:[#allocation2 + $0x578] sm:$0xff]
  %v1790 = vld [vmem:[#allocation2 + $0x580] sm:$0xff]
  %v1791 = vld [vmem:[#allocation2 + $0x588] sm:$0xff]
  %v1792 = vld [vmem:[#allocation2 + $0x590] sm:$0xff]
  %v1793 = vld [vmem:[#allocation2 + $0x598] sm:$0xff]
  %v1794 = vld [vmem:[#allocation2 + $0x5a0] sm:$0xff]
  %v1795 = vld [vmem:[#allocation2 + $0x5a8] sm:$0xff]
  %v1796 = vld [vmem:[#allocation2 + $0x5b0] sm:$0xff]
  %v1797 = vld [vmem:[#allocation2 + $0x5b8] sm:$0xff]
  %v1798 = vld [vmem:[#allocation2 + $0x5c0] sm:$0xff]
  %v1799 = vld [vmem:[#allocation2 + $0x5c8] sm:$0xff]
  %v1800 = vld [vmem:[#allocation2 + $0x5d0] sm:$0xff]
  %v1801 = vld [vmem:[#allocation2 + $0x5d8] sm:$0xff]
  %v1802 = vld [vmem:[#allocation2 + $0x5e0] sm:$0xff]
  %v1803 = vld [vmem:[#allocation2 + $0x5e8] sm:$0xff]
  %v1804 = vld [vmem:[#allocation2 + $0x5f0] sm:$0xff]
  %v1805 = vld [vmem:[#allocation2 + $0x5f8] sm:$0xff]
  %v1806 = vld [vmem:[#allocation2 + $0x600] sm:$0xff]
  %v1807 = vld [vmem:[#allocation2 + $0x608] sm:$0xff]
  %v1808 = vld [vmem:[#allocation2 + $0x610] sm:$0xff]
  %v1809 = vld [vmem:[#allocation2 + $0x618] sm:$0xff]
  %vm1810 = vcmask 64512
  %v1812 = vsel %vm1810, %v1613, 0
  %1814 = vmatpush.msra.mxu0 %v1674
  %1815 = vmatpush.msra.mxu0 %v1670
  %1816 = vmatpush.msra.mxu0 %v1666
  %1817 = vmatpush.msra.mxu0 %v1662
  %1818 = vmatpush.msra.mxu0 %v1658
  %1819 = vmatpush.msra.mxu0 %v1654
  %1820 = vmatpush.msra.mxu0 %v1650
  %1821 = vmatpush.msra.mxu0 %v1646
  %1822 = vmatpush.msra.mxu0 %v1642
  %1823 = vmatpush.msra.mxu0 %v1638
  %1824 = vmatpush.msra.mxu0 %v1634
  %1825 = vmatpush.msra.mxu0 %v1630
  %1826 = vmatpush.msra.mxu0 %v1626
  %1827 = vmatpush.msra.mxu0 %v1622
  %1828 = vmatpush.msra.mxu0 %v1618
  %1829 = vmatpush.msra.mxu0 %v1614
  %1830 = vmatmul.f32.gmra.mxu0 %v1610
  %v1831 = vpop.f32.mrf.mxu0
  %v1832 = vadd.f32 0.0, %v1831
  %1833 = vdwg.mxu0
  %1834 = vmatpush.msra.mxu0 %v1738
  %1835 = vmatpush.msra.mxu0 %v1734
  %1836 = vmatpush.msra.mxu0 %v1730
  %1837 = vmatpush.msra.mxu0 %v1726
  %1838 = vmatpush.msra.mxu0 %v1722
  %1839 = vmatpush.msra.mxu0 %v1718
  %1840 = vmatpush.msra.mxu0 %v1714
  %1841 = vmatpush.msra.mxu0 %v1710
  %1842 = vmatpush.msra.mxu0 %v1706
  %1843 = vmatpush.msra.mxu0 %v1702
  %1844 = vmatpush.msra.mxu0 %v1698
  %1845 = vmatpush.msra.mxu0 %v1694
  %1846 = vmatpush.msra.mxu0 %v1690
  %1847 = vmatpush.msra.mxu0 %v1686
  %1848 = vmatpush.msra.mxu0 %v1682
  %1849 = vmatpush.msra.mxu0 %v1678
  %1850 = vmatmul.f32.gmra.mxu0 %v1611
  %v1851 = vpop.f32.mrf.mxu0
  %v1852 = vadd.f32 %v1832, %v1851
  %1853 = vdwg.mxu0
  %1854 = vmatpush.msra.mxu0 %v1802
  %1855 = vmatpush.msra.mxu0 %v1798
  %1856 = vmatpush.msra.mxu0 %v1794
  %1857 = vmatpush.msra.mxu0 %v1790
  %1858 = vmatpush.msra.mxu0 %v1786
  %1859 = vmatpush.msra.mxu0 %v1782
  %1860 = vmatpush.msra.mxu0 %v1778
  %1861 = vmatpush.msra.mxu0 %v1774
  %1862 = vmatpush.msra.mxu0 %v1770
  %1863 = vmatpush.msra.mxu0 %v1766
  %1864 = vmatpush.msra.mxu0 %v1762
  %1865 = vmatpush.msra.mxu0 %v1758
  %1866 = vmatpush.msra.mxu0 %v1754
  %1867 = vmatpush.msra.mxu0 %v1750
  %1868 = vmatpush.msra.mxu0 %v1746
  %1869 = vmatpush.msra.mxu0 %v1742
  %1870 = vmatmul.f32.gmra.mxu0 %v1612
  %v1871 = vpop.f32.mrf.mxu0
  %v1872 = vadd.f32 %v1852, %v1871
  %1873 = vdwg.mxu0
  %1874 = vmatpush.msra.mxu0 0.0
  %1875 = vmatpush.msra.mxu0 0.0
  %1876 = vmatpush.msra.mxu0 0.0
  %1877 = vmatpush.msra.mxu0 0.0
  %1878 = vmatpush.msra.mxu0 0.0
  %1879 = vmatpush.msra.mxu0 0.0
  %1880 = vmatpush.msra.mxu0 0.0
  %1881 = vmatpush.msra.mxu0 0.0
  %1882 = vmatpush.msra.mxu0 0.0
  %1883 = vmatpush.msra.mxu0 0.0
  %1884 = vmatpush.msra.mxu0 0.0
  %1885 = vmatpush.msra.mxu0 0.0
  %1886 = vmatpush.msra.mxu0 0.0
  %1887 = vmatpush.msra.mxu0 0.0
  %1888 = vmatpush.msra.mxu0 0.0
  %1889 = vmatpush.msra.mxu0 %v1806
  %1890 = vmatmul.f32.gmra.mxu0 %v1812
  %v1891 = vpop.f32.mrf.mxu0
  %v1892 = vadd.f32 %v1872, %v1891
  %1893 = vdwg.mxu0
  %1894 = vmatpush.msra.mxu0 %v1675
  %1895 = vmatpush.msra.mxu0 %v1671
  %1896 = vmatpush.msra.mxu0 %v1667
  %1897 = vmatpush.msra.mxu0 %v1663
  %1898 = vmatpush.msra.mxu0 %v1659
  %1899 = vmatpush.msra.mxu0 %v1655
  %1900 = vmatpush.msra.mxu0 %v1651
  %1901 = vmatpush.msra.mxu0 %v1647
  %1902 = vmatpush.msra.mxu0 %v1643
  %1903 = vmatpush.msra.mxu0 %v1639
  %1904 = vmatpush.msra.mxu0 %v1635
  %1905 = vmatpush.msra.mxu0 %v1631
  %1906 = vmatpush.msra.mxu0 %v1627
  %1907 = vmatpush.msra.mxu0 %v1623
  %1908 = vmatpush.msra.mxu0 %v1619
  %1909 = vmatpush.msra.mxu0 %v1615
  %1910 = vmatmul.f32.gmra.mxu0 %v1610
  %v1911 = vpop.f32.mrf.mxu0
  %v1912 = vadd.f32 0.0, %v1911
  %1913 = vdwg.mxu0
  %1914 = vmatpush.msra.mxu0 %v1739
  %1915 = vmatpush.msra.mxu0 %v1735
  %1916 = vmatpush.msra.mxu0 %v1731
  %1917 = vmatpush.msra.mxu0 %v1727
  %1918 = vmatpush.msra.mxu0 %v1723
  %1919 = vmatpush.msra.mxu0 %v1719
  %1920 = vmatpush.msra.mxu0 %v1715
  %1921 = vmatpush.msra.mxu0 %v1711
  %1922 = vmatpush.msra.mxu0 %v1707
  %1923 = vmatpush.msra.mxu0 %v1703
  %1924 = vmatpush.msra.mxu0 %v1699
  %1925 = vmatpush.msra.mxu0 %v1695
  %1926 = vmatpush.msra.mxu0 %v1691
  %1927 = vmatpush.msra.mxu0 %v1687
  %1928 = vmatpush.msra.mxu0 %v1683
  %1929 = vmatpush.msra.mxu0 %v1679
  %1930 = vmatmul.f32.gmra.mxu0 %v1611
  %v1931 = vpop.f32.mrf.mxu0
  %v1932 = vadd.f32 %v1912, %v1931
  %1933 = vdwg.mxu0
  %1934 = vmatpush.msra.mxu0 %v1803
  %1935 = vmatpush.msra.mxu0 %v1799
  %1936 = vmatpush.msra.mxu0 %v1795
  %1937 = vmatpush.msra.mxu0 %v1791
  %1938 = vmatpush.msra.mxu0 %v1787
  %1939 = vmatpush.msra.mxu0 %v1783
  %1940 = vmatpush.msra.mxu0 %v1779
  %1941 = vmatpush.msra.mxu0 %v1775
  %1942 = vmatpush.msra.mxu0 %v1771
  %1943 = vmatpush.msra.mxu0 %v1767
  %1944 = vmatpush.msra.mxu0 %v1763
  %1945 = vmatpush.msra.mxu0 %v1759
  %1946 = vmatpush.msra.mxu0 %v1755
  %1947 = vmatpush.msra.mxu0 %v1751
  %1948 = vmatpush.msra.mxu0 %v1747
  %1949 = vmatpush.msra.mxu0 %v1743
  %1950 = vmatmul.f32.gmra.mxu0 %v1612
  %v1951 = vpop.f32.mrf.mxu0
  %v1952 = vadd.f32 %v1932, %v1951
  %1953 = vdwg.mxu0
  %1954 = vmatpush.msra.mxu0 0.0
  %1955 = vmatpush.msra.mxu0 0.0
  %1956 = vmatpush.msra.mxu0 0.0
  %1957 = vmatpush.msra.mxu0 0.0
  %1958 = vmatpush.msra.mxu0 0.0
  %1959 = vmatpush.msra.mxu0 0.0
  %1960 = vmatpush.msra.mxu0 0.0
  %1961 = vmatpush.msra.mxu0 0.0
  %1962 = vmatpush.msra.mxu0 0.0
  %1963 = vmatpush.msra.mxu0 0.0
  %1964 = vmatpush.msra.mxu0 0.0
  %1965 = vmatpush.msra.mxu0 0.0
  %1966 = vmatpush.msra.mxu0 0.0
  %1967 = vmatpush.msra.mxu0 0.0
  %1968 = vmatpush.msra.mxu0 0.0
  %1969 = vmatpush.msra.mxu0 %v1807
  %1970 = vmatmul.f32.gmra.mxu0 %v1812
  %v1971 = vpop.f32.mrf.mxu0
  %v1972 = vadd.f32 %v1952, %v1971
  %1973 = vdwg.mxu0
  %1974 = vmatpush.msra.mxu0 %v1676
  %1975 = vmatpush.msra.mxu0 %v1672
  %1976 = vmatpush.msra.mxu0 %v1668
  %1977 = vmatpush.msra.mxu0 %v1664
  %1978 = vmatpush.msra.mxu0 %v1660
  %1979 = vmatpush.msra.mxu0 %v1656
  %1980 = vmatpush.msra.mxu0 %v1652
  %1981 = vmatpush.msra.mxu0 %v1648
  %1982 = vmatpush.msra.mxu0 %v1644
  %1983 = vmatpush.msra.mxu0 %v1640
  %1984 = vmatpush.msra.mxu0 %v1636
  %1985 = vmatpush.msra.mxu0 %v1632
  %1986 = vmatpush.msra.mxu0 %v1628
  %1987 = vmatpush.msra.mxu0 %v1624
  %1988 = vmatpush.msra.mxu0 %v1620
  %1989 = vmatpush.msra.mxu0 %v1616
  %1990 = vmatmul.f32.gmra.mxu0 %v1610
  %v1991 = vpop.f32.mrf.mxu0
  %v1992 = vadd.f32 0.0, %v1991
  %1993 = vdwg.mxu0
  %1994 = vmatpush.msra.mxu0 %v1740
  %1995 = vmatpush.msra.mxu0 %v1736
  %1996 = vmatpush.msra.mxu0 %v1732
  %1997 = vmatpush.msra.mxu0 %v1728
  %1998 = vmatpush.msra.mxu0 %v1724
  %1999 = vmatpush.msra.mxu0 %v1720
  %2000 = vmatpush.msra.mxu0 %v1716
  %2001 = vmatpush.msra.mxu0 %v1712
  %2002 = vmatpush.msra.mxu0 %v1708
  %2003 = vmatpush.msra.mxu0 %v1704
  %2004 = vmatpush.msra.mxu0 %v1700
  %2005 = vmatpush.msra.mxu0 %v1696
  %2006 = vmatpush.msra.mxu0 %v1692
  %2007 = vmatpush.msra.mxu0 %v1688
  %2008 = vmatpush.msra.mxu0 %v1684
  %2009 = vmatpush.msra.mxu0 %v1680
  %2010 = vmatmul.f32.gmra.mxu0 %v1611
  %v2011 = vpop.f32.mrf.mxu0
  %v2012 = vadd.f32 %v1992, %v2011
  %2013 = vdwg.mxu0
  %2014 = vmatpush.msra.mxu0 %v1804
  %2015 = vmatpush.msra.mxu0 %v1800
  %2016 = vmatpush.msra.mxu0 %v1796
  %2017 = vmatpush.msra.mxu0 %v1792
  %2018 = vmatpush.msra.mxu0 %v1788
  %2019 = vmatpush.msra.mxu0 %v1784
  %2020 = vmatpush.msra.mxu0 %v1780
  %2021 = vmatpush.msra.mxu0 %v1776
  %2022 = vmatpush.msra.mxu0 %v1772
  %2023 = vmatpush.msra.mxu0 %v1768
  %2024 = vmatpush.msra.mxu0 %v1764
  %2025 = vmatpush.msra.mxu0 %v1760
  %2026 = vmatpush.msra.mxu0 %v1756
  %2027 = vmatpush.msra.mxu0 %v1752
  %2028 = vmatpush.msra.mxu0 %v1748
  %2029 = vmatpush.msra.mxu0 %v1744
  %2030 = vmatmul.f32.gmra.mxu0 %v1612
  %v2031 = vpop.f32.mrf.mxu0
  %v2032 = vadd.f32 %v2012, %v2031
  %2033 = vdwg.mxu0
  %2034 = vmatpush.msra.mxu0 0.0
  %2035 = vmatpush.msra.mxu0 0.0
  %2036 = vmatpush.msra.mxu0 0.0
  %2037 = vmatpush.msra.mxu0 0.0
  %2038 = vmatpush.msra.mxu0 0.0
  %2039 = vmatpush.msra.mxu0 0.0
  %2040 = vmatpush.msra.mxu0 0.0
  %2041 = vmatpush.msra.mxu0 0.0
  %2042 = vmatpush.msra.mxu0 0.0
  %2043 = vmatpush.msra.mxu0 0.0
  %2044 = vmatpush.msra.mxu0 0.0
  %2045 = vmatpush.msra.mxu0 0.0
  %2046 = vmatpush.msra.mxu0 0.0
  %2047 = vmatpush.msra.mxu0 0.0
  %2048 = vmatpush.msra.mxu0 0.0
  %2049 = vmatpush.msra.mxu0 %v1808
  %2050 = vmatmul.f32.gmra.mxu0 %v1812
  %v2051 = vpop.f32.mrf.mxu0
  %v2052 = vadd.f32 %v2032, %v2051
  %2053 = vdwg.mxu0
  %2054 = vmatpush.msra.mxu0 %v1677
  %2055 = vmatpush.msra.mxu0 %v1673
  %2056 = vmatpush.msra.mxu0 %v1669
  %2057 = vmatpush.msra.mxu0 %v1665
  %2058 = vmatpush.msra.mxu0 %v1661
  %2059 = vmatpush.msra.mxu0 %v1657
  %2060 = vmatpush.msra.mxu0 %v1653
  %2061 = vmatpush.msra.mxu0 %v1649
  %2062 = vmatpush.msra.mxu0 %v1645
  %2063 = vmatpush.msra.mxu0 %v1641
  %2064 = vmatpush.msra.mxu0 %v1637
  %2065 = vmatpush.msra.mxu0 %v1633
  %2066 = vmatpush.msra.mxu0 %v1629
  %2067 = vmatpush.msra.mxu0 %v1625
  %2068 = vmatpush.msra.mxu0 %v1621
  %2069 = vmatpush.msra.mxu0 %v1617
  %2070 = vmatmul.f32.gmra.mxu0 %v1610
  %v2071 = vpop.f32.mrf.mxu0
  %v2072 = vadd.f32 0.0, %v2071
  %2073 = vdwg.mxu0
  %2074 = vmatpush.msra.mxu0 %v1741
  %2075 = vmatpush.msra.mxu0 %v1737
  %2076 = vmatpush.msra.mxu0 %v1733
  %2077 = vmatpush.msra.mxu0 %v1729
  %2078 = vmatpush.msra.mxu0 %v1725
  %2079 = vmatpush.msra.mxu0 %v1721
  %2080 = vmatpush.msra.mxu0 %v1717
  %2081 = vmatpush.msra.mxu0 %v1713
  %2082 = vmatpush.msra.mxu0 %v1709
  %2083 = vmatpush.msra.mxu0 %v1705
  %2084 = vmatpush.msra.mxu0 %v1701
  %2085 = vmatpush.msra.mxu0 %v1697
  %2086 = vmatpush.msra.mxu0 %v1693
  %2087 = vmatpush.msra.mxu0 %v1689
  %2088 = vmatpush.msra.mxu0 %v1685
  %2089 = vmatpush.msra.mxu0 %v1681
  %2090 = vmatmul.f32.gmra.mxu0 %v1611
  %v2091 = vpop.f32.mrf.mxu0
  %v2092 = vadd.f32 %v2072, %v2091
  %2093 = vdwg.mxu0
  %2094 = vmatpush.msra.mxu0 %v1805
  %2095 = vmatpush.msra.mxu0 %v1801
  %2096 = vmatpush.msra.mxu0 %v1797
  %2097 = vmatpush.msra.mxu0 %v1793
  %2098 = vmatpush.msra.mxu0 %v1789
  %2099 = vmatpush.msra.mxu0 %v1785
  %2100 = vmatpush.msra.mxu0 %v1781
  %2101 = vmatpush.msra.mxu0 %v1777
  %2102 = vmatpush.msra.mxu0 %v1773
  %2103 = vmatpush.msra.mxu0 %v1769
  %2104 = vmatpush.msra.mxu0 %v1765
  %2105 = vmatpush.msra.mxu0 %v1761
  %2106 = vmatpush.msra.mxu0 %v1757
  %2107 = vmatpush.msra.mxu0 %v1753
  %2108 = vmatpush.msra.mxu0 %v1749
  %2109 = vmatpush.msra.mxu0 %v1745
  %2110 = vmatmul.f32.gmra.mxu0 %v1612
  %v2111 = vpop.f32.mrf.mxu0
  %v2112 = vadd.f32 %v2092, %v2111
  %2113 = vdwg.mxu0
  %2114 = vmatpush.msra.mxu0 0.0
  %2115 = vmatpush.msra.mxu0 0.0
  %2116 = vmatpush.msra.mxu0 0.0
  %2117 = vmatpush.msra.mxu0 0.0
  %2118 = vmatpush.msra.mxu0 0.0
  %2119 = vmatpush.msra.mxu0 0.0
  %2120 = vmatpush.msra.mxu0 0.0
  %2121 = vmatpush.msra.mxu0 0.0
  %2122 = vmatpush.msra.mxu0 0.0
  %2123 = vmatpush.msra.mxu0 0.0
  %2124 = vmatpush.msra.mxu0 0.0
  %2125 = vmatpush.msra.mxu0 0.0
  %2126 = vmatpush.msra.mxu0 0.0
  %2127 = vmatpush.msra.mxu0 0.0
  %2128 = vmatpush.msra.mxu0 0.0
  %2129 = vmatpush.msra.mxu0 %v1809
  %2130 = vmatmul.f32.gmra.mxu0 %v1812
  %v2131 = vpop.f32.mrf.mxu0
  %v2132 = vadd.f32 %v2112, %v2131
  %2133 = vdwg.mxu0
  %v2134 = vadd.f32 %v1892, %v1972
  %v2135 = vadd.f32 %v2134, %v2052
  %v2136 = vadd.f32 %v2135, %v2132
  %2137 = vadd.xlane.f32.xlu0 %v2136
  %v2138 = vpop.xlane.xlu0 %2137
  %v2139 = vmul.f32 %v2138, 0.001953125
  %v2140 = vsub.f32 %v1892, %v2139
  %v2141 = vsub.f32 %v1972, %v2139
  %v2142 = vsub.f32 %v2052, %v2139
  %v2143 = vsub.f32 %v2132, %v2139
  %v2145 = vperm.slane %v43, 0
  %v2146 = vperm.slane %v43, 1
  %v2147 = vperm.slane %v43, 2
  %v2148 = vperm.slane %v43, 3
  %v2153 = vmul.f32 %v2140, %v2145
  %v2154 = vmul.f32 %v2141, %v2146
  %v2155 = vmul.f32 %v2142, %v2147
  %v2156 = vmul.f32 %v2143, %v2148
  %v2157 = vmul.f32 %v2153, %v2153
  %v2158 = vmul.f32 %v2154, %v2154
  %v2159 = vmul.f32 %v2155, %v2155
  %v2160 = vmul.f32 %v2156, %v2156
  %v2161 = vadd.f32 %v2157, %v2158
  %v2162 = vadd.f32 %v2161, %v2159
  %v2163 = vadd.f32 %v2162, %v2160
  %2164 = vadd.xlane.f32.xlu0 %v2163
  %v2165 = vpop.xlane.xlu0 %2164
  %v2166 = vmul.f32 %v2165, 0.001953125
  %v2167 = vld [vmem:[%s4] sm:$0xff]
  %v2168 = vadd.f32 %v2166, 1e-05
  %v2169 = vrsqrt.pop %v2168
  %v2170 = vmul.f32 %v2169, %v2168
  %v2171 = vmul.f32 %v2170, %v2169
  %v2172 = vmul.f32 0.5, %v2171
  %v2173 = vsub.f32 1.5, %v2172
  %v2174 = vmul.f32 %v2169, %v2173
  %vm2175 = vweird.f32 %v2168
  %vm2176 = vweird.f32 %v2169
  %vm2177 = vmor %vm2175, %vm2176
  %v2178 = vsel %vm2177, %v2169, %v2174
  %v2179 = vmul.f32 %v2167, %v2178
  %v2180 = vmul.f32 %v2139, %v2179
  %2182 = vrot.lane.b32.xlu0 %v2180, 1
  %v2183 = vpop.permute.xlu0 %2182
  %v2185 = vsub.f32 %v2167, %v2183
  %2187 = vset.pattern.permute.xlu0 0
  %2188 = vperm.xlu0 %2187, %v2179
  %v2189 = vpop.permute.xlu0 %2188
  %v2191 = vmul.f32 %v1892, %v2189
  %v2192 = vmul.f32 %v1972, %v2189
  %v2193 = vmul.f32 %v2052, %v2189
  %v2194 = vmul.f32 %v2132, %v2189
  %2196 = vset.pattern.permute.xlu0 1
  %2197 = vperm.xlu0 %2196, %v2185
  %v2198 = vpop.permute.xlu0 %2197
  %v2200 = vadd.f32 %v2191, %v2198
  %v2201 = vadd.f32 %v2192, %v2198
  %v2202 = vadd.f32 %v2193, %v2198
  %v2203 = vadd.f32 %v2194, %v2198
  %v2204 = vmax.f32 %v2200, 0.0
  %v2205 = vmax.f32 %v2201, 0.0
  %v2206 = vmax.f32 %v2202, 0.0
  %v2207 = vmax.f32 %v2203, 0.0
  %2208 = vrot.lane.b32.xlu0 %v2204, 34
  %v2209 = vpop.permute.xlu0 %2208
  %2210 = vrot.lane.b32.xlu0 %v2205, 34
  %v2211 = vpop.permute.xlu0 %2210
  %2212 = vrot.lane.b32.xlu0 %v2206, 34
  %v2213 = vpop.permute.xlu0 %2212
  %2214 = vrot.lane.b32.xlu0 %v2207, 34
  %v2215 = vpop.permute.xlu0 %2214
  %v2216 = vsel %vm360, %v2213, %v2215
  %v2217 = vsel %vm360, %v2211, %v2213
  %v2218 = vsel %vm360, %v2209, %v2211
  %v2219 = vsel %vm360, %v2215, %v2209
  %v2220 = vmul.f32 %v2219, %v367
  %v2221 = vmul.f32 %v2218, %v368
  %v2222 = vmul.f32 %v2217, %v369
  %v2223 = vmul.f32 %v2216, %v370
  %2224 = vst [vmem:[#allocation2] sm:$0xff] %v2220
  %2225 = vst [vmem:[#allocation2 + $0x8] sm:$0xff] %v2221
  %2226 = vst [vmem:[#allocation2 + $0x10] sm:$0xff] %v2222
  %2227 = vst [vmem:[#allocation2 + $0x18] sm:$0xff] %v2223
  %2228 = vrot.lane.b32.xlu0 %v2204, 33
  %v2229 = vpop.permute.xlu0 %2228
  %2230 = vrot.lane.b32.xlu0 %v2205, 33
  %v2231 = vpop.permute.xlu0 %2230
  %2232 = vrot.lane.b32.xlu0 %v2206, 33
  %v2233 = vpop.permute.xlu0 %2232
  %2234 = vrot.lane.b32.xlu0 %v2207, 33
  %v2235 = vpop.permute.xlu0 %2234
  %v2236 = vsel %vm391, %v2233, %v2235
  %v2237 = vsel %vm391, %v2231, %v2233
  %v2238 = vsel %vm391, %v2229, %v2231
  %v2239 = vsel %vm391, %v2235, %v2229
  %v2240 = vmul.f32 %v2239, %v398
  %v2241 = vmul.f32 %v2238, %v399
  %v2242 = vmul.f32 %v2237, %v400
  %v2243 = vmul.f32 %v2236, %v401
  %2244 = vst [vmem:[#allocation2 + $0x20] sm:$0xff] %v2240
  %2245 = vst [vmem:[#allocation2 + $0x28] sm:$0xff] %v2241
  %2246 = vst [vmem:[#allocation2 + $0x30] sm:$0xff] %v2242
  %2247 = vst [vmem:[#allocation2 + $0x38] sm:$0xff] %v2243
  %2248 = vrot.lane.b32.xlu0 %v2204, 32
  %v2249 = vpop.permute.xlu0 %2248
  %2250 = vrot.lane.b32.xlu0 %v2205, 32
  %v2251 = vpop.permute.xlu0 %2250
  %2252 = vrot.lane.b32.xlu0 %v2206, 32
  %v2253 = vpop.permute.xlu0 %2252
  %2254 = vrot.lane.b32.xlu0 %v2207, 32
  %v2255 = vpop.permute.xlu0 %2254
  %v2256 = vsel %vm422, %v2253, %v2255
  %v2257 = vsel %vm422, %v2251, %v2253
  %v2258 = vsel %vm422, %v2249, %v2251
  %v2259 = vsel %vm422, %v2255, %v2249
  %v2260 = vmul.f32 %v2259, %v429
  %v2261 = vmul.f32 %v2258, %v430
  %v2262 = vmul.f32 %v2257, %v431
  %v2263 = vmul.f32 %v2256, %v432
  %2264 = vst [vmem:[#allocation2 + $0x40] sm:$0xff] %v2260
  %2265 = vst [vmem:[#allocation2 + $0x48] sm:$0xff] %v2261
  %2266 = vst [vmem:[#allocation2 + $0x50] sm:$0xff] %v2262
  %2267 = vst [vmem:[#allocation2 + $0x58] sm:$0xff] %v2263
  %2268 = vrot.lane.b32.xlu0 %v2204, 31
  %v2269 = vpop.permute.xlu0 %2268
  %2270 = vrot.lane.b32.xlu0 %v2205, 31
  %v2271 = vpop.permute.xlu0 %2270
  %2272 = vrot.lane.b32.xlu0 %v2206, 31
  %v2273 = vpop.permute.xlu0 %2272
  %2274 = vrot.lane.b32.xlu0 %v2207, 31
  %v2275 = vpop.permute.xlu0 %2274
  %v2276 = vsel %vm453, %v2273, %v2275
  %v2277 = vsel %vm453, %v2271, %v2273
  %v2278 = vsel %vm453, %v2269, %v2271
  %v2279 = vsel %vm453, %v2275, %v2269
  %v2280 = vmul.f32 %v2279, %v460
  %v2281 = vmul.f32 %v2278, %v461
  %v2282 = vmul.f32 %v2277, %v462
  %v2283 = vmul.f32 %v2276, %v463
  %2284 = vst [vmem:[#allocation2 + $0x60] sm:$0xff] %v2280
  %2285 = vst [vmem:[#allocation2 + $0x68] sm:$0xff] %v2281
  %2286 = vst [vmem:[#allocation2 + $0x70] sm:$0xff] %v2282
  %2287 = vst [vmem:[#allocation2 + $0x78] sm:$0xff] %v2283
  %2288 = vrot.lane.b32.xlu0 %v2204, 30
  %v2289 = vpop.permute.xlu0 %2288
  %2290 = vrot.lane.b32.xlu0 %v2205, 30
  %v2291 = vpop.permute.xlu0 %2290
  %2292 = vrot.lane.b32.xlu0 %v2206, 30
  %v2293 = vpop.permute.xlu0 %2292
  %2294 = vrot.lane.b32.xlu0 %v2207, 30
  %v2295 = vpop.permute.xlu0 %2294
  %v2296 = vsel %vm484, %v2293, %v2295
  %v2297 = vsel %vm484, %v2291, %v2293
  %v2298 = vsel %vm484, %v2289, %v2291
  %v2299 = vsel %vm484, %v2295, %v2289
  %v2300 = vmul.f32 %v2299, %v491
  %v2301 = vmul.f32 %v2298, %v492
  %v2302 = vmul.f32 %v2297, %v493
  %v2303 = vmul.f32 %v2296, %v494
  %2304 = vst [vmem:[#allocation2 + $0x80] sm:$0xff] %v2300
  %2305 = vst [vmem:[#allocation2 + $0x88] sm:$0xff] %v2301
  %2306 = vst [vmem:[#allocation2 + $0x90] sm:$0xff] %v2302
  %2307 = vst [vmem:[#allocation2 + $0x98] sm:$0xff] %v2303
  %2308 = vrot.lane.b32.xlu0 %v2204, 18
  %v2309 = vpop.permute.xlu0 %2308
  %2310 = vrot.lane.b32.xlu0 %v2205, 18
  %v2311 = vpop.permute.xlu0 %2310
  %2312 = vrot.lane.b32.xlu0 %v2206, 18
  %v2313 = vpop.permute.xlu0 %2312
  %2314 = vrot.lane.b32.xlu0 %v2207, 18
  %v2315 = vpop.permute.xlu0 %2314
  %v2316 = vsel %vm577, %v2313, %v2315
  %v2317 = vsel %vm577, %v2311, %v2313
  %v2318 = vsel %vm577, %v2309, %v2311
  %v2319 = vsel %vm577, %v2315, %v2309
  %v2320 = vmul.f32 %v2319, %v584
  %v2321 = vmul.f32 %v2318, %v585
  %v2322 = vmul.f32 %v2317, %v586
  %v2323 = vmul.f32 %v2316, %v587
  %2324 = vst [vmem:[#allocation2 + $0xa0] sm:$0xff] %v2320
  %2325 = vst [vmem:[#allocation2 + $0xa8] sm:$0xff] %v2321
  %2326 = vst [vmem:[#allocation2 + $0xb0] sm:$0xff] %v2322
  %2327 = vst [vmem:[#allocation2 + $0xb8] sm:$0xff] %v2323
  %2328 = vrot.lane.b32.xlu0 %v2204, 17
  %v2329 = vpop.permute.xlu0 %2328
  %2330 = vrot.lane.b32.xlu0 %v2205, 17
  %v2331 = vpop.permute.xlu0 %2330
  %2332 = vrot.lane.b32.xlu0 %v2206, 17
  %v2333 = vpop.permute.xlu0 %2332
  %2334 = vrot.lane.b32.xlu0 %v2207, 17
  %v2335 = vpop.permute.xlu0 %2334
  %v2336 = vsel %vm608, %v2333, %v2335
  %v2337 = vsel %vm608, %v2331, %v2333
  %v2338 = vsel %vm608, %v2329, %v2331
  %v2339 = vsel %vm608, %v2335, %v2329
  %v2340 = vmul.f32 %v2339, %v615
  %v2341 = vmul.f32 %v2338, %v616
  %v2342 = vmul.f32 %v2337, %v617
  %v2343 = vmul.f32 %v2336, %v618
  %2344 = vst [vmem:[#allocation2 + $0xc0] sm:$0xff] %v2340
  %2345 = vst [vmem:[#allocation2 + $0xc8] sm:$0xff] %v2341
  %2346 = vst [vmem:[#allocation2 + $0xd0] sm:$0xff] %v2342
  %2347 = vst [vmem:[#allocation2 + $0xd8] sm:$0xff] %v2343
  %2348 = vrot.lane.b32.xlu0 %v2204, 16
  %v2349 = vpop.permute.xlu0 %2348
  %2350 = vrot.lane.b32.xlu0 %v2205, 16
  %v2351 = vpop.permute.xlu0 %2350
  %2352 = vrot.lane.b32.xlu0 %v2206, 16
  %v2353 = vpop.permute.xlu0 %2352
  %2354 = vrot.lane.b32.xlu0 %v2207, 16
  %v2355 = vpop.permute.xlu0 %2354
  %v2356 = vsel %vm639, %v2353, %v2355
  %v2357 = vsel %vm639, %v2351, %v2353
  %v2358 = vsel %vm639, %v2349, %v2351
  %v2359 = vsel %vm639, %v2355, %v2349
  %v2360 = vmul.f32 %v2359, %v646
  %v2361 = vmul.f32 %v2358, %v647
  %v2362 = vmul.f32 %v2357, %v648
  %v2363 = vmul.f32 %v2356, %v649
  %2364 = vst [vmem:[#allocation2 + $0xe0] sm:$0xff] %v2360
  %2365 = vst [vmem:[#allocation2 + $0xe8] sm:$0xff] %v2361
  %2366 = vst [vmem:[#allocation2 + $0xf0] sm:$0xff] %v2362
  %2367 = vst [vmem:[#allocation2 + $0xf8] sm:$0xff] %v2363
  %2368 = vrot.lane.b32.xlu0 %v2204, 15
  %v2369 = vpop.permute.xlu0 %2368
  %2370 = vrot.lane.b32.xlu0 %v2205, 15
  %v2371 = vpop.permute.xlu0 %2370
  %2372 = vrot.lane.b32.xlu0 %v2206, 15
  %v2373 = vpop.permute.xlu0 %2372
  %2374 = vrot.lane.b32.xlu0 %v2207, 15
  %v2375 = vpop.permute.xlu0 %2374
  %v2376 = vsel %vm670, %v2373, %v2375
  %v2377 = vsel %vm670, %v2371, %v2373
  %v2378 = vsel %vm670, %v2369, %v2371
  %v2379 = vsel %vm670, %v2375, %v2369
  %v2380 = vmul.f32 %v2379, %v677
  %v2381 = vmul.f32 %v2378, %v678
  %v2382 = vmul.f32 %v2377, %v679
  %v2383 = vmul.f32 %v2376, %v680
  %2384 = vst [vmem:[#allocation2 + $0x100] sm:$0xff] %v2380
  %2385 = vst [vmem:[#allocation2 + $0x108] sm:$0xff] %v2381
  %2386 = vst [vmem:[#allocation2 + $0x110] sm:$0xff] %v2382
  %2387 = vst [vmem:[#allocation2 + $0x118] sm:$0xff] %v2383
  %2388 = vrot.lane.b32.xlu0 %v2204, 14
  %v2389 = vpop.permute.xlu0 %2388
  %2390 = vrot.lane.b32.xlu0 %v2205, 14
  %v2391 = vpop.permute.xlu0 %2390
  %2392 = vrot.lane.b32.xlu0 %v2206, 14
  %v2393 = vpop.permute.xlu0 %2392
  %2394 = vrot.lane.b32.xlu0 %v2207, 14
  %v2395 = vpop.permute.xlu0 %2394
  %v2396 = vsel %vm701, %v2393, %v2395
  %v2397 = vsel %vm701, %v2391, %v2393
  %v2398 = vsel %vm701, %v2389, %v2391
  %v2399 = vsel %vm701, %v2395, %v2389
  %v2400 = vmul.f32 %v2399, %v708
  %v2401 = vmul.f32 %v2398, %v709
  %v2402 = vmul.f32 %v2397, %v710
  %v2403 = vmul.f32 %v2396, %v711
  %2404 = vst [vmem:[#allocation2 + $0x120] sm:$0xff] %v2400
  %2405 = vst [vmem:[#allocation2 + $0x128] sm:$0xff] %v2401
  %2406 = vst [vmem:[#allocation2 + $0x130] sm:$0xff] %v2402
  %2407 = vst [vmem:[#allocation2 + $0x138] sm:$0xff] %v2403
  %2408 = vrot.lane.b32.xlu0 %v2204, 2
  %v2409 = vpop.permute.xlu0 %2408
  %2410 = vrot.lane.b32.xlu0 %v2205, 2
  %v2411 = vpop.permute.xlu0 %2410
  %2412 = vrot.lane.b32.xlu0 %v2206, 2
  %v2413 = vpop.permute.xlu0 %2412
  %2414 = vrot.lane.b32.xlu0 %v2207, 2
  %v2415 = vpop.permute.xlu0 %2414
  %v2416 = vsel %vm794, %v2413, %v2415
  %v2417 = vsel %vm794, %v2411, %v2413
  %v2418 = vsel %vm794, %v2409, %v2411
  %v2419 = vsel %vm794, %v2415, %v2409
  %v2420 = vmul.f32 %v2419, %v801
  %v2421 = vmul.f32 %v2418, %v802
  %v2422 = vmul.f32 %v2417, %v803
  %v2423 = vmul.f32 %v2416, %v804
  %2424 = vst [vmem:[#allocation2 + $0x140] sm:$0xff] %v2420
  %2425 = vst [vmem:[#allocation2 + $0x148] sm:$0xff] %v2421
  %2426 = vst [vmem:[#allocation2 + $0x150] sm:$0xff] %v2422
  %2427 = vst [vmem:[#allocation2 + $0x158] sm:$0xff] %v2423
  %2428 = vrot.lane.b32.xlu0 %v2204, 1
  %v2429 = vpop.permute.xlu0 %2428
  %2430 = vrot.lane.b32.xlu0 %v2205, 1
  %v2431 = vpop.permute.xlu0 %2430
  %2432 = vrot.lane.b32.xlu0 %v2206, 1
  %v2433 = vpop.permute.xlu0 %2432
  %2434 = vrot.lane.b32.xlu0 %v2207, 1
  %v2435 = vpop.permute.xlu0 %2434
  %v2436 = vsel %vm825, %v2433, %v2435
  %v2437 = vsel %vm825, %v2431, %v2433
  %v2438 = vsel %vm825, %v2429, %v2431
  %v2439 = vsel %vm825, %v2435, %v2429
  %v2440 = vmul.f32 %v2439, %v832
  %v2441 = vmul.f32 %v2438, %v833
  %v2442 = vmul.f32 %v2437, %v834
  %v2443 = vmul.f32 %v2436, %v835
  %2444 = vst [vmem:[#allocation2 + $0x160] sm:$0xff] %v2440
  %2445 = vst [vmem:[#allocation2 + $0x168] sm:$0xff] %v2441
  %2446 = vst [vmem:[#allocation2 + $0x170] sm:$0xff] %v2442
  %2447 = vst [vmem:[#allocation2 + $0x178] sm:$0xff] %v2443
  %v2448 = vmul.f32 %v2204, %v850
  %v2449 = vmul.f32 %v2205, %v851
  %v2450 = vmul.f32 %v2206, %v852
  %v2451 = vmul.f32 %v2207, %v853
  %2452 = vst [vmem:[#allocation2 + $0x180] sm:$0xff] %v2448
  %2453 = vst [vmem:[#allocation2 + $0x188] sm:$0xff] %v2449
  %2454 = vst [vmem:[#allocation2 + $0x190] sm:$0xff] %v2450
  %2455 = vst [vmem:[#allocation2 + $0x198] sm:$0xff] %v2451
  %2456 = vrot.lane.b32.xlu0 %v2204, 127
  %v2457 = vpop.permute.xlu0 %2456
  %2458 = vrot.lane.b32.xlu0 %v2205, 127
  %v2459 = vpop.permute.xlu0 %2458
  %2460 = vrot.lane.b32.xlu0 %v2206, 127
  %v2461 = vpop.permute.xlu0 %2460
  %2462 = vrot.lane.b32.xlu0 %v2207, 127
  %v2463 = vpop.permute.xlu0 %2462
  %v2464 = vsel %vm874, %v2461, %v2463
  %v2465 = vsel %vm874, %v2459, %v2461
  %v2466 = vsel %vm874, %v2457, %v2459
  %v2467 = vsel %vm874, %v2463, %v2457
  %v2468 = vmul.f32 %v2466, %v881
  %v2469 = vmul.f32 %v2465, %v882
  %v2470 = vmul.f32 %v2464, %v883
  %v2471 = vmul.f32 %v2467, %v884
  %2472 = vst [vmem:[#allocation2 + $0x1a0] sm:$0xff] %v2468
  %2473 = vst [vmem:[#allocation2 + $0x1a8] sm:$0xff] %v2469
  %2474 = vst [vmem:[#allocation2 + $0x1b0] sm:$0xff] %v2470
  %2475 = vst [vmem:[#allocation2 + $0x1b8] sm:$0xff] %v2471
  %2476 = vrot.lane.b32.xlu0 %v2204, 126
  %v2477 = vpop.permute.xlu0 %2476
  %2478 = vrot.lane.b32.xlu0 %v2205, 126
  %v2479 = vpop.permute.xlu0 %2478
  %2480 = vrot.lane.b32.xlu0 %v2206, 126
  %v2481 = vpop.permute.xlu0 %2480
  %2482 = vrot.lane.b32.xlu0 %v2207, 126
  %v2483 = vpop.permute.xlu0 %2482
  %v2484 = vsel %vm905, %v2481, %v2483
  %v2485 = vsel %vm905, %v2479, %v2481
  %v2486 = vsel %vm905, %v2477, %v2479
  %v2487 = vsel %vm905, %v2483, %v2477
  %v2488 = vmul.f32 %v2486, %v912
  %v2489 = vmul.f32 %v2485, %v913
  %v2490 = vmul.f32 %v2484, %v914
  %v2491 = vmul.f32 %v2487, %v915
  %2492 = vst [vmem:[#allocation2 + $0x1c0] sm:$0xff] %v2488
  %2493 = vst [vmem:[#allocation2 + $0x1c8] sm:$0xff] %v2489
  %2494 = vst [vmem:[#allocation2 + $0x1d0] sm:$0xff] %v2490
  %2495 = vst [vmem:[#allocation2 + $0x1d8] sm:$0xff] %v2491
  %2496 = vrot.lane.b32.xlu0 %v2204, 114
  %v2497 = vpop.permute.xlu0 %2496
  %2498 = vrot.lane.b32.xlu0 %v2205, 114
  %v2499 = vpop.permute.xlu0 %2498
  %2500 = vrot.lane.b32.xlu0 %v2206, 114
  %v2501 = vpop.permute.xlu0 %2500
  %2502 = vrot.lane.b32.xlu0 %v2207, 114
  %v2503 = vpop.permute.xlu0 %2502
  %v2504 = vsel %vm998, %v2501, %v2503
  %v2505 = vsel %vm998, %v2499, %v2501
  %v2506 = vsel %vm998, %v2497, %v2499
  %v2507 = vsel %vm998, %v2503, %v2497
  %v2508 = vmul.f32 %v2506, %v1005
  %v2509 = vmul.f32 %v2505, %v1006
  %v2510 = vmul.f32 %v2504, %v1007
  %v2511 = vmul.f32 %v2507, %v1008
  %2512 = vst [vmem:[#allocation2 + $0x1e0] sm:$0xff] %v2508
  %2513 = vst [vmem:[#allocation2 + $0x1e8] sm:$0xff] %v2509
  %2514 = vst [vmem:[#allocation2 + $0x1f0] sm:$0xff] %v2510
  %2515 = vst [vmem:[#allocation2 + $0x1f8] sm:$0xff] %v2511
  %2516 = vrot.lane.b32.xlu0 %v2204, 113
  %v2517 = vpop.permute.xlu0 %2516
  %2518 = vrot.lane.b32.xlu0 %v2205, 113
  %v2519 = vpop.permute.xlu0 %2518
  %2520 = vrot.lane.b32.xlu0 %v2206, 113
  %v2521 = vpop.permute.xlu0 %2520
  %2522 = vrot.lane.b32.xlu0 %v2207, 113
  %v2523 = vpop.permute.xlu0 %2522
  %v2524 = vsel %vm1029, %v2521, %v2523
  %v2525 = vsel %vm1029, %v2519, %v2521
  %v2526 = vsel %vm1029, %v2517, %v2519
  %v2527 = vsel %vm1029, %v2523, %v2517
  %v2528 = vmul.f32 %v2526, %v1036
  %v2529 = vmul.f32 %v2525, %v1037
  %v2530 = vmul.f32 %v2524, %v1038
  %v2531 = vmul.f32 %v2527, %v1039
  %2532 = vst [vmem:[#allocation2 + $0x200] sm:$0xff] %v2528
  %2533 = vst [vmem:[#allocation2 + $0x208] sm:$0xff] %v2529
  %2534 = vst [vmem:[#allocation2 + $0x210] sm:$0xff] %v2530
  %2535 = vst [vmem:[#allocation2 + $0x218] sm:$0xff] %v2531
  %2536 = vrot.lane.b32.xlu0 %v2204, 112
  %v2537 = vpop.permute.xlu0 %2536
  %2538 = vrot.lane.b32.xlu0 %v2205, 112
  %v2539 = vpop.permute.xlu0 %2538
  %2540 = vrot.lane.b32.xlu0 %v2206, 112
  %v2541 = vpop.permute.xlu0 %2540
  %2542 = vrot.lane.b32.xlu0 %v2207, 112
  %v2543 = vpop.permute.xlu0 %2542
  %v2544 = vsel %vm1060, %v2541, %v2543
  %v2545 = vsel %vm1060, %v2539, %v2541
  %v2546 = vsel %vm1060, %v2537, %v2539
  %v2547 = vsel %vm1060, %v2543, %v2537
  %v2548 = vmul.f32 %v2546, %v1067
  %v2549 = vmul.f32 %v2545, %v1068
  %v2550 = vmul.f32 %v2544, %v1069
  %v2551 = vmul.f32 %v2547, %v1070
  %2552 = vst [vmem:[#allocation2 + $0x220] sm:$0xff] %v2548
  %2553 = vst [vmem:[#allocation2 + $0x228] sm:$0xff] %v2549
  %2554 = vst [vmem:[#allocation2 + $0x230] sm:$0xff] %v2550
  %2555 = vst [vmem:[#allocation2 + $0x238] sm:$0xff] %v2551
  %2556 = vrot.lane.b32.xlu0 %v2204, 111
  %v2557 = vpop.permute.xlu0 %2556
  %2558 = vrot.lane.b32.xlu0 %v2205, 111
  %v2559 = vpop.permute.xlu0 %2558
  %2560 = vrot.lane.b32.xlu0 %v2206, 111
  %v2561 = vpop.permute.xlu0 %2560
  %2562 = vrot.lane.b32.xlu0 %v2207, 111
  %v2563 = vpop.permute.xlu0 %2562
  %v2564 = vsel %vm1091, %v2561, %v2563
  %v2565 = vsel %vm1091, %v2559, %v2561
  %v2566 = vsel %vm1091, %v2557, %v2559
  %v2567 = vsel %vm1091, %v2563, %v2557
  %v2568 = vmul.f32 %v2566, %v1098
  %v2569 = vmul.f32 %v2565, %v1099
  %v2570 = vmul.f32 %v2564, %v1100
  %v2571 = vmul.f32 %v2567, %v1101
  %2572 = vst [vmem:[#allocation2 + $0x240] sm:$0xff] %v2568
  %2573 = vst [vmem:[#allocation2 + $0x248] sm:$0xff] %v2569
  %2574 = vst [vmem:[#allocation2 + $0x250] sm:$0xff] %v2570
  %2575 = vst [vmem:[#allocation2 + $0x258] sm:$0xff] %v2571
  %2576 = vrot.lane.b32.xlu0 %v2204, 110
  %v2577 = vpop.permute.xlu0 %2576
  %2578 = vrot.lane.b32.xlu0 %v2205, 110
  %v2579 = vpop.permute.xlu0 %2578
  %2580 = vrot.lane.b32.xlu0 %v2206, 110
  %v2581 = vpop.permute.xlu0 %2580
  %2582 = vrot.lane.b32.xlu0 %v2207, 110
  %v2583 = vpop.permute.xlu0 %2582
  %v2584 = vsel %vm1122, %v2581, %v2583
  %v2585 = vsel %vm1122, %v2579, %v2581
  %v2586 = vsel %vm1122, %v2577, %v2579
  %v2587 = vsel %vm1122, %v2583, %v2577
  %v2588 = vmul.f32 %v2586, %v1129
  %v2589 = vmul.f32 %v2585, %v1130
  %v2590 = vmul.f32 %v2584, %v1131
  %v2591 = vmul.f32 %v2587, %v1132
  %2592 = vst [vmem:[#allocation2 + $0x260] sm:$0xff] %v2588
  %2593 = vst [vmem:[#allocation2 + $0x268] sm:$0xff] %v2589
  %2594 = vst [vmem:[#allocation2 + $0x270] sm:$0xff] %v2590
  %2595 = vst [vmem:[#allocation2 + $0x278] sm:$0xff] %v2591
  %2596 = vrot.lane.b32.xlu0 %v2204, 98
  %v2597 = vpop.permute.xlu0 %2596
  %2598 = vrot.lane.b32.xlu0 %v2205, 98
  %v2599 = vpop.permute.xlu0 %2598
  %2600 = vrot.lane.b32.xlu0 %v2206, 98
  %v2601 = vpop.permute.xlu0 %2600
  %2602 = vrot.lane.b32.xlu0 %v2207, 98
  %v2603 = vpop.permute.xlu0 %2602
  %v2604 = vsel %vm1215, %v2601, %v2603
  %v2605 = vsel %vm1215, %v2599, %v2601
  %v2606 = vsel %vm1215, %v2597, %v2599
  %v2607 = vsel %vm1215, %v2603, %v2597
  %v2608 = vmul.f32 %v2606, %v1222
  %v2609 = vmul.f32 %v2605, %v1223
  %v2610 = vmul.f32 %v2604, %v1224
  %v2611 = vmul.f32 %v2607, %v1225
  %2612 = vst [vmem:[#allocation2 + $0x280] sm:$0xff] %v2608
  %2613 = vst [vmem:[#allocation2 + $0x288] sm:$0xff] %v2609
  %2614 = vst [vmem:[#allocation2 + $0x290] sm:$0xff] %v2610
  %2615 = vst [vmem:[#allocation2 + $0x298] sm:$0xff] %v2611
  %2616 = vrot.lane.b32.xlu0 %v2204, 97
  %v2617 = vpop.permute.xlu0 %2616
  %2618 = vrot.lane.b32.xlu0 %v2205, 97
  %v2619 = vpop.permute.xlu0 %2618
  %2620 = vrot.lane.b32.xlu0 %v2206, 97
  %v2621 = vpop.permute.xlu0 %2620
  %2622 = vrot.lane.b32.xlu0 %v2207, 97
  %v2623 = vpop.permute.xlu0 %2622
  %v2624 = vsel %vm1246, %v2621, %v2623
  %v2625 = vsel %vm1246, %v2619, %v2621
  %v2626 = vsel %vm1246, %v2617, %v2619
  %v2627 = vsel %vm1246, %v2623, %v2617
  %v2628 = vmul.f32 %v2626, %v1253
  %v2629 = vmul.f32 %v2625, %v1254
  %v2630 = vmul.f32 %v2624, %v1255
  %v2631 = vmul.f32 %v2627, %v1256
  %2632 = vst [vmem:[#allocation2 + $0x2a0] sm:$0xff] %v2628
  %2633 = vst [vmem:[#allocation2 + $0x2a8] sm:$0xff] %v2629
  %2634 = vst [vmem:[#allocation2 + $0x2b0] sm:$0xff] %v2630
  %2635 = vst [vmem:[#allocation2 + $0x2b8] sm:$0xff] %v2631
  %2636 = vrot.lane.b32.xlu0 %v2204, 96
  %v2637 = vpop.permute.xlu0 %2636
  %2638 = vrot.lane.b32.xlu0 %v2205, 96
  %v2639 = vpop.permute.xlu0 %2638
  %2640 = vrot.lane.b32.xlu0 %v2206, 96
  %v2641 = vpop.permute.xlu0 %2640
  %2642 = vrot.lane.b32.xlu0 %v2207, 96
  %v2643 = vpop.permute.xlu0 %2642
  %v2644 = vsel %vm1277, %v2641, %v2643
  %v2645 = vsel %vm1277, %v2639, %v2641
  %v2646 = vsel %vm1277, %v2637, %v2639
  %v2647 = vsel %vm1277, %v2643, %v2637
  %v2648 = vmul.f32 %v2646, %v1284
  %v2649 = vmul.f32 %v2645, %v1285
  %v2650 = vmul.f32 %v2644, %v1286
  %v2651 = vmul.f32 %v2647, %v1287
  %2652 = vst [vmem:[#allocation2 + $0x2c0] sm:$0xff] %v2648
  %2653 = vst [vmem:[#allocation2 + $0x2c8] sm:$0xff] %v2649
  %2654 = vst [vmem:[#allocation2 + $0x2d0] sm:$0xff] %v2650
  %2655 = vst [vmem:[#allocation2 + $0x2d8] sm:$0xff] %v2651
  %2656 = vrot.lane.b32.xlu0 %v2204, 95
  %v2657 = vpop.permute.xlu0 %2656
  %2658 = vrot.lane.b32.xlu0 %v2205, 95
  %v2659 = vpop.permute.xlu0 %2658
  %2660 = vrot.lane.b32.xlu0 %v2206, 95
  %v2661 = vpop.permute.xlu0 %2660
  %2662 = vrot.lane.b32.xlu0 %v2207, 95
  %v2663 = vpop.permute.xlu0 %2662
  %v2664 = vsel %vm1308, %v2661, %v2663
  %v2665 = vsel %vm1308, %v2659, %v2661
  %v2666 = vsel %vm1308, %v2657, %v2659
  %v2667 = vsel %vm1308, %v2663, %v2657
  %v2668 = vmul.f32 %v2666, %v1315
  %v2669 = vmul.f32 %v2665, %v1316
  %v2670 = vmul.f32 %v2664, %v1317
  %v2671 = vmul.f32 %v2667, %v1318
  %2672 = vst [vmem:[#allocation2 + $0x2e0] sm:$0xff] %v2668
  %2673 = vst [vmem:[#allocation2 + $0x2e8] sm:$0xff] %v2669
  %2674 = vst [vmem:[#allocation2 + $0x2f0] sm:$0xff] %v2670
  %2675 = vst [vmem:[#allocation2 + $0x2f8] sm:$0xff] %v2671
  %2676 = vrot.lane.b32.xlu0 %v2204, 94
  %v2677 = vpop.permute.xlu0 %2676
  %2678 = vrot.lane.b32.xlu0 %v2205, 94
  %v2679 = vpop.permute.xlu0 %2678
  %2680 = vrot.lane.b32.xlu0 %v2206, 94
  %v2681 = vpop.permute.xlu0 %2680
  %2682 = vrot.lane.b32.xlu0 %v2207, 94
  %v2683 = vpop.permute.xlu0 %2682
  %v2684 = vsel %vm1339, %v2681, %v2683
  %v2685 = vsel %vm1339, %v2679, %v2681
  %v2686 = vsel %vm1339, %v2677, %v2679
  %v2687 = vsel %vm1339, %v2683, %v2677
  %v2688 = vmul.f32 %v2686, %v1346
  %v2689 = vmul.f32 %v2685, %v1347
  %v2690 = vmul.f32 %v2684, %v1348
  %v2691 = vmul.f32 %v2687, %v1349
  %2692 = vst [vmem:[#allocation2 + $0x300] sm:$0xff] %v2688
  %2693 = vst [vmem:[#allocation2 + $0x308] sm:$0xff] %v2689
  %2694 = vst [vmem:[#allocation2 + $0x310] sm:$0xff] %v2690
  %2695 = vst [vmem:[#allocation2 + $0x318] sm:$0xff] %v2691
  %v2696 = vld [vmem:[%s5] sm:$0xff]
  %v2697 = vld [vmem:[%s5 + $0x8] sm:$0xff]
  %v2698 = vld [vmem:[%s5 + $0x10] sm:$0xff]
  %v2699 = vld [vmem:[%s5 + $0x18] sm:$0xff]
  %v2700 = vld [vmem:[#allocation2] sm:$0xff]
  %v2701 = vld [vmem:[#allocation2 + $0x8] sm:$0xff]
  %v2702 = vld [vmem:[#allocation2 + $0x10] sm:$0xff]
  %v2703 = vld [vmem:[#allocation2 + $0x18] sm:$0xff]
  %v2704 = vld [vmem:[#allocation2 + $0x20] sm:$0xff]
  %v2705 = vld [vmem:[#allocation2 + $0x28] sm:$0xff]
  %v2706 = vld [vmem:[#allocation2 + $0x30] sm:$0xff]
  %v2707 = vld [vmem:[#allocation2 + $0x38] sm:$0xff]
  %v2708 = vld [vmem:[#allocation2 + $0x40] sm:$0xff]
  %v2709 = vld [vmem:[#allocation2 + $0x48] sm:$0xff]
  %v2710 = vld [vmem:[#allocation2 + $0x50] sm:$0xff]
  %v2711 = vld [vmem:[#allocation2 + $0x58] sm:$0xff]
  %v2712 = vld [vmem:[#allocation2 + $0x60] sm:$0xff]
  %v2713 = vld [vmem:[#allocation2 + $0x68] sm:$0xff]
  %v2714 = vld [vmem:[#allocation2 + $0x70] sm:$0xff]
  %v2715 = vld [vmem:[#allocation2 + $0x78] sm:$0xff]
  %v2716 = vld [vmem:[#allocation2 + $0x80] sm:$0xff]
  %v2717 = vld [vmem:[#allocation2 + $0x88] sm:$0xff]
  %v2718 = vld [vmem:[#allocation2 + $0x90] sm:$0xff]
  %v2719 = vld [vmem:[#allocation2 + $0x98] sm:$0xff]
  %v2720 = vld [vmem:[#allocation2 + $0xa0] sm:$0xff]
  %v2721 = vld [vmem:[#allocation2 + $0xa8] sm:$0xff]
  %v2722 = vld [vmem:[#allocation2 + $0xb0] sm:$0xff]
  %v2723 = vld [vmem:[#allocation2 + $0xb8] sm:$0xff]
  %v2724 = vld [vmem:[#allocation2 + $0xc0] sm:$0xff]
  %v2725 = vld [vmem:[#allocation2 + $0xc8] sm:$0xff]
  %v2726 = vld [vmem:[#allocation2 + $0xd0] sm:$0xff]
  %v2727 = vld [vmem:[#allocation2 + $0xd8] sm:$0xff]
  %v2728 = vld [vmem:[#allocation2 + $0xe0] sm:$0xff]
  %v2729 = vld [vmem:[#allocation2 + $0xe8] sm:$0xff]
  %v2730 = vld [vmem:[#allocation2 + $0xf0] sm:$0xff]
  %v2731 = vld [vmem:[#allocation2 + $0xf8] sm:$0xff]
  %v2732 = vld [vmem:[#allocation2 + $0x100] sm:$0xff]
  %v2733 = vld [vmem:[#allocation2 + $0x108] sm:$0xff]
  %v2734 = vld [vmem:[#allocation2 + $0x110] sm:$0xff]
  %v2735 = vld [vmem:[#allocation2 + $0x118] sm:$0xff]
  %v2736 = vld [vmem:[#allocation2 + $0x120] sm:$0xff]
  %v2737 = vld [vmem:[#allocation2 + $0x128] sm:$0xff]
  %v2738 = vld [vmem:[#allocation2 + $0x130] sm:$0xff]
  %v2739 = vld [vmem:[#allocation2 + $0x138] sm:$0xff]
  %v2740 = vld [vmem:[#allocation2 + $0x140] sm:$0xff]
  %v2741 = vld [vmem:[#allocation2 + $0x148] sm:$0xff]
  %v2742 = vld [vmem:[#allocation2 + $0x150] sm:$0xff]
  %v2743 = vld [vmem:[#allocation2 + $0x158] sm:$0xff]
  %v2744 = vld [vmem:[#allocation2 + $0x160] sm:$0xff]
  %v2745 = vld [vmem:[#allocation2 + $0x168] sm:$0xff]
  %v2746 = vld [vmem:[#allocation2 + $0x170] sm:$0xff]
  %v2747 = vld [vmem:[#allocation2 + $0x178] sm:$0xff]
  %v2748 = vld [vmem:[#allocation2 + $0x180] sm:$0xff]
  %v2749 = vld [vmem:[#allocation2 + $0x188] sm:$0xff]
  %v2750 = vld [vmem:[#allocation2 + $0x190] sm:$0xff]
  %v2751 = vld [vmem:[#allocation2 + $0x198] sm:$0xff]
  %v2752 = vld [vmem:[#allocation2 + $0x1a0] sm:$0xff]
  %v2753 = vld [vmem:[#allocation2 + $0x1a8] sm:$0xff]
  %v2754 = vld [vmem:[#allocation2 + $0x1b0] sm:$0xff]
  %v2755 = vld [vmem:[#allocation2 + $0x1b8] sm:$0xff]
  %v2756 = vld [vmem:[#allocation2 + $0x1c0] sm:$0xff]
  %v2757 = vld [vmem:[#allocation2 + $0x1c8] sm:$0xff]
  %v2758 = vld [vmem:[#allocation2 + $0x1d0] sm:$0xff]
  %v2759 = vld [vmem:[#allocation2 + $0x1d8] sm:$0xff]
  %v2760 = vld [vmem:[#allocation2 + $0x1e0] sm:$0xff]
  %v2761 = vld [vmem:[#allocation2 + $0x1e8] sm:$0xff]
  %v2762 = vld [vmem:[#allocation2 + $0x1f0] sm:$0xff]
  %v2763 = vld [vmem:[#allocation2 + $0x1f8] sm:$0xff]
  %v2764 = vld [vmem:[#allocation2 + $0x200] sm:$0xff]
  %v2765 = vld [vmem:[#allocation2 + $0x208] sm:$0xff]
  %v2766 = vld [vmem:[#allocation2 + $0x210] sm:$0xff]
  %v2767 = vld [vmem:[#allocation2 + $0x218] sm:$0xff]
  %v2768 = vld [vmem:[#allocation2 + $0x220] sm:$0xff]
  %v2769 = vld [vmem:[#allocation2 + $0x228] sm:$0xff]
  %v2770 = vld [vmem:[#allocation2 + $0x230] sm:$0xff]
  %v2771 = vld [vmem:[#allocation2 + $0x238] sm:$0xff]
  %v2772 = vld [vmem:[#allocation2 + $0x240] sm:$0xff]
  %v2773 = vld [vmem:[#allocation2 + $0x248] sm:$0xff]
  %v2774 = vld [vmem:[#allocation2 + $0x250] sm:$0xff]
  %v2775 = vld [vmem:[#allocation2 + $0x258] sm:$0xff]
  %v2776 = vld [vmem:[#allocation2 + $0x260] sm:$0xff]
  %v2777 = vld [vmem:[#allocation2 + $0x268] sm:$0xff]
  %v2778 = vld [vmem:[#allocation2 + $0x270] sm:$0xff]
  %v2779 = vld [vmem:[#allocation2 + $0x278] sm:$0xff]
  %v2780 = vld [vmem:[#allocation2 + $0x280] sm:$0xff]
  %v2781 = vld [vmem:[#allocation2 + $0x288] sm:$0xff]
  %v2782 = vld [vmem:[#allocation2 + $0x290] sm:$0xff]
  %v2783 = vld [vmem:[#allocation2 + $0x298] sm:$0xff]
  %v2784 = vld [vmem:[#allocation2 + $0x2a0] sm:$0xff]
  %v2785 = vld [vmem:[#allocation2 + $0x2a8] sm:$0xff]
  %v2786 = vld [vmem:[#allocation2 + $0x2b0] sm:$0xff]
  %v2787 = vld [vmem:[#allocation2 + $0x2b8] sm:$0xff]
  %v2788 = vld [vmem:[#allocation2 + $0x2c0] sm:$0xff]
  %v2789 = vld [vmem:[#allocation2 + $0x2c8] sm:$0xff]
  %v2790 = vld [vmem:[#allocation2 + $0x2d0] sm:$0xff]
  %v2791 = vld [vmem:[#allocation2 + $0x2d8] sm:$0xff]
  %v2792 = vld [vmem:[#allocation2 + $0x2e0] sm:$0xff]
  %v2793 = vld [vmem:[#allocation2 + $0x2e8] sm:$0xff]
  %v2794 = vld [vmem:[#allocation2 + $0x2f0] sm:$0xff]
  %v2795 = vld [vmem:[#allocation2 + $0x2f8] sm:$0xff]
  %v2796 = vld [vmem:[#allocation2 + $0x300] sm:$0xff]
  %v2797 = vld [vmem:[#allocation2 + $0x308] sm:$0xff]
  %v2798 = vld [vmem:[#allocation2 + $0x310] sm:$0xff]
  %v2799 = vld [vmem:[#allocation2 + $0x318] sm:$0xff]
  %vm2800 = vcmask 588800
  %v2802 = vsel %vm2800, %v2697, 0
  %v2805 = vsel %vm2800, %v2699, 0
  %2807 = vmatpush.msra.mxu0 %v2760
  %2808 = vmatpush.msra.mxu0 %v2756
  %2809 = vmatpush.msra.mxu0 %v2752
  %2810 = vmatpush.msra.mxu0 %v2748
  %2811 = vmatpush.msra.mxu0 %v2744
  %2812 = vmatpush.msra.mxu0 %v2740
  %2813 = vmatpush.msra.mxu0 %v2736
  %2814 = vmatpush.msra.mxu0 %v2732
  %2815 = vmatpush.msra.mxu0 %v2728
  %2816 = vmatpush.msra.mxu0 %v2724
  %2817 = vmatpush.msra.mxu0 %v2720
  %2818 = vmatpush.msra.mxu0 %v2716
  %2819 = vmatpush.msra.mxu0 %v2712
  %2820 = vmatpush.msra.mxu0 %v2708
  %2821 = vmatpush.msra.mxu0 %v2704
  %2822 = vmatpush.msra.mxu0 %v2700
  %2823 = vmatmul.f32.gmra.mxu0 %v2696
  %v2824 = vpop.f32.mrf.mxu0
  %v2825 = vadd.f32 0.0, %v2824
  %2826 = vmatmul.f32.gmra.mxu0 %v2698
  %v2827 = vpop.f32.mrf.mxu0
  %v2828 = vadd.f32 0.0, %v2827
  %2829 = vdwg.mxu0
  %2830 = vmatpush.msra.mxu0 0.0
  %2831 = vmatpush.msra.mxu0 0.0
  %2832 = vmatpush.msra.mxu0 0.0
  %2833 = vmatpush.msra.mxu0 0.0
  %2834 = vmatpush.msra.mxu0 0.0
  %2835 = vmatpush.msra.mxu0 0.0
  %2836 = vmatpush.msra.mxu0 0.0
  %2837 = vmatpush.msra.mxu0 %v2796
  %2838 = vmatpush.msra.mxu0 %v2792
  %2839 = vmatpush.msra.mxu0 %v2788
  %2840 = vmatpush.msra.mxu0 %v2784
  %2841 = vmatpush.msra.mxu0 %v2780
  %2842 = vmatpush.msra.mxu0 %v2776
  %2843 = vmatpush.msra.mxu0 %v2772
  %2844 = vmatpush.msra.mxu0 %v2768
  %2845 = vmatpush.msra.mxu0 %v2764
  %2846 = vmatmul.f32.gmra.mxu0 %v2802
  %v2847 = vpop.f32.mrf.mxu0
  %v2848 = vadd.f32 %v2825, %v2847
  %2849 = vmatmul.f32.gmra.mxu0 %v2805
  %v2850 = vpop.f32.mrf.mxu0
  %v2851 = vadd.f32 %v2828, %v2850
  %2852 = vdwg.mxu0
  %2853 = vmatpush.msra.mxu0 %v2761
  %2854 = vmatpush.msra.mxu0 %v2757
  %2855 = vmatpush.msra.mxu0 %v2753
  %2856 = vmatpush.msra.mxu0 %v2749
  %2857 = vmatpush.msra.mxu0 %v2745
  %2858 = vmatpush.msra.mxu0 %v2741
  %2859 = vmatpush.msra.mxu0 %v2737
  %2860 = vmatpush.msra.mxu0 %v2733
  %2861 = vmatpush.msra.mxu0 %v2729
  %2862 = vmatpush.msra.mxu0 %v2725
  %2863 = vmatpush.msra.mxu0 %v2721
  %2864 = vmatpush.msra.mxu0 %v2717
  %2865 = vmatpush.msra.mxu0 %v2713
  %2866 = vmatpush.msra.mxu0 %v2709
  %2867 = vmatpush.msra.mxu0 %v2705
  %2868 = vmatpush.msra.mxu0 %v2701
  %2869 = vmatmul.f32.gmra.mxu0 %v2696
  %v2870 = vpop.f32.mrf.mxu0
  %v2871 = vadd.f32 0.0, %v2870
  %2872 = vmatmul.f32.gmra.mxu0 %v2698
  %v2873 = vpop.f32.mrf.mxu0
  %v2874 = vadd.f32 0.0, %v2873
  %2875 = vdwg.mxu0
  %2876 = vmatpush.msra.mxu0 0.0
  %2877 = vmatpush.msra.mxu0 0.0
  %2878 = vmatpush.msra.mxu0 0.0
  %2879 = vmatpush.msra.mxu0 0.0
  %2880 = vmatpush.msra.mxu0 0.0
  %2881 = vmatpush.msra.mxu0 0.0
  %2882 = vmatpush.msra.mxu0 0.0
  %2883 = vmatpush.msra.mxu0 %v2797
  %2884 = vmatpush.msra.mxu0 %v2793
  %2885 = vmatpush.msra.mxu0 %v2789
  %2886 = vmatpush.msra.mxu0 %v2785
  %2887 = vmatpush.msra.mxu0 %v2781
  %2888 = vmatpush.msra.mxu0 %v2777
  %2889 = vmatpush.msra.mxu0 %v2773
  %2890 = vmatpush.msra.mxu0 %v2769
  %2891 = vmatpush.msra.mxu0 %v2765
  %2892 = vmatmul.f32.gmra.mxu0 %v2802
  %v2893 = vpop.f32.mrf.mxu0
  %v2894 = vadd.f32 %v2871, %v2893
  %2895 = vmatmul.f32.gmra.mxu0 %v2805
  %v2896 = vpop.f32.mrf.mxu0
  %v2897 = vadd.f32 %v2874, %v2896
  %2898 = vdwg.mxu0
  %2899 = vmatpush.msra.mxu0 %v2762
  %2900 = vmatpush.msra.mxu0 %v2758
  %2901 = vmatpush.msra.mxu0 %v2754
  %2902 = vmatpush.msra.mxu0 %v2750
  %2903 = vmatpush.msra.mxu0 %v2746
  %2904 = vmatpush.msra.mxu0 %v2742
  %2905 = vmatpush.msra.mxu0 %v2738
  %2906 = vmatpush.msra.mxu0 %v2734
  %2907 = vmatpush.msra.mxu0 %v2730
  %2908 = vmatpush.msra.mxu0 %v2726
  %2909 = vmatpush.msra.mxu0 %v2722
  %2910 = vmatpush.msra.mxu0 %v2718
  %2911 = vmatpush.msra.mxu0 %v2714
  %2912 = vmatpush.msra.mxu0 %v2710
  %2913 = vmatpush.msra.mxu0 %v2706
  %2914 = vmatpush.msra.mxu0 %v2702
  %2915 = vmatmul.f32.gmra.mxu0 %v2696
  %v2916 = vpop.f32.mrf.mxu0
  %v2917 = vadd.f32 0.0, %v2916
  %2918 = vmatmul.f32.gmra.mxu0 %v2698
  %v2919 = vpop.f32.mrf.mxu0
  %v2920 = vadd.f32 0.0, %v2919
  %2921 = vdwg.mxu0
  %2922 = vmatpush.msra.mxu0 0.0
  %2923 = vmatpush.msra.mxu0 0.0
  %2924 = vmatpush.msra.mxu0 0.0
  %2925 = vmatpush.msra.mxu0 0.0
  %2926 = vmatpush.msra.mxu0 0.0
  %2927 = vmatpush.msra.mxu0 0.0
  %2928 = vmatpush.msra.mxu0 0.0
  %2929 = vmatpush.msra.mxu0 %v2798
  %2930 = vmatpush.msra.mxu0 %v2794
  %2931 = vmatpush.msra.mxu0 %v2790
  %2932 = vmatpush.msra.mxu0 %v2786
  %2933 = vmatpush.msra.mxu0 %v2782
  %2934 = vmatpush.msra.mxu0 %v2778
  %2935 = vmatpush.msra.mxu0 %v2774
  %2936 = vmatpush.msra.mxu0 %v2770
  %2937 = vmatpush.msra.mxu0 %v2766
  %2938 = vmatmul.f32.gmra.mxu0 %v2802
  %v2939 = vpop.f32.mrf.mxu0
  %v2940 = vadd.f32 %v2917, %v2939
  %2941 = vmatmul.f32.gmra.mxu0 %v2805
  %v2942 = vpop.f32.mrf.mxu0
  %v2943 = vadd.f32 %v2920, %v2942
  %2944 = vdwg.mxu0
  %2945 = vmatpush.msra.mxu0 %v2763
  %2946 = vmatpush.msra.mxu0 %v2759
  %2947 = vmatpush.msra.mxu0 %v2755
  %2948 = vmatpush.msra.mxu0 %v2751
  %2949 = vmatpush.msra.mxu0 %v2747
  %2950 = vmatpush.msra.mxu0 %v2743
  %2951 = vmatpush.msra.mxu0 %v2739
  %2952 = vmatpush.msra.mxu0 %v2735
  %2953 = vmatpush.msra.mxu0 %v2731
  %2954 = vmatpush.msra.mxu0 %v2727
  %2955 = vmatpush.msra.mxu0 %v2723
  %2956 = vmatpush.msra.mxu0 %v2719
  %2957 = vmatpush.msra.mxu0 %v2715
  %2958 = vmatpush.msra.mxu0 %v2711
  %2959 = vmatpush.msra.mxu0 %v2707
  %2960 = vmatpush.msra.mxu0 %v2703
  %2961 = vmatmul.f32.gmra.mxu0 %v2696
  %v2962 = vpop.f32.mrf.mxu0
  %v2963 = vadd.f32 0.0, %v2962
  %2964 = vmatmul.f32.gmra.mxu0 %v2698
  %v2965 = vpop.f32.mrf.mxu0
  %v2966 = vadd.f32 0.0, %v2965
  %2967 = vdwg.mxu0
  %2968 = vmatpush.msra.mxu0 0.0
  %2969 = vmatpush.msra.mxu0 0.0
  %2970 = vmatpush.msra.mxu0 0.0
  %2971 = vmatpush.msra.mxu0 0.0
  %2972 = vmatpush.msra.mxu0 0.0
  %2973 = vmatpush.msra.mxu0 0.0
  %2974 = vmatpush.msra.mxu0 0.0
  %2975 = vmatpush.msra.mxu0 %v2799
  %2976 = vmatpush.msra.mxu0 %v2795
  %2977 = vmatpush.msra.mxu0 %v2791
  %2978 = vmatpush.msra.mxu0 %v2787
  %2979 = vmatpush.msra.mxu0 %v2783
  %2980 = vmatpush.msra.mxu0 %v2779
  %2981 = vmatpush.msra.mxu0 %v2775
  %2982 = vmatpush.msra.mxu0 %v2771
  %2983 = vmatpush.msra.mxu0 %v2767
  %2984 = vmatmul.f32.gmra.mxu0 %v2802
  %v2985 = vpop.f32.mrf.mxu0
  %v2986 = vadd.f32 %v2963, %v2985
  %2987 = vmatmul.f32.gmra.mxu0 %v2805
  %v2988 = vpop.f32.mrf.mxu0
  %v2989 = vadd.f32 %v2966, %v2988
  %2990 = vdwg.mxu0
  %v2991 = vadd.f32 %v2848, %v2894
  %v2992 = vadd.f32 %v2991, %v2940
  %v2993 = vadd.f32 %v2992, %v2986
  %2994 = vadd.xlane.f32.xlu0 %v2993
  %v2995 = vpop.xlane.xlu0 %2994
  %v2996 = vadd.f32 %v2851, %v2897
  %v2997 = vadd.f32 %v2996, %v2943
  %v2998 = vadd.f32 %v2997, %v2989
  %2999 = vadd.xlane.f32.xlu0 %v2998
  %v3000 = vpop.xlane.xlu0 %2999
  %v3001 = vmul.f32 %v2995, 0.001953125
  %v3002 = vmul.f32 %v3000, 0.001953125
  %v3003 = vsub.f32 %v2848, %v3001
  %v3004 = vsub.f32 %v2894, %v3001
  %v3005 = vsub.f32 %v2940, %v3001
  %v3006 = vsub.f32 %v2986, %v3001
  %v3007 = vsub.f32 %v2851, %v3002
  %v3008 = vsub.f32 %v2897, %v3002
  %v3009 = vsub.f32 %v2943, %v3002
  %v3010 = vsub.f32 %v2989, %v3002
  %v3011 = vmul.f32 %v3003, %v2145
  %v3012 = vmul.f32 %v3004, %v2146
  %v3013 = vmul.f32 %v3005, %v2147
  %v3014 = vmul.f32 %v3006, %v2148
  %v3015 = vmul.f32 %v3007, %v2145
  %v3016 = vmul.f32 %v3008, %v2146
  %v3017 = vmul.f32 %v3009, %v2147
  %v3018 = vmul.f32 %v3010, %v2148
  %v3019 = vmul.f32 %v3011, %v3011
  %v3020 = vmul.f32 %v3012, %v3012
  %v3021 = vmul.f32 %v3013, %v3013
  %v3022 = vmul.f32 %v3014, %v3014
  %v3023 = vmul.f32 %v3015, %v3015
  %v3024 = vmul.f32 %v3016, %v3016
  %v3025 = vmul.f32 %v3017, %v3017
  %v3026 = vmul.f32 %v3018, %v3018
  %v3027 = vadd.f32 %v3019, %v3020
  %v3028 = vadd.f32 %v3027, %v3021
  %v3029 = vadd.f32 %v3028, %v3022
  %3030 = vadd.xlane.f32.xlu0 %v3029
  %v3031 = vpop.xlane.xlu0 %3030
  %v3032 = vadd.f32 %v3023, %v3024
  %v3033 = vadd.f32 %v3032, %v3025
  %v3034 = vadd.f32 %v3033, %v3026
  %3035 = vadd.xlane.f32.xlu0 %v3034
  %v3036 = vpop.xlane.xlu0 %3035
  %v3037 = vmul.f32 %v3031, 0.001953125
  %v3038 = vmul.f32 %v3036, 0.001953125
  %v3039 = vld [vmem:[%s6] sm:$0xff]
  %v3040 = vld [vmem:[%s6 + $0x8] sm:$0xff]
  %v3041 = vadd.f32 %v3037, 1e-05
  %v3042 = vadd.f32 %v3038, 1e-05
  %v3043 = vrsqrt.pop %v3041
  %v3044 = vmul.f32 %v3043, %v3041
  %v3045 = vmul.f32 %v3044, %v3043
  %v3046 = vmul.f32 0.5, %v3045
  %v3047 = vsub.f32 1.5, %v3046
  %v3048 = vmul.f32 %v3043, %v3047
  %vm3049 = vweird.f32 %v3041
  %vm3050 = vweird.f32 %v3043
  %vm3051 = vmor %vm3049, %vm3050
  %v3052 = vsel %vm3051, %v3043, %v3048
  %v3053 = vrsqrt.pop %v3042
  %v3054 = vmul.f32 %v3053, %v3042
  %v3055 = vmul.f32 %v3054, %v3053
  %v3056 = vmul.f32 0.5, %v3055
  %v3057 = vsub.f32 1.5, %v3056
  %v3058 = vmul.f32 %v3053, %v3057
  %vm3059 = vweird.f32 %v3042
  %vm3060 = vweird.f32 %v3053
  %vm3061 = vmor %vm3059, %vm3060
  %v3062 = vsel %vm3061, %v3053, %v3058
  %v3063 = vmul.f32 %v3039, %v3052
  %v3064 = vmul.f32 %v3040, %v3062
  %v3065 = vmul.f32 %v3001, %v3063
  %v3066 = vmul.f32 %v3002, %v3064
  %3069 = vrot.lane.b32.xlu0 %v3065, 1
  %v3070 = vpop.permute.xlu0 %3069
  %3071 = vrot.lane.b32.xlu0 %v3066, 1
  %v3072 = vpop.permute.xlu0 %3071
  %v3075 = vsub.f32 %v3039, %v3070
  %v3076 = vsub.f32 %v3040, %v3072
  %3078 = vset.pattern.permute.xlu0 0
  %3079 = vperm.xlu0 %3078, %v3063
  %v3080 = vpop.permute.xlu0 %3079
  %3083 = vset.pattern.permute.xlu0 0
  %3084 = vperm.xlu0 %3083, %v3064
  %v3085 = vpop.permute.xlu0 %3084
  %v3087 = vmul.f32 %v2848, %v3080
  %v3088 = vmul.f32 %v2894, %v3080
  %v3089 = vmul.f32 %v2940, %v3080
  %v3090 = vmul.f32 %v2986, %v3080
  %v3091 = vmul.f32 %v2851, %v3085
  %v3092 = vmul.f32 %v2897, %v3085
  %v3093 = vmul.f32 %v2943, %v3085
  %v3094 = vmul.f32 %v2989, %v3085
  %3096 = vset.pattern.permute.xlu0 1
  %3097 = vperm.xlu0 %3096, %v3075
  %v3098 = vpop.permute.xlu0 %3097
  %3101 = vset.pattern.permute.xlu0 1
  %3102 = vperm.xlu0 %3101, %v3076
  %v3103 = vpop.permute.xlu0 %3102
  %v3105 = vadd.f32 %v3087, %v3098
  %v3106 = vadd.f32 %v3088, %v3098
  %v3107 = vadd.f32 %v3089, %v3098
  %v3108 = vadd.f32 %v3090, %v3098
  %v3109 = vadd.f32 %v3091, %v3103
  %v3110 = vadd.f32 %v3092, %v3103
  %v3111 = vadd.f32 %v3093, %v3103
  %v3112 = vadd.f32 %v3094, %v3103
  %v3113 = vmax.f32 %v3105, 0.0
  %v3114 = vmax.f32 %v3106, 0.0
  %v3115 = vmax.f32 %v3107, 0.0
  %v3116 = vmax.f32 %v3108, 0.0
  %v3117 = vmax.f32 %v3109, 0.0
  %v3118 = vmax.f32 %v3110, 0.0
  %v3119 = vmax.f32 %v3111, 0.0
  %v3120 = vmax.f32 %v3112, 0.0
  %3121 = vrot.lane.b32.xlu0 %v3113, 17
  %v3122 = vpop.permute.xlu0 %3121
  %3123 = vrot.lane.b32.xlu0 %v3117, 17
  %v3124 = vpop.permute.xlu0 %3123
  %3125 = vrot.lane.b32.xlu0 %v3114, 17
  %v3126 = vpop.permute.xlu0 %3125
  %3127 = vrot.lane.b32.xlu0 %v3118, 17
  %v3128 = vpop.permute.xlu0 %3127
  %3129 = vrot.lane.b32.xlu0 %v3115, 17
  %v3130 = vpop.permute.xlu0 %3129
  %3131 = vrot.lane.b32.xlu0 %v3119, 17
  %v3132 = vpop.permute.xlu0 %3131
  %3133 = vrot.lane.b32.xlu0 %v3116, 17
  %v3134 = vpop.permute.xlu0 %3133
  %3135 = vrot.lane.b32.xlu0 %v3120, 17
  %v3136 = vpop.permute.xlu0 %3135
  %v3137 = vsel %vm608, %v3130, %v3134
  %v3138 = vsel %vm608, %v3132, %v3136
  %v3139 = vsel %vm608, %v3126, %v3130
  %v3140 = vsel %vm608, %v3128, %v3132
  %v3141 = vsel %vm608, %v3122, %v3126
  %v3142 = vsel %vm608, %v3124, %v3128
  %v3143 = vsel %vm608, %v3134, %v3122
  %v3144 = vsel %vm608, %v3136, %v3124
  %v3145 = vmul.f32 %v3143, %v615
  %v3146 = vmul.f32 %v3141, %v616
  %v3147 = vmul.f32 %v3139, %v617
  %v3148 = vmul.f32 %v3137, %v618
  %v3149 = vmul.f32 %v3144, %v615
  %v3150 = vmul.f32 %v3142, %v616
  %v3151 = vmul.f32 %v3140, %v617
  %v3152 = vmul.f32 %v3138, %v618
  %3153 = vst [vmem:[#allocation2] sm:$0xff] %v3145
  %3154 = vst [vmem:[#allocation2 + $0x8] sm:$0xff] %v3146
  %3155 = vst [vmem:[#allocation2 + $0x10] sm:$0xff] %v3147
  %3156 = vst [vmem:[#allocation2 + $0x18] sm:$0xff] %v3148
  %3157 = vst [vmem:[#allocation2 + $0x20] sm:$0xff] %v3149
  %3158 = vst [vmem:[#allocation2 + $0x28] sm:$0xff] %v3150
  %3159 = vst [vmem:[#allocation2 + $0x30] sm:$0xff] %v3151
  %3160 = vst [vmem:[#allocation2 + $0x38] sm:$0xff] %v3152
  %3161 = vrot.lane.b32.xlu0 %v3113, 16
  %v3162 = vpop.permute.xlu0 %3161
  %3163 = vrot.lane.b32.xlu0 %v3117, 16
  %v3164 = vpop.permute.xlu0 %3163
  %3165 = vrot.lane.b32.xlu0 %v3114, 16
  %v3166 = vpop.permute.xlu0 %3165
  %3167 = vrot.lane.b32.xlu0 %v3118, 16
  %v3168 = vpop.permute.xlu0 %3167
  %3169 = vrot.lane.b32.xlu0 %v3115, 16
  %v3170 = vpop.permute.xlu0 %3169
  %3171 = vrot.lane.b32.xlu0 %v3119, 16
  %v3172 = vpop.permute.xlu0 %3171
  %3173 = vrot.lane.b32.xlu0 %v3116, 16
  %v3174 = vpop.permute.xlu0 %3173
  %3175 = vrot.lane.b32.xlu0 %v3120, 16
  %v3176 = vpop.permute.xlu0 %3175
  %v3177 = vsel %vm639, %v3170, %v3174
  %v3178 = vsel %vm639, %v3172, %v3176
  %v3179 = vsel %vm639, %v3166, %v3170
  %v3180 = vsel %vm639, %v3168, %v3172
  %v3181 = vsel %vm639, %v3162, %v3166
  %v3182 = vsel %vm639, %v3164, %v3168
  %v3183 = vsel %vm639, %v3174, %v3162
  %v3184 = vsel %vm639, %v3176, %v3164
  %v3185 = vmul.f32 %v3183, %v646
  %v3186 = vmul.f32 %v3181, %v647
  %v3187 = vmul.f32 %v3179, %v648
  %v3188 = vmul.f32 %v3177, %v649
  %v3189 = vmul.f32 %v3184, %v646
  %v3190 = vmul.f32 %v3182, %v647
  %v3191 = vmul.f32 %v3180, %v648
  %v3192 = vmul.f32 %v3178, %v649
  %3193 = vst [vmem:[#allocation2 + $0x40] sm:$0xff] %v3185
  %3194 = vst [vmem:[#allocation2 + $0x48] sm:$0xff] %v3186
  %3195 = vst [vmem:[#allocation2 + $0x50] sm:$0xff] %v3187
  %3196 = vst [vmem:[#allocation2 + $0x58] sm:$0xff] %v3188
  %3197 = vst [vmem:[#allocation2 + $0x60] sm:$0xff] %v3189
  %3198 = vst [vmem:[#allocation2 + $0x68] sm:$0xff] %v3190
  %3199 = vst [vmem:[#allocation2 + $0x70] sm:$0xff] %v3191
  %3200 = vst [vmem:[#allocation2 + $0x78] sm:$0xff] %v3192
  %3201 = vrot.lane.b32.xlu0 %v3113, 15
  %v3202 = vpop.permute.xlu0 %3201
  %3203 = vrot.lane.b32.xlu0 %v3117, 15
  %v3204 = vpop.permute.xlu0 %3203
  %3205 = vrot.lane.b32.xlu0 %v3114, 15
  %v3206 = vpop.permute.xlu0 %3205
  %3207 = vrot.lane.b32.xlu0 %v3118, 15
  %v3208 = vpop.permute.xlu0 %3207
  %3209 = vrot.lane.b32.xlu0 %v3115, 15
  %v3210 = vpop.permute.xlu0 %3209
  %3211 = vrot.lane.b32.xlu0 %v3119, 15
  %v3212 = vpop.permute.xlu0 %3211
  %3213 = vrot.lane.b32.xlu0 %v3116, 15
  %v3214 = vpop.permute.xlu0 %3213
  %3215 = vrot.lane.b32.xlu0 %v3120, 15
  %v3216 = vpop.permute.xlu0 %3215
  %v3217 = vsel %vm670, %v3210, %v3214
  %v3218 = vsel %vm670, %v3212, %v3216
  %v3219 = vsel %vm670, %v3206, %v3210
  %v3220 = vsel %vm670, %v3208, %v3212
  %v3221 = vsel %vm670, %v3202, %v3206
  %v3222 = vsel %vm670, %v3204, %v3208
  %v3223 = vsel %vm670, %v3214, %v3202
  %v3224 = vsel %vm670, %v3216, %v3204
  %v3225 = vmul.f32 %v3223, %v677
  %v3226 = vmul.f32 %v3221, %v678
  %v3227 = vmul.f32 %v3219, %v679
  %v3228 = vmul.f32 %v3217, %v680
  %v3229 = vmul.f32 %v3224, %v677
  %v3230 = vmul.f32 %v3222, %v678
  %v3231 = vmul.f32 %v3220, %v679
  %v3232 = vmul.f32 %v3218, %v680
  %3233 = vst [vmem:[#allocation2 + $0x80] sm:$0xff] %v3225
  %3234 = vst [vmem:[#allocation2 + $0x88] sm:$0xff] %v3226
  %3235 = vst [vmem:[#allocation2 + $0x90] sm:$0xff] %v3227
  %3236 = vst [vmem:[#allocation2 + $0x98] sm:$0xff] %v3228
  %3237 = vst [vmem:[#allocation2 + $0xa0] sm:$0xff] %v3229
  %3238 = vst [vmem:[#allocation2 + $0xa8] sm:$0xff] %v3230
  %3239 = vst [vmem:[#allocation2 + $0xb0] sm:$0xff] %v3231
  %3240 = vst [vmem:[#allocation2 + $0xb8] sm:$0xff] %v3232
  %3241 = vrot.lane.b32.xlu0 %v3113, 1
  %v3242 = vpop.permute.xlu0 %3241
  %3243 = vrot.lane.b32.xlu0 %v3117, 1
  %v3244 = vpop.permute.xlu0 %3243
  %3245 = vrot.lane.b32.xlu0 %v3114, 1
  %v3246 = vpop.permute.xlu0 %3245
  %3247 = vrot.lane.b32.xlu0 %v3118, 1
  %v3248 = vpop.permute.xlu0 %3247
  %3249 = vrot.lane.b32.xlu0 %v3115, 1
  %v3250 = vpop.permute.xlu0 %3249
  %3251 = vrot.lane.b32.xlu0 %v3119, 1
  %v3252 = vpop.permute.xlu0 %3251
  %3253 = vrot.lane.b32.xlu0 %v3116, 1
  %v3254 = vpop.permute.xlu0 %3253
  %3255 = vrot.lane.b32.xlu0 %v3120, 1
  %v3256 = vpop.permute.xlu0 %3255
  %v3257 = vsel %vm825, %v3250, %v3254
  %v3258 = vsel %vm825, %v3252, %v3256
  %v3259 = vsel %vm825, %v3246, %v3250
  %v3260 = vsel %vm825, %v3248, %v3252
  %v3261 = vsel %vm825, %v3242, %v3246
  %v3262 = vsel %vm825, %v3244, %v3248
  %v3263 = vsel %vm825, %v3254, %v3242
  %v3264 = vsel %vm825, %v3256, %v3244
  %v3265 = vmul.f32 %v3263, %v832
  %v3266 = vmul.f32 %v3261, %v833
  %v3267 = vmul.f32 %v3259, %v834
  %v3268 = vmul.f32 %v3257, %v835
  %v3269 = vmul.f32 %v3264, %v832
  %v3270 = vmul.f32 %v3262, %v833
  %v3271 = vmul.f32 %v3260, %v834
  %v3272 = vmul.f32 %v3258, %v835
  %3273 = vst [vmem:[#allocation2 + $0xc0] sm:$0xff] %v3265
  %3274 = vst [vmem:[#allocation2 + $0xc8] sm:$0xff] %v3266
  %3275 = vst [vmem:[#allocation2 + $0xd0] sm:$0xff] %v3267
  %3276 = vst [vmem:[#allocation2 + $0xd8] sm:$0xff] %v3268
  %3277 = vst [vmem:[#allocation2 + $0xe0] sm:$0xff] %v3269
  %3278 = vst [vmem:[#allocation2 + $0xe8] sm:$0xff] %v3270
  %3279 = vst [vmem:[#allocation2 + $0xf0] sm:$0xff] %v3271
  %3280 = vst [vmem:[#allocation2 + $0xf8] sm:$0xff] %v3272
  %v3281 = vmul.f32 %v3113, %v850
  %v3282 = vmul.f32 %v3114, %v851
  %v3283 = vmul.f32 %v3115, %v852
  %v3284 = vmul.f32 %v3116, %v853
  %v3285 = vmul.f32 %v3117, %v850
  %v3286 = vmul.f32 %v3118, %v851
  %v3287 = vmul.f32 %v3119, %v852
  %v3288 = vmul.f32 %v3120, %v853
  %3289 = vst [vmem:[#allocation2 + $0x100] sm:$0xff] %v3281
  %3290 = vst [vmem:[#allocation2 + $0x108] sm:$0xff] %v3282
  %3291 = vst [vmem:[#allocation2 + $0x110] sm:$0xff] %v3283
  %3292 = vst [vmem:[#allocation2 + $0x118] sm:$0xff] %v3284
  %3293 = vst [vmem:[#allocation2 + $0x120] sm:$0xff] %v3285
  %3294 = vst [vmem:[#allocation2 + $0x128] sm:$0xff] %v3286
  %3295 = vst [vmem:[#allocation2 + $0x130] sm:$0xff] %v3287
  %3296 = vst [vmem:[#allocation2 + $0x138] sm:$0xff] %v3288
  %3297 = vrot.lane.b32.xlu0 %v3113, 127
  %v3298 = vpop.permute.xlu0 %3297
  %3299 = vrot.lane.b32.xlu0 %v3117, 127
  %v3300 = vpop.permute.xlu0 %3299
  %3301 = vrot.lane.b32.xlu0 %v3114, 127
  %v3302 = vpop.permute.xlu0 %3301
  %3303 = vrot.lane.b32.xlu0 %v3118, 127
  %v3304 = vpop.permute.xlu0 %3303
  %3305 = vrot.lane.b32.xlu0 %v3115, 127
  %v3306 = vpop.permute.xlu0 %3305
  %3307 = vrot.lane.b32.xlu0 %v3119, 127
  %v3308 = vpop.permute.xlu0 %3307
  %3309 = vrot.lane.b32.xlu0 %v3116, 127
  %v3310 = vpop.permute.xlu0 %3309
  %3311 = vrot.lane.b32.xlu0 %v3120, 127
  %v3312 = vpop.permute.xlu0 %3311
  %v3313 = vsel %vm874, %v3306, %v3310
  %v3314 = vsel %vm874, %v3308, %v3312
  %v3315 = vsel %vm874, %v3302, %v3306
  %v3316 = vsel %vm874, %v3304, %v3308
  %v3317 = vsel %vm874, %v3298, %v3302
  %v3318 = vsel %vm874, %v3300, %v3304
  %v3319 = vsel %vm874, %v3310, %v3298
  %v3320 = vsel %vm874, %v3312, %v3300
  %v3321 = vmul.f32 %v3317, %v881
  %v3322 = vmul.f32 %v3315, %v882
  %v3323 = vmul.f32 %v3313, %v883
  %v3324 = vmul.f32 %v3319, %v884
  %v3325 = vmul.f32 %v3318, %v881
  %v3326 = vmul.f32 %v3316, %v882
  %v3327 = vmul.f32 %v3314, %v883
  %v3328 = vmul.f32 %v3320, %v884
  %3329 = vst [vmem:[#allocation2 + $0x140] sm:$0xff] %v3321
  %3330 = vst [vmem:[#allocation2 + $0x148] sm:$0xff] %v3322
  %3331 = vst [vmem:[#allocation2 + $0x150] sm:$0xff] %v3323
  %3332 = vst [vmem:[#allocation2 + $0x158] sm:$0xff] %v3324
  %3333 = vst [vmem:[#allocation2 + $0x160] sm:$0xff] %v3325
  %3334 = vst [vmem:[#allocation2 + $0x168] sm:$0xff] %v3326
  %3335 = vst [vmem:[#allocation2 + $0x170] sm:$0xff] %v3327
  %3336 = vst [vmem:[#allocation2 + $0x178] sm:$0xff] %v3328
  %3337 = vrot.lane.b32.xlu0 %v3113, 113
  %v3338 = vpop.permute.xlu0 %3337
  %3339 = vrot.lane.b32.xlu0 %v3117, 113
  %v3340 = vpop.permute.xlu0 %3339
  %3341 = vrot.lane.b32.xlu0 %v3114, 113
  %v3342 = vpop.permute.xlu0 %3341
  %3343 = vrot.lane.b32.xlu0 %v3118, 113
  %v3344 = vpop.permute.xlu0 %3343
  %3345 = vrot.lane.b32.xlu0 %v3115, 113
  %v3346 = vpop.permute.xlu0 %3345
  %3347 = vrot.lane.b32.xlu0 %v3119, 113
  %v3348 = vpop.permute.xlu0 %3347
  %3349 = vrot.lane.b32.xlu0 %v3116, 113
  %v3350 = vpop.permute.xlu0 %3349
  %3351 = vrot.lane.b32.xlu0 %v3120, 113
  %v3352 = vpop.permute.xlu0 %3351
  %v3353 = vsel %vm1029, %v3346, %v3350
  %v3354 = vsel %vm1029, %v3348, %v3352
  %v3355 = vsel %vm1029, %v3342, %v3346
  %v3356 = vsel %vm1029, %v3344, %v3348
  %v3357 = vsel %vm1029, %v3338, %v3342
  %v3358 = vsel %vm1029, %v3340, %v3344
  %v3359 = vsel %vm1029, %v3350, %v3338
  %v3360 = vsel %vm1029, %v3352, %v3340
  %v3361 = vmul.f32 %v3357, %v1036
  %v3362 = vmul.f32 %v3355, %v1037
  %v3363 = vmul.f32 %v3353, %v1038
  %v3364 = vmul.f32 %v3359, %v1039
  %v3365 = vmul.f32 %v3358, %v1036
  %v3366 = vmul.f32 %v3356, %v1037
  %v3367 = vmul.f32 %v3354, %v1038
  %v3368 = vmul.f32 %v3360, %v1039
  %3369 = vst [vmem:[#allocation2 + $0x180] sm:$0xff] %v3361
  %3370 = vst [vmem:[#allocation2 + $0x188] sm:$0xff] %v3362
  %3371 = vst [vmem:[#allocation2 + $0x190] sm:$0xff] %v3363
  %3372 = vst [vmem:[#allocation2 + $0x198] sm:$0xff] %v3364
  %3373 = vst [vmem:[#allocation2 + $0x1a0] sm:$0xff] %v3365
  %3374 = vst [vmem:[#allocation2 + $0x1a8] sm:$0xff] %v3366
  %3375 = vst [vmem:[#allocation2 + $0x1b0] sm:$0xff] %v3367
  %3376 = vst [vmem:[#allocation2 + $0x1b8] sm:$0xff] %v3368
  %3377 = vrot.lane.b32.xlu0 %v3113, 112
  %v3378 = vpop.permute.xlu0 %3377
  %3379 = vrot.lane.b32.xlu0 %v3117, 112
  %v3380 = vpop.permute.xlu0 %3379
  %3381 = vrot.lane.b32.xlu0 %v3114, 112
  %v3382 = vpop.permute.xlu0 %3381
  %3383 = vrot.lane.b32.xlu0 %v3118, 112
  %v3384 = vpop.permute.xlu0 %3383
  %3385 = vrot.lane.b32.xlu0 %v3115, 112
  %v3386 = vpop.permute.xlu0 %3385
  %3387 = vrot.lane.b32.xlu0 %v3119, 112
  %v3388 = vpop.permute.xlu0 %3387
  %3389 = vrot.lane.b32.xlu0 %v3116, 112
  %v3390 = vpop.permute.xlu0 %3389
  %3391 = vrot.lane.b32.xlu0 %v3120, 112
  %v3392 = vpop.permute.xlu0 %3391
  %v3393 = vsel %vm1060, %v3386, %v3390
  %v3394 = vsel %vm1060, %v3388, %v3392
  %v3395 = vsel %vm1060, %v3382, %v3386
  %v3396 = vsel %vm1060, %v3384, %v3388
  %v3397 = vsel %vm1060, %v3378, %v3382
  %v3398 = vsel %vm1060, %v3380, %v3384
  %v3399 = vsel %vm1060, %v3390, %v3378
  %v3400 = vsel %vm1060, %v3392, %v3380
  %v3401 = vmul.f32 %v3397, %v1067
  %v3402 = vmul.f32 %v3395, %v1068
  %v3403 = vmul.f32 %v3393, %v1069
  %v3404 = vmul.f32 %v3399, %v1070
  %v3405 = vmul.f32 %v3398, %v1067
  %v3406 = vmul.f32 %v3396, %v1068
  %v3407 = vmul.f32 %v3394, %v1069
  %v3408 = vmul.f32 %v3400, %v1070
  %3409 = vst [vmem:[#allocation2 + $0x1c0] sm:$0xff] %v3401
  %3410 = vst [vmem:[#allocation2 + $0x1c8] sm:$0xff] %v3402
  %3411 = vst [vmem:[#allocation2 + $0x1d0] sm:$0xff] %v3403
  %3412 = vst [vmem:[#allocation2 + $0x1d8] sm:$0xff] %v3404
  %3413 = vst [vmem:[#allocation2 + $0x1e0] sm:$0xff] %v3405
  %3414 = vst [vmem:[#allocation2 + $0x1e8] sm:$0xff] %v3406
  %3415 = vst [vmem:[#allocation2 + $0x1f0] sm:$0xff] %v3407
  %3416 = vst [vmem:[#allocation2 + $0x1f8] sm:$0xff] %v3408
  %3417 = vrot.lane.b32.xlu0 %v3113, 111
  %v3418 = vpop.permute.xlu0 %3417
  %3419 = vrot.lane.b32.xlu0 %v3117, 111
  %v3420 = vpop.permute.xlu0 %3419
  %3421 = vrot.lane.b32.xlu0 %v3114, 111
  %v3422 = vpop.permute.xlu0 %3421
  %3423 = vrot.lane.b32.xlu0 %v3118, 111
  %v3424 = vpop.permute.xlu0 %3423
  %3425 = vrot.lane.b32.xlu0 %v3115, 111
  %v3426 = vpop.permute.xlu0 %3425
  %3427 = vrot.lane.b32.xlu0 %v3119, 111
  %v3428 = vpop.permute.xlu0 %3427
  %3429 = vrot.lane.b32.xlu0 %v3116, 111
  %v3430 = vpop.permute.xlu0 %3429
  %3431 = vrot.lane.b32.xlu0 %v3120, 111
  %v3432 = vpop.permute.xlu0 %3431
  %v3433 = vsel %vm1091, %v3426, %v3430
  %v3434 = vsel %vm1091, %v3428, %v3432
  %v3435 = vsel %vm1091, %v3422, %v3426
  %v3436 = vsel %vm1091, %v3424, %v3428
  %v3437 = vsel %vm1091, %v3418, %v3422
  %v3438 = vsel %vm1091, %v3420, %v3424
  %v3439 = vsel %vm1091, %v3430, %v3418
  %v3440 = vsel %vm1091, %v3432, %v3420
  %v3441 = vmul.f32 %v3437, %v1098
  %v3442 = vmul.f32 %v3435, %v1099
  %v3443 = vmul.f32 %v3433, %v1100
  %v3444 = vmul.f32 %v3439, %v1101
  %v3445 = vmul.f32 %v3438, %v1098
  %v3446 = vmul.f32 %v3436, %v1099
  %v3447 = vmul.f32 %v3434, %v1100
  %v3448 = vmul.f32 %v3440, %v1101
  %3449 = vst [vmem:[#allocation2 + $0x200] sm:$0xff] %v3441
  %3450 = vst [vmem:[#allocation2 + $0x208] sm:$0xff] %v3442
  %3451 = vst [vmem:[#allocation2 + $0x210] sm:$0xff] %v3443
  %3452 = vst [vmem:[#allocation2 + $0x218] sm:$0xff] %v3444
  %3453 = vst [vmem:[#allocation2 + $0x220] sm:$0xff] %v3445
  %3454 = vst [vmem:[#allocation2 + $0x228] sm:$0xff] %v3446
  %3455 = vst [vmem:[#allocation2 + $0x230] sm:$0xff] %v3447
  %3456 = vst [vmem:[#allocation2 + $0x238] sm:$0xff] %v3448
  %v3457 = vld [vmem:[%s7] sm:$0xff]
  %v3458 = vld [vmem:[%s7 + $0x8] sm:$0xff]
  %v3459 = vld [vmem:[#allocation2] sm:$0xff]
  %v3460 = vld [vmem:[#allocation2 + $0x8] sm:$0xff]
  %v3461 = vld [vmem:[#allocation2 + $0x10] sm:$0xff]
  %v3462 = vld [vmem:[#allocation2 + $0x18] sm:$0xff]
  %v3463 = vld [vmem:[#allocation2 + $0x20] sm:$0xff]
  %v3464 = vld [vmem:[#allocation2 + $0x28] sm:$0xff]
  %v3465 = vld [vmem:[#allocation2 + $0x30] sm:$0xff]
  %v3466 = vld [vmem:[#allocation2 + $0x38] sm:$0xff]
  %v3467 = vld [vmem:[#allocation2 + $0x40] sm:$0xff]
  %v3468 = vld [vmem:[#allocation2 + $0x48] sm:$0xff]
  %v3469 = vld [vmem:[#allocation2 + $0x50] sm:$0xff]
  %v3470 = vld [vmem:[#allocation2 + $0x58] sm:$0xff]
  %v3471 = vld [vmem:[#allocation2 + $0x60] sm:$0xff]
  %v3472 = vld [vmem:[#allocation2 + $0x68] sm:$0xff]
  %v3473 = vld [vmem:[#allocation2 + $0x70] sm:$0xff]
  %v3474 = vld [vmem:[#allocation2 + $0x78] sm:$0xff]
  %v3475 = vld [vmem:[#allocation2 + $0x80] sm:$0xff]
  %v3476 = vld [vmem:[#allocation2 + $0x88] sm:$0xff]
  %v3477 = vld [vmem:[#allocation2 + $0x90] sm:$0xff]
  %v3478 = vld [vmem:[#allocation2 + $0x98] sm:$0xff]
  %v3479 = vld [vmem:[#allocation2 + $0xa0] sm:$0xff]
  %v3480 = vld [vmem:[#allocation2 + $0xa8] sm:$0xff]
  %v3481 = vld [vmem:[#allocation2 + $0xb0] sm:$0xff]
  %v3482 = vld [vmem:[#allocation2 + $0xb8] sm:$0xff]
  %v3483 = vld [vmem:[#allocation2 + $0xc0] sm:$0xff]
  %v3484 = vld [vmem:[#allocation2 + $0xc8] sm:$0xff]
  %v3485 = vld [vmem:[#allocation2 + $0xd0] sm:$0xff]
  %v3486 = vld [vmem:[#allocation2 + $0xd8] sm:$0xff]
  %v3487 = vld [vmem:[#allocation2 + $0xe0] sm:$0xff]
  %v3488 = vld [vmem:[#allocation2 + $0xe8] sm:$0xff]
  %v3489 = vld [vmem:[#allocation2 + $0xf0] sm:$0xff]
  %v3490 = vld [vmem:[#allocation2 + $0xf8] sm:$0xff]
  %v3491 = vld [vmem:[#allocation2 + $0x100] sm:$0xff]
  %v3492 = vld [vmem:[#allocation2 + $0x108] sm:$0xff]
  %v3493 = vld [vmem:[#allocation2 + $0x110] sm:$0xff]
  %v3494 = vld [vmem:[#allocation2 + $0x118] sm:$0xff]
  %v3495 = vld [vmem:[#allocation2 + $0x120] sm:$0xff]
  %v3496 = vld [vmem:[#allocation2 + $0x128] sm:$0xff]
  %v3497 = vld [vmem:[#allocation2 + $0x130] sm:$0xff]
  %v3498 = vld [vmem:[#allocation2 + $0x138] sm:$0xff]
  %v3499 = vld [vmem:[#allocation2 + $0x140] sm:$0xff]
  %v3500 = vld [vmem:[#allocation2 + $0x148] sm:$0xff]
  %v3501 = vld [vmem:[#allocation2 + $0x150] sm:$0xff]
  %v3502 = vld [vmem:[#allocation2 + $0x158] sm:$0xff]
  %v3503 = vld [vmem:[#allocation2 + $0x160] sm:$0xff]
  %v3504 = vld [vmem:[#allocation2 + $0x168] sm:$0xff]
  %v3505 = vld [vmem:[#allocation2 + $0x170] sm:$0xff]
  %v3506 = vld [vmem:[#allocation2 + $0x178] sm:$0xff]
  %v3507 = vld [vmem:[#allocation2 + $0x180] sm:$0xff]
  %v3508 = vld [vmem:[#allocation2 + $0x188] sm:$0xff]
  %v3509 = vld [vmem:[#allocation2 + $0x190] sm:$0xff]
  %v3510 = vld [vmem:[#allocation2 + $0x198] sm:$0xff]
  %v3511 = vld [vmem:[#allocation2 + $0x1a0] sm:$0xff]
  %v3512 = vld [vmem:[#allocation2 + $0x1a8] sm:$0xff]
  %v3513 = vld [vmem:[#allocation2 + $0x1b0] sm:$0xff]
  %v3514 = vld [vmem:[#allocation2 + $0x1b8] sm:$0xff]
  %v3515 = vld [vmem:[#allocation2 + $0x1c0] sm:$0xff]
  %v3516 = vld [vmem:[#allocation2 + $0x1c8] sm:$0xff]
  %v3517 = vld [vmem:[#allocation2 + $0x1d0] sm:$0xff]
  %v3518 = vld [vmem:[#allocation2 + $0x1d8] sm:$0xff]
  %v3519 = vld [vmem:[#allocation2 + $0x1e0] sm:$0xff]
  %v3520 = vld [vmem:[#allocation2 + $0x1e8] sm:$0xff]
  %v3521 = vld [vmem:[#allocation2 + $0x1f0] sm:$0xff]
  %v3522 = vld [vmem:[#allocation2 + $0x1f8] sm:$0xff]
  %v3523 = vld [vmem:[#allocation2 + $0x200] sm:$0xff]
  %v3524 = vld [vmem:[#allocation2 + $0x208] sm:$0xff]
  %v3525 = vld [vmem:[#allocation2 + $0x210] sm:$0xff]
  %v3526 = vld [vmem:[#allocation2 + $0x218] sm:$0xff]
  %v3527 = vld [vmem:[#allocation2 + $0x220] sm:$0xff]
  %v3528 = vld [vmem:[#allocation2 + $0x228] sm:$0xff]
  %v3529 = vld [vmem:[#allocation2 + $0x230] sm:$0xff]
  %v3530 = vld [vmem:[#allocation2 + $0x238] sm:$0xff]
  %vm3531 = vcmask 130048
  %v3533 = vsel %vm3531, %v3458, 0
  %3535 = vmatpush.msra.mxu0 %v3519
  %3536 = vmatpush.msra.mxu0 %v3515
  %3537 = vmatpush.msra.mxu0 %v3511
  %3538 = vmatpush.msra.mxu0 %v3507
  %3539 = vmatpush.msra.mxu0 %v3503
  %3540 = vmatpush.msra.mxu0 %v3499
  %3541 = vmatpush.msra.mxu0 %v3495
  %3542 = vmatpush.msra.mxu0 %v3491
  %3543 = vmatpush.msra.mxu0 %v3487
  %3544 = vmatpush.msra.mxu0 %v3483
  %3545 = vmatpush.msra.mxu0 %v3479
  %3546 = vmatpush.msra.mxu0 %v3475
  %3547 = vmatpush.msra.mxu0 %v3471
  %3548 = vmatpush.msra.mxu0 %v3467
  %3549 = vmatpush.msra.mxu0 %v3463
  %3550 = vmatpush.msra.mxu0 %v3459
  %3551 = vmatmul.f32.gmra.mxu0 %v3457
  %v3552 = vpop.f32.mrf.mxu0
  %v3553 = vadd.f32 0.0, %v3552
  %3554 = vdwg.mxu0
  %3555 = vmatpush.msra.mxu0 0.0
  %3556 = vmatpush.msra.mxu0 0.0
  %3557 = vmatpush.msra.mxu0 0.0
  %3558 = vmatpush.msra.mxu0 0.0
  %3559 = vmatpush.msra.mxu0 0.0
  %3560 = vmatpush.msra.mxu0 0.0
  %3561 = vmatpush.msra.mxu0 0.0
  %3562 = vmatpush.msra.mxu0 0.0
  %3563 = vmatpush.msra.mxu0 0.0
  %3564 = vmatpush.msra.mxu0 0.0
  %3565 = vmatpush.msra.mxu0 0.0
  %3566 = vmatpush.msra.mxu0 0.0
  %3567 = vmatpush.msra.mxu0 0.0
  %3568 = vmatpush.msra.mxu0 0.0
  %3569 = vmatpush.msra.mxu0 %v3527
  %3570 = vmatpush.msra.mxu0 %v3523
  %3571 = vmatmul.f32.gmra.mxu0 %v3533
  %v3572 = vpop.f32.mrf.mxu0
  %v3573 = vadd.f32 %v3553, %v3572
  %3574 = vdwg.mxu0
  %3575 = vmatpush.msra.mxu0 %v3520
  %3576 = vmatpush.msra.mxu0 %v3516
  %3577 = vmatpush.msra.mxu0 %v3512
  %3578 = vmatpush.msra.mxu0 %v3508
  %3579 = vmatpush.msra.mxu0 %v3504
  %3580 = vmatpush.msra.mxu0 %v3500
  %3581 = vmatpush.msra.mxu0 %v3496
  %3582 = vmatpush.msra.mxu0 %v3492
  %3583 = vmatpush.msra.mxu0 %v3488
  %3584 = vmatpush.msra.mxu0 %v3484
  %3585 = vmatpush.msra.mxu0 %v3480
  %3586 = vmatpush.msra.mxu0 %v3476
  %3587 = vmatpush.msra.mxu0 %v3472
  %3588 = vmatpush.msra.mxu0 %v3468
  %3589 = vmatpush.msra.mxu0 %v3464
  %3590 = vmatpush.msra.mxu0 %v3460
  %3591 = vmatmul.f32.gmra.mxu0 %v3457
  %v3592 = vpop.f32.mrf.mxu0
  %v3593 = vadd.f32 0.0, %v3592
  %3594 = vdwg.mxu0
  %3595 = vmatpush.msra.mxu0 0.0
  %3596 = vmatpush.msra.mxu0 0.0
  %3597 = vmatpush.msra.mxu0 0.0
  %3598 = vmatpush.msra.mxu0 0.0
  %3599 = vmatpush.msra.mxu0 0.0
  %3600 = vmatpush.msra.mxu0 0.0
  %3601 = vmatpush.msra.mxu0 0.0
  %3602 = vmatpush.msra.mxu0 0.0
  %3603 = vmatpush.msra.mxu0 0.0
  %3604 = vmatpush.msra.mxu0 0.0
  %3605 = vmatpush.msra.mxu0 0.0
  %3606 = vmatpush.msra.mxu0 0.0
  %3607 = vmatpush.msra.mxu0 0.0
  %3608 = vmatpush.msra.mxu0 0.0
  %3609 = vmatpush.msra.mxu0 %v3528
  %3610 = vmatpush.msra.mxu0 %v3524
  %3611 = vmatmul.f32.gmra.mxu0 %v3533
  %v3612 = vpop.f32.mrf.mxu0
  %v3613 = vadd.f32 %v3593, %v3612
  %3614 = vdwg.mxu0
  %3615 = vmatpush.msra.mxu0 %v3521
  %3616 = vmatpush.msra.mxu0 %v3517
  %3617 = vmatpush.msra.mxu0 %v3513
  %3618 = vmatpush.msra.mxu0 %v3509
  %3619 = vmatpush.msra.mxu0 %v3505
  %3620 = vmatpush.msra.mxu0 %v3501
  %3621 = vmatpush.msra.mxu0 %v3497
  %3622 = vmatpush.msra.mxu0 %v3493
  %3623 = vmatpush.msra.mxu0 %v3489
  %3624 = vmatpush.msra.mxu0 %v3485
  %3625 = vmatpush.msra.mxu0 %v3481
  %3626 = vmatpush.msra.mxu0 %v3477
  %3627 = vmatpush.msra.mxu0 %v3473
  %3628 = vmatpush.msra.mxu0 %v3469
  %3629 = vmatpush.msra.mxu0 %v3465
  %3630 = vmatpush.msra.mxu0 %v3461
  %3631 = vmatmul.f32.gmra.mxu0 %v3457
  %v3632 = vpop.f32.mrf.mxu0
  %v3633 = vadd.f32 0.0, %v3632
  %3634 = vdwg.mxu0
  %3635 = vmatpush.msra.mxu0 0.0
  %3636 = vmatpush.msra.mxu0 0.0
  %3637 = vmatpush.msra.mxu0 0.0
  %3638 = vmatpush.msra.mxu0 0.0
  %3639 = vmatpush.msra.mxu0 0.0
  %3640 = vmatpush.msra.mxu0 0.0
  %3641 = vmatpush.msra.mxu0 0.0
  %3642 = vmatpush.msra.mxu0 0.0
  %3643 = vmatpush.msra.mxu0 0.0
  %3644 = vmatpush.msra.mxu0 0.0
  %3645 = vmatpush.msra.mxu0 0.0
  %3646 = vmatpush.msra.mxu0 0.0
  %3647 = vmatpush.msra.mxu0 0.0
  %3648 = vmatpush.msra.mxu0 0.0
  %3649 = vmatpush.msra.mxu0 %v3529
  %3650 = vmatpush.msra.mxu0 %v3525
  %3651 = vmatmul.f32.gmra.mxu0 %v3533
  %v3652 = vpop.f32.mrf.mxu0
  %v3653 = vadd.f32 %v3633, %v3652
  %3654 = vdwg.mxu0
  %3655 = vmatpush.msra.mxu0 %v3522
  %3656 = vmatpush.msra.mxu0 %v3518
  %3657 = vmatpush.msra.mxu0 %v3514
  %3658 = vmatpush.msra.mxu0 %v3510
  %3659 = vmatpush.msra.mxu0 %v3506
  %3660 = vmatpush.msra.mxu0 %v3502
  %3661 = vmatpush.msra.mxu0 %v3498
  %3662 = vmatpush.msra.mxu0 %v3494
  %3663 = vmatpush.msra.mxu0 %v3490
  %3664 = vmatpush.msra.mxu0 %v3486
  %3665 = vmatpush.msra.mxu0 %v3482
  %3666 = vmatpush.msra.mxu0 %v3478
  %3667 = vmatpush.msra.mxu0 %v3474
  %3668 = vmatpush.msra.mxu0 %v3470
  %3669 = vmatpush.msra.mxu0 %v3466
  %3670 = vmatpush.msra.mxu0 %v3462
  %3671 = vmatmul.f32.gmra.mxu0 %v3457
  %v3672 = vpop.f32.mrf.mxu0
  %v3673 = vadd.f32 0.0, %v3672
  %3674 = vdwg.mxu0
  %3675 = vmatpush.msra.mxu0 0.0
  %3676 = vmatpush.msra.mxu0 0.0
  %3677 = vmatpush.msra.mxu0 0.0
  %3678 = vmatpush.msra.mxu0 0.0
  %3679 = vmatpush.msra.mxu0 0.0
  %3680 = vmatpush.msra.mxu0 0.0
  %3681 = vmatpush.msra.mxu0 0.0
  %3682 = vmatpush.msra.mxu0 0.0
  %3683 = vmatpush.msra.mxu0 0.0
  %3684 = vmatpush.msra.mxu0 0.0
  %3685 = vmatpush.msra.mxu0 0.0
  %3686 = vmatpush.msra.mxu0 0.0
  %3687 = vmatpush.msra.mxu0 0.0
  %3688 = vmatpush.msra.mxu0 0.0
  %3689 = vmatpush.msra.mxu0 %v3530
  %3690 = vmatpush.msra.mxu0 %v3526
  %3691 = vmatmul.f32.gmra.mxu0 %v3533
  %v3692 = vpop.f32.mrf.mxu0
  %v3693 = vadd.f32 %v3673, %v3692
  %3694 = vdwg.mxu0
  %v3695 = vadd.f32 %v3573, %v3613
  %v3696 = vadd.f32 %v3695, %v3653
  %v3697 = vadd.f32 %v3696, %v3693
  %3698 = vadd.xlane.f32.xlu0 %v3697
  %v3699 = vpop.xlane.xlu0 %3698
  %v3700 = vmul.f32 %v3699, 0.001953125
  %v3701 = vsub.f32 %v3573, %v3700
  %v3702 = vsub.f32 %v3613, %v3700
  %v3703 = vsub.f32 %v3653, %v3700
  %v3704 = vsub.f32 %v3693, %v3700
  %v3705 = vmul.f32 %v3701, %v2145
  %v3706 = vmul.f32 %v3702, %v2146
  %v3707 = vmul.f32 %v3703, %v2147
  %v3708 = vmul.f32 %v3704, %v2148
  %v3709 = vmul.f32 %v3705, %v3705
  %v3710 = vmul.f32 %v3706, %v3706
  %v3711 = vmul.f32 %v3707, %v3707
  %v3712 = vmul.f32 %v3708, %v3708
  %v3713 = vadd.f32 %v3709, %v3710
  %v3714 = vadd.f32 %v3713, %v3711
  %v3715 = vadd.f32 %v3714, %v3712
  %3716 = vadd.xlane.f32.xlu0 %v3715
  %v3717 = vpop.xlane.xlu0 %3716
  %v3718 = vmul.f32 %v3717, 0.001953125
  %v3719 = vld [vmem:[%s8] sm:$0xff]
  %v3720 = vadd.f32 %v3718, 1e-05
  %v3721 = vrsqrt.pop %v3720
  %v3722 = vmul.f32 %v3721, %v3720
  %v3723 = vmul.f32 %v3722, %v3721
  %v3724 = vmul.f32 0.5, %v3723
  %v3725 = vsub.f32 1.5, %v3724
  %v3726 = vmul.f32 %v3721, %v3725
  %vm3727 = vweird.f32 %v3720
  %vm3728 = vweird.f32 %v3721
  %vm3729 = vmor %vm3727, %vm3728
  %v3730 = vsel %vm3729, %v3721, %v3726
  %v3731 = vmul.f32 %v3719, %v3730
  %v3732 = vmul.f32 %v3700, %v3731
  %3734 = vrot.lane.b32.xlu0 %v3732, 1
  %v3735 = vpop.permute.xlu0 %3734
  %v3737 = vsub.f32 %v3719, %v3735
  %3739 = vset.pattern.permute.xlu0 0
  %3740 = vperm.xlu0 %3739, %v3731
  %v3741 = vpop.permute.xlu0 %3740
  %v3743 = vmul.f32 %v3573, %v3741
  %v3744 = vmul.f32 %v3613, %v3741
  %v3745 = vmul.f32 %v3653, %v3741
  %v3746 = vmul.f32 %v3693, %v3741
  %3748 = vset.pattern.permute.xlu0 1
  %3749 = vperm.xlu0 %3748, %v3737
  %v3750 = vpop.permute.xlu0 %3749
  %v3752 = vadd.f32 %v3743, %v3750
  %v3753 = vadd.f32 %v3744, %v3750
  %v3754 = vadd.f32 %v3745, %v3750
  %v3755 = vadd.f32 %v3746, %v3750
  %v3756 = vmax.f32 %v3752, 0.0
  %v3757 = vmax.f32 %v3753, 0.0
  %v3758 = vmax.f32 %v3754, 0.0
  %v3759 = vmax.f32 %v3755, 0.0
  %v3760 = vmul.f32 %v3756, %v850
  %v3761 = vmul.f32 %v3757, %v851
  %v3762 = vmul.f32 %v3758, %v852
  %v3763 = vmul.f32 %v3759, %v853
  %3764 = vst [vmem:[#allocation2] sm:$0xff] %v3760
  %3765 = vst [vmem:[#allocation2 + $0x8] sm:$0xff] %v3761
  %3766 = vst [vmem:[#allocation2 + $0x10] sm:$0xff] %v3762
  %3767 = vst [vmem:[#allocation2 + $0x18] sm:$0xff] %v3763
  %v3768 = vld [vmem:[%s9] sm:$0xff]
  %v3769 = vld [vmem:[%s9 + $0x8] sm:$0xff]
  %v3770 = vld [vmem:[#allocation2] sm:$0xff]
  %v3771 = vld [vmem:[#allocation2 + $0x8] sm:$0xff]
  %v3772 = vld [vmem:[#allocation2 + $0x10] sm:$0xff]
  %v3773 = vld [vmem:[#allocation2 + $0x18] sm:$0xff]
  %v3775 = vsel %vm1810, %v3768, 0
  %v3778 = vsel %vm1810, %v3769, 0
  %3780 = vmatpush.msra.mxu0 0.0
  %3781 = vmatpush.msra.mxu0 0.0
  %3782 = vmatpush.msra.mxu0 0.0
  %3783 = vmatpush.msra.mxu0 0.0
  %3784 = vmatpush.msra.mxu0 0.0
  %3785 = vmatpush.msra.mxu0 0.0
  %3786 = vmatpush.msra.mxu0 0.0
  %3787 = vmatpush.msra.mxu0 0.0
  %3788 = vmatpush.msra.mxu0 0.0
  %3789 = vmatpush.msra.mxu0 0.0
  %3790 = vmatpush.msra.mxu0 0.0
  %3791 = vmatpush.msra.mxu0 0.0
  %3792 = vmatpush.msra.mxu0 0.0
  %3793 = vmatpush.msra.mxu0 0.0
  %3794 = vmatpush.msra.mxu0 0.0
  %3795 = vmatpush.msra.mxu0 %v3770
  %3796 = vmatmul.f32.gmra.mxu0 %v3775
  %v3797 = vpop.f32.mrf.mxu0
  %v3798 = vadd.f32 0.0, %v3797
  %3799 = vmatmul.f32.gmra.mxu0 %v3778
  %v3800 = vpop.f32.mrf.mxu0
  %v3801 = vadd.f32 0.0, %v3800
  %3802 = vdwg.mxu0
  %3803 = vmatpush.msra.mxu0 0.0
  %3804 = vmatpush.msra.mxu0 0.0
  %3805 = vmatpush.msra.mxu0 0.0
  %3806 = vmatpush.msra.mxu0 0.0
  %3807 = vmatpush.msra.mxu0 0.0
  %3808 = vmatpush.msra.mxu0 0.0
  %3809 = vmatpush.msra.mxu0 0.0
  %3810 = vmatpush.msra.mxu0 0.0
  %3811 = vmatpush.msra.mxu0 0.0
  %3812 = vmatpush.msra.mxu0 0.0
  %3813 = vmatpush.msra.mxu0 0.0
  %3814 = vmatpush.msra.mxu0 0.0
  %3815 = vmatpush.msra.mxu0 0.0
  %3816 = vmatpush.msra.mxu0 0.0
  %3817 = vmatpush.msra.mxu0 0.0
  %3818 = vmatpush.msra.mxu0 %v3771
  %3819 = vmatmul.f32.gmra.mxu0 %v3775
  %v3820 = vpop.f32.mrf.mxu0
  %v3821 = vadd.f32 0.0, %v3820
  %3822 = vmatmul.f32.gmra.mxu0 %v3778
  %v3823 = vpop.f32.mrf.mxu0
  %v3824 = vadd.f32 0.0, %v3823
  %3825 = vdwg.mxu0
  %3826 = vmatpush.msra.mxu0 0.0
  %3827 = vmatpush.msra.mxu0 0.0
  %3828 = vmatpush.msra.mxu0 0.0
  %3829 = vmatpush.msra.mxu0 0.0
  %3830 = vmatpush.msra.mxu0 0.0
  %3831 = vmatpush.msra.mxu0 0.0
  %3832 = vmatpush.msra.mxu0 0.0
  %3833 = vmatpush.msra.mxu0 0.0
  %3834 = vmatpush.msra.mxu0 0.0
  %3835 = vmatpush.msra.mxu0 0.0
  %3836 = vmatpush.msra.mxu0 0.0
  %3837 = vmatpush.msra.mxu0 0.0
  %3838 = vmatpush.msra.mxu0 0.0
  %3839 = vmatpush.msra.mxu0 0.0
  %3840 = vmatpush.msra.mxu0 0.0
  %3841 = vmatpush.msra.mxu0 %v3772
  %3842 = vmatmul.f32.gmra.mxu0 %v3775
  %v3843 = vpop.f32.mrf.mxu0
  %v3844 = vadd.f32 0.0, %v3843
  %3845 = vmatmul.f32.gmra.mxu0 %v3778
  %v3846 = vpop.f32.mrf.mxu0
  %v3847 = vadd.f32 0.0, %v3846
  %3848 = vdwg.mxu0
  %3849 = vmatpush.msra.mxu0 0.0
  %3850 = vmatpush.msra.mxu0 0.0
  %3851 = vmatpush.msra.mxu0 0.0
  %3852 = vmatpush.msra.mxu0 0.0
  %3853 = vmatpush.msra.mxu0 0.0
  %3854 = vmatpush.msra.mxu0 0.0
  %3855 = vmatpush.msra.mxu0 0.0
  %3856 = vmatpush.msra.mxu0 0.0
  %3857 = vmatpush.msra.mxu0 0.0
  %3858 = vmatpush.msra.mxu0 0.0
  %3859 = vmatpush.msra.mxu0 0.0
  %3860 = vmatpush.msra.mxu0 0.0
  %3861 = vmatpush.msra.mxu0 0.0
  %3862 = vmatpush.msra.mxu0 0.0
  %3863 = vmatpush.msra.mxu0 0.0
  %3864 = vmatpush.msra.mxu0 %v3773
  %3865 = vmatmul.f32.gmra.mxu0 %v3775
  %v3866 = vpop.f32.mrf.mxu0
  %v3867 = vadd.f32 0.0, %v3866
  %3868 = vmatmul.f32.gmra.mxu0 %v3778
  %v3869 = vpop.f32.mrf.mxu0
  %v3870 = vadd.f32 0.0, %v3869
  %3871 = vdwg.mxu0
  %v3872 = vadd.f32 %v3798, %v3821
  %v3873 = vadd.f32 %v3872, %v3844
  %v3874 = vadd.f32 %v3873, %v3867
  %3875 = vadd.xlane.f32.xlu0 %v3874
  %v3876 = vpop.xlane.xlu0 %3875
  %v3877 = vadd.f32 %v3801, %v3824
  %v3878 = vadd.f32 %v3877, %v3847
  %v3879 = vadd.f32 %v3878, %v3870
  %3880 = vadd.xlane.f32.xlu0 %v3879
  %v3881 = vpop.xlane.xlu0 %3880
  %v3882 = vmul.f32 %v3876, 0.001953125
  %v3883 = vmul.f32 %v3881, 0.001953125
  %v3884 = vsub.f32 %v3798, %v3882
  %v3885 = vsub.f32 %v3821, %v3882
  %v3886 = vsub.f32 %v3844, %v3882
  %v3887 = vsub.f32 %v3867, %v3882
  %v3888 = vsub.f32 %v3801, %v3883
  %v3889 = vsub.f32 %v3824, %v3883
  %v3890 = vsub.f32 %v3847, %v3883
  %v3891 = vsub.f32 %v3870, %v3883
  %v3892 = vmul.f32 %v3884, %v2145
  %v3893 = vmul.f32 %v3885, %v2146
  %v3894 = vmul.f32 %v3886, %v2147
  %v3895 = vmul.f32 %v3887, %v2148
  %v3896 = vmul.f32 %v3888, %v2145
  %v3897 = vmul.f32 %v3889, %v2146
  %v3898 = vmul.f32 %v3890, %v2147
  %v3899 = vmul.f32 %v3891, %v2148
  %v3900 = vmul.f32 %v3892, %v3892
  %v3901 = vmul.f32 %v3893, %v3893
  %v3902 = vmul.f32 %v3894, %v3894
  %v3903 = vmul.f32 %v3895, %v3895
  %v3904 = vmul.f32 %v3896, %v3896
  %v3905 = vmul.f32 %v3897, %v3897
  %v3906 = vmul.f32 %v3898, %v3898
  %v3907 = vmul.f32 %v3899, %v3899
  %v3908 = vadd.f32 %v3900, %v3901
  %v3909 = vadd.f32 %v3908, %v3902
  %v3910 = vadd.f32 %v3909, %v3903
  %3911 = vadd.xlane.f32.xlu0 %v3910
  %v3912 = vpop.xlane.xlu0 %3911
  %v3913 = vadd.f32 %v3904, %v3905
  %v3914 = vadd.f32 %v3913, %v3906
  %v3915 = vadd.f32 %v3914, %v3907
  %3916 = vadd.xlane.f32.xlu0 %v3915
  %v3917 = vpop.xlane.xlu0 %3916
  %v3918 = vmul.f32 %v3912, 0.001953125
  %v3919 = vmul.f32 %v3917, 0.001953125
  %v3920 = vld [vmem:[%s10] sm:$0xff]
  %v3921 = vld [vmem:[%s10 + $0x8] sm:$0xff]
  %v3922 = vadd.f32 %v3918, 1e-05
  %v3923 = vadd.f32 %v3919, 1e-05
  %v3924 = vrsqrt.pop %v3922
  %v3925 = vmul.f32 %v3924, %v3922
  %v3926 = vmul.f32 %v3925, %v3924
  %v3927 = vmul.f32 0.5, %v3926
  %v3928 = vsub.f32 1.5, %v3927
  %v3929 = vmul.f32 %v3924, %v3928
  %vm3930 = vweird.f32 %v3922
  %vm3931 = vweird.f32 %v3924
  %vm3932 = vmor %vm3930, %vm3931
  %v3933 = vsel %vm3932, %v3924, %v3929
  %v3934 = vrsqrt.pop %v3923
  %v3935 = vmul.f32 %v3934, %v3923
  %v3936 = vmul.f32 %v3935, %v3934
  %v3937 = vmul.f32 0.5, %v3936
  %v3938 = vsub.f32 1.5, %v3937
  %v3939 = vmul.f32 %v3934, %v3938
  %vm3940 = vweird.f32 %v3923
  %vm3941 = vweird.f32 %v3934
  %vm3942 = vmor %vm3940, %vm3941
  %v3943 = vsel %vm3942, %v3934, %v3939
  %v3944 = vmul.f32 %v3920, %v3933
  %v3945 = vmul.f32 %v3921, %v3943
  %v3946 = vmul.f32 %v3882, %v3944
  %v3947 = vmul.f32 %v3883, %v3945
  %3950 = vrot.lane.b32.xlu0 %v3946, 1
  %v3951 = vpop.permute.xlu0 %3950
  %3952 = vrot.lane.b32.xlu0 %v3947, 1
  %v3953 = vpop.permute.xlu0 %3952
  %v3956 = vsub.f32 %v3920, %v3951
  %v3957 = vsub.f32 %v3921, %v3953
  %3959 = vset.pattern.permute.xlu0 0
  %3960 = vperm.xlu0 %3959, %v3944
  %v3961 = vpop.permute.xlu0 %3960
  %3964 = vset.pattern.permute.xlu0 0
  %3965 = vperm.xlu0 %3964, %v3945
  %v3966 = vpop.permute.xlu0 %3965
  %v3968 = vmul.f32 %v3798, %v3961
  %v3969 = vmul.f32 %v3821, %v3961
  %v3970 = vmul.f32 %v3844, %v3961
  %v3971 = vmul.f32 %v3867, %v3961
  %v3972 = vmul.f32 %v3801, %v3966
  %v3973 = vmul.f32 %v3824, %v3966
  %v3974 = vmul.f32 %v3847, %v3966
  %v3975 = vmul.f32 %v3870, %v3966
  %3977 = vset.pattern.permute.xlu0 1
  %3978 = vperm.xlu0 %3977, %v3956
  %v3979 = vpop.permute.xlu0 %3978
  %3982 = vset.pattern.permute.xlu0 1
  %3983 = vperm.xlu0 %3982, %v3957
  %v3984 = vpop.permute.xlu0 %3983
  %v3986 = vadd.f32 %v3968, %v3979
  %v3987 = vadd.f32 %v3969, %v3979
  %v3988 = vadd.f32 %v3970, %v3979
  %v3989 = vadd.f32 %v3971, %v3979
  %v3990 = vadd.f32 %v3972, %v3984
  %v3991 = vadd.f32 %v3973, %v3984
  %v3992 = vadd.f32 %v3974, %v3984
  %v3993 = vadd.f32 %v3975, %v3984
  %3994 = vst [vmem:[%s11] sm:$0xff] %v3986
  %3995 = vst [vmem:[%s11 + $0x8] sm:$0xff] %v3987
  %3996 = vst [vmem:[%s11 + $0x10] sm:$0xff] %v3988
  %3997 = vst [vmem:[%s11 + $0x18] sm:$0xff] %v3989
  %3998 = vst [vmem:[%s11 + $0x20] sm:$0xff] %v3990
  %3999 = vst [vmem:[%s11 + $0x28] sm:$0xff] %v3991
  %4000 = vst [vmem:[%s11 + $0x30] sm:$0xff] %v3992
  %4001 = vst [vmem:[%s11 + $0x38] sm:$0xff] %v3993
  // Predicated region
  $region46: #{torchnet2_forward.1} parent=0 // pred_check
    _
  $region47: #{torchnet2_forward.1} parent=0 // pred_check_branch
    %4003 = sbr.rel (0) target = $region49
  $region48: #{torchnet2_forward.1} parent=0 // pred_region
    _
  $region49: #{torchnet2_forward.1} parent=0 // pred_fallthru
    _
  // Predicated region
  $region50: #{torchnet2_forward.1} parent=0 // pred_check
    _
  $region51: #{torchnet2_forward.1} parent=0 // pred_check_branch
    %4005 = sbr.rel (0) target = $region53
  $region52: #{torchnet2_forward.1} parent=0 // pred_region
    _
  $region53: #{torchnet2_forward.1} parent=0 // pred_fallthru
    _

</llo_original>
